<compile_context>
chip_gen: v6e
topology: v6e:2x2x1
jax: 0.10.0
libtpu: 0.0.40
codegen_flags: <defaults>
</compile_context>

<pallas_src>
import numpy as np
import jax
import jax.numpy as jnp
from jax import lax
from jax.experimental import pallas as pl
from jax.experimental.pallas import tpu as pltpu

N_WIRES = 4
DIM = 2 ** N_WIRES            # 16
SIZE = 28
N_PATCH = (SIZE // 2) ** 2    # 196
FEAT = N_WIRES * N_PATCH      # 784
N_CLASSES = 10
PAD_CLASSES = 128             # classes padded to one full 128-lane register

TILE_B_MAX = 128              # batch rows per grid step (~20 MiB VMEM incl. temps)


def _cdiv(a, b):
    return -(-a // b)


def _round_up(a, b):
    return _cdiv(a, b) * b


# ----------------------------------------------------------------------------
# Deterministic parameter construction (host-side numpy)
# ----------------------------------------------------------------------------
def _ry(t):
    c, s = np.cos(t / 2.0), np.sin(t / 2.0)
    return np.array([[c, -s], [s, c]], dtype=np.complex128)


def _rx(t):
    c, s = np.cos(t / 2.0), np.sin(t / 2.0)
    return np.array([[c, -1j * s], [-1j * s, c]], dtype=np.complex128)


def _rz(t):
    return np.array([[np.exp(-1j * t / 2.0), 0.0],
                     [0.0, np.exp(1j * t / 2.0)]], dtype=np.complex128)


def _single_qubit_full(gate, wire):
    ops = [np.eye(2, dtype=np.complex128)] * N_WIRES
    ops[wire] = gate
    full = ops[0]
    for o in ops[1:]:
        full = np.kron(full, o)
    return full


def _cnot_full(control, target):
    m = np.zeros((DIM, DIM), dtype=np.complex128)
    for s in range(DIM):
        cb = (s >> (N_WIRES - 1 - control)) & 1
        s2 = s ^ (1 << (N_WIRES - 1 - target)) if cb else s
        m[s2, s] = 1.0
    return m


def build_random_layer_unitary(n_ops=8, seed=1234):
    """Deterministic stand-in for tq.RandomLayer(n_ops=8, wires=range(4))."""
    rng = np.random.default_rng(seed)
    u = np.eye(DIM, dtype=np.complex128)
    for _ in range(n_ops):
        kind = int(rng.integers(0, 4))
        if kind < 3:
            wire = int(rng.integers(0, N_WIRES))
            theta = float(rng.uniform(0.0, 2.0 * np.pi))
            gate = [_rx, _ry, _rz][kind](theta)
            g = _single_qubit_full(gate, wire)
        else:
            c, t = rng.choice(N_WIRES, size=2, replace=False)
            g = _cnot_full(int(c), int(t))
        u = g @ u
    return u


def build_bit_and_sign_tables():
    # bits[w, s] = bit of wire w in basis state s (wire 0 = MSB)
    bits = np.zeros((N_WIRES, DIM), dtype=np.float32)
    for w in range(N_WIRES):
        for s in range(DIM):
            bits[w, s] = (s >> (N_WIRES - 1 - w)) & 1
    # sign[s, w] = <s| Z_w |s> = 1 - 2*bit
    sign = (1.0 - 2.0 * bits.T).astype(np.float32)   # (16, 4)
    return bits, sign


# ----------------------------------------------------------------------------
# Fused Pallas kernel: quanvolution + Linear + log_softmax for one batch tile
# ----------------------------------------------------------------------------
def fused_kernel(cs_ref, bits_ref, u2_ref, s4_ref, w3_ref, bias_ref, out_ref, z_scr):
    """One batch tile of the full HybridModel forward pass.

    cs_ref  : (TB, 8, 196)   bf16  rows 0..3 = cos(theta_w/2), rows 4..7 = sin(theta_w/2)
    bits_ref: (1, 16, 4)     f32   bit of wire w in basis state s (wire 0 = MSB)
    u2_ref  : (32, 16)       bf16  [Re(U); Im(U)] stacked
    s4_ref  : (4, 32)        bf16  [sign^T | sign^T], sign[s, w] = 1 - 2*bit
    w3_ref  : (4, 196, 128)  bf16  head weights, W3[w, p, c] = W[c, 4p + w]
    bias_ref: (1, 128)       f32   head bias (-1e9 on padded classes)
    out_ref : (TB, 128)      f32   log-probabilities (first 10 lanes valid)
    z_scr   : (TB, 4, 196)   f32   VMEM scratch holding per-wire <Z_w>
    """
    tb = out_ref.shape[0]
    # psi0 math kept in f32: v5e has no bf16 VALU and it preserves accuracy margin.
    cs = cs_ref[...].astype(jnp.float32)             # (TB, 8, 196)
    bits = bits_ref[...]                             # (1, 16, 4)

    # |psi0> = (RY(t0) x RY(t1) x RY(t2) x RY(t3)) |0000>, real amplitudes,
    # built batched as (TB, 16, 196): basis state on the sublane dim.
    psi0 = None
    for w in range(N_WIRES):
        cw = cs[:, w:w + 1, :]                       # (TB, 1, 196)
        sw = cs[:, N_WIRES + w:N_WIRES + w + 1, :]   # (TB, 1, 196)
        bw = bits[:, :, w:w + 1] > 0.5               # (1, 16, 1)
        fac = jnp.where(bw, sw, cw)                  # (TB, 16, 196)
        psi0 = fac if psi0 is None else psi0 * fac

    # Amplitudes: [Re(U psi0); Im(U psi0)] in one batched MXU pass -> (TB, 32, 196)
    u2 = jnp.broadcast_to(u2_ref[...], (tb, 2 * DIM, DIM))
    amp = lax.dot_general(u2, psi0.astype(jnp.bfloat16),
                          dimension_numbers=(((2,), (1,)), ((0,), (0,))),
                          preferred_element_type=jnp.float32)
    prob2 = amp * amp                                # re^2 / im^2 halves

    # <Z_w> = sum_s sign[s, w] * (re_s^2 + im_s^2): batched matmul -> (TB, 4, 196)
    s4 = jnp.broadcast_to(s4_ref[...], (tb, N_WIRES, 2 * DIM))
    z = lax.dot_general(s4, prob2.astype(jnp.bfloat16),
                        dimension_numbers=(((2,), (1,)), ((0,), (0,))),
                        preferred_element_type=jnp.float32)
    z_scr[...] = z                                   # stays in VMEM (never hits HBM)

    # Linear head: logits[b, c] = sum_w sum_p z[b, w, p] * W3[w, p, c] + bias
    acc = jnp.zeros((tb, PAD_CLASSES), jnp.float32)
    for w in range(N_WIRES):
        zw = z_scr[:, w, :].astype(jnp.bfloat16)     # (TB, 196) per-wire plane
        acc = acc + jnp.dot(zw, w3_ref[w], preferred_element_type=jnp.float32)
    logits = acc + bias_ref[...]

    m = jnp.max(logits, axis=-1, keepdims=True)
    zc = logits - m
    lse = jnp.log(jnp.sum(jnp.exp(zc), axis=-1, keepdims=True))
    out_ref[...] = zc - lse


# ----------------------------------------------------------------------------
# Wrapper
# ----------------------------------------------------------------------------
def extract_patch_cossin(x):
    """x: (B, 1, 28, 28) NCHW -> (B, 8, 196) bf16 cos/sin of the RY half-angles.

    Row w (w < 4) = cos(theta_w / 2), row 4 + w = sin(theta_w / 2); column = patch
    index C*14 + R, matching the torch loop order.  Wire assignment per patch:
    wire0=x[c,r], wire1=x[c,r+1], wire2=x[c+1,r], wire3=x[c+1,r+1].
    """
    b = x.shape[0]
    xb = x.reshape(b, SIZE, SIZE)
    xp = xb.reshape(b, SIZE // 2, 2, SIZE // 2, 2)          # (b, C, dc, R, dr)
    ang = jnp.transpose(xp, (0, 2, 4, 1, 3)).reshape(b, N_WIRES, N_PATCH)
    half = ang * 0.5
    cs = jnp.concatenate([jnp.cos(half), jnp.sin(half)], axis=1)   # (b, 8, 196)
    return cs.astype(jnp.bfloat16)


def hybrid_model_forward(x, params):
    bits3, u2_bf, s4_bf, w3_bf, bias_pad = params
    b = x.shape[0]
    cs = extract_patch_cossin(x)                            # (b, 8, 196) bf16, XLA glue

    # Batch tiling: >= 2 grid steps so v7x's two TensorCores both get work.
    tile_b = min(TILE_B_MAX, _round_up(_cdiv(b, 2), 8))
    grid_b = max(2, _cdiv(b, tile_b))
    b_pad = grid_b * tile_b
    if b_pad != b:
        # Zero-padded batch rows give psi0 = 0 -> logits = bias; rows are sliced away.
        cs = jnp.pad(cs, ((0, b_pad - b), (0, 0), (0, 0)))

    out = pl.pallas_call(
        fused_kernel,
        out_shape=jax.ShapeDtypeStruct((b_pad, PAD_CLASSES), jnp.float32),
        grid=(grid_b,),
        in_specs=[
            pl.BlockSpec((tile_b, 2 * N_WIRES, N_PATCH), lambda i: (i, 0, 0)),
            pl.BlockSpec((1, DIM, N_WIRES), lambda i: (0, 0, 0)),                # resident table
            pl.BlockSpec((2 * DIM, DIM), lambda i: (0, 0)),                      # resident table
            pl.BlockSpec((N_WIRES, 2 * DIM), lambda i: (0, 0)),                  # resident table
            pl.BlockSpec((N_WIRES, N_PATCH, PAD_CLASSES), lambda i: (0, 0, 0)),  # resident weights
            pl.BlockSpec((1, PAD_CLASSES), lambda i: (0, 0)),                    # resident bias
        ],
        out_specs=pl.BlockSpec((tile_b, PAD_CLASSES), lambda i: (i, 0)),
        scratch_shapes=[pltpu.VMEM((tile_b, N_WIRES, N_PATCH), jnp.float32)],
        compiler_params=pltpu.CompilerParams(
            dimension_semantics=("parallel",),
            vmem_limit_bytes=48 * 1024 * 1024),
    )(cs, bits3, u2_bf, s4_bf, w3_bf, bias_pad)

    return out[:b, :N_CLASSES]


# ----------------------------------------------------------------------------
# Pure-JAX f32 reference (correctness sanity check)
# ----------------------------------------------------------------------------
def reference_forward(x, ref_params):
    bits, sign, u_re, u_im, w_lin, b_lin = ref_params
    b = x.shape[0]
    xb = x.reshape(b, SIZE, SIZE)
    xp = xb.reshape(b, SIZE // 2, 2, SIZE // 2, 2)          # (b, C, dc, R, dr)
    ang = jnp.transpose(xp, (0, 1, 3, 2, 4)).reshape(b * N_PATCH, N_WIRES)
    ch = jnp.cos(ang * 0.5)
    sh = jnp.sin(ang * 0.5)
    psi0 = jnp.ones((ang.shape[0], DIM), dtype=jnp.float32)
    for w in range(N_WIRES):
        bw = bits[w][None, :]                               # (1, 16)
        psi0 = psi0 * (ch[:, w:w + 1] * (1.0 - bw) + sh[:, w:w + 1] * bw)
    a_re = psi0 @ u_re.T
    a_im = psi0 @ u_im.T
    prob = a_re ** 2 + a_im ** 2
    meas = prob @ sign                                      # (N, 4)
    feat = meas.reshape(b, FEAT)                            # feature index = 4*patch + wire
    logits = feat @ w_lin + b_lin
    return jax.nn.log_softmax(logits, axis=-1)


# ----------------------------------------------------------------------------
# Main
# ----------------------------------------------------------------------------
if __name__ == "__main__":
    # Deterministic circuit parameters.
    # TODO(synk): tq.RandomLayer's exact sampled gate parameters are not ported;
    # a deterministic unitary built from the same gate pool stands in for its weights.
    u = build_random_layer_unitary(n_ops=8, seed=1234)
    bits_np, sign_np = build_bit_and_sign_tables()          # (4, 16), (16, 4)

    u2 = np.concatenate([np.real(u), np.imag(u)], axis=0).astype(np.float32)   # (32, 16)
    s4 = np.concatenate([sign_np.T, sign_np.T], axis=1).astype(np.float32)     # (4, 32)
    bits3 = bits_np.T[None].astype(np.float32)                                 # (1, 16, 4)

    # Linear head parameters (deterministic).
    prng = np.random.default_rng(0)
    bound = 1.0 / np.sqrt(FEAT)
    w_lin = prng.uniform(-bound, bound, size=(N_CLASSES, FEAT)).astype(np.float32)
    b_lin = prng.uniform(-bound, bound, size=(N_CLASSES,)).astype(np.float32)

    # W3[w, p, c] = W[c, 4p + w]; classes zero-padded (weights) / -1e9 (bias) to 128.
    w3 = w_lin.T.reshape(N_PATCH, N_WIRES, N_CLASSES).transpose(1, 0, 2)       # (4, 196, 10)
    w3_pad = np.zeros((N_WIRES, N_PATCH, PAD_CLASSES), dtype=np.float32)
    w3_pad[:, :, :N_CLASSES] = w3
    bias_pad = np.full((1, PAD_CLASSES), -1e9, dtype=np.float32)
    bias_pad[0, :N_CLASSES] = b_lin

    kernel_params = (
        jnp.asarray(bits3),                                  # (1, 16, 4) f32
        jnp.asarray(u2, dtype=jnp.bfloat16),                 # (32, 16) bf16
        jnp.asarray(s4, dtype=jnp.bfloat16),                 # (4, 32) bf16
        jnp.asarray(w3_pad, dtype=jnp.bfloat16),             # (4, 196, 128) bf16
        jnp.asarray(bias_pad),                               # (1, 128) f32
    )
    ref_params = (
        jnp.asarray(bits_np), jnp.asarray(sign_np),
        jnp.asarray(np.real(u).astype(np.float32)),
        jnp.asarray(np.imag(u).astype(np.float32)),
        jnp.asarray(w_lin.T), jnp.asarray(b_lin),
    )

    # Example input, NCHW like the PyTorch module (MNIST-sized).
    key = jax.random.PRNGKey(0)
    x = jax.random.uniform(key, (2, 1, SIZE, SIZE), dtype=jnp.float32,
                           minval=0.0, maxval=float(np.pi))

    fwd = jax.jit(hybrid_model_forward)
    out = jax.block_until_ready(fwd(x, kernel_params))
    ref = jax.block_until_ready(reference_forward(x, ref_params))

    assert out.shape == (2, N_CLASSES)
    np.testing.assert_allclose(np.asarray(out), np.asarray(ref),
                               atol=5e-2, rtol=5e-2)
    print("KERNEL_OK")
</pallas_src>

<mosaic_0001>
module attributes {stable_mosaic.version = 11 : i64} {
  func.func @fused_kernel(%arg0: i32, %arg1: memref<8x8x196xbf16, #tpu.memory_space<vmem>>, %arg2: memref<1x16x4xf32, #tpu.memory_space<vmem>>, %arg3: memref<32x16xbf16, #tpu.memory_space<vmem>>, %arg4: memref<4x32xbf16, #tpu.memory_space<vmem>>, %arg5: memref<4x196x128xbf16, #tpu.memory_space<vmem>>, %arg6: memref<1x128xf32, #tpu.memory_space<vmem>>, %arg7: memref<8x128xf32, #tpu.memory_space<vmem>>, %arg8: memref<8x4x196xf32, #tpu.memory_space<vmem>>) attributes {dimension_semantics = [#tpu.dimension_semantics<parallel>], iteration_bounds = array<i64: 2>, scalar_prefetch = 0 : i64, scratch_operands = 1 : i64, tpu.core_type = #tpu.core_type<tc>, window_params = [{transform_indices = @transform_0, window_bounds = array<i64: 8, 8, 196>}, {pipeline_mode = #tpu.pipeline_mode<synchronous>, transform_indices = @transform_1, window_bounds = array<i64: 1, 16, 4>}, {pipeline_mode = #tpu.pipeline_mode<synchronous>, transform_indices = @transform_2, window_bounds = array<i64: 32, 16>}, {pipeline_mode = #tpu.pipeline_mode<synchronous>, transform_indices = @transform_3, window_bounds = array<i64: 4, 32>}, {pipeline_mode = #tpu.pipeline_mode<synchronous>, transform_indices = @transform_4, window_bounds = array<i64: 4, 196, 128>}, {pipeline_mode = #tpu.pipeline_mode<synchronous>, transform_indices = @transform_5, window_bounds = array<i64: 1, 128>}, {transform_indices = @transform_6, window_bounds = array<i64: 8, 128>}]} {
    %c0 = arith.constant 0 : index
    %c0_0 = arith.constant 0 : index
    %c0_1 = arith.constant 0 : index
    %0 = vector.load %arg1[%c0, %c0_0, %c0_1] : memref<8x8x196xbf16, #tpu.memory_space<vmem>>, vector<8x8x196xbf16>
    %1 = arith.extf %0 : vector<8x8x196xbf16> to vector<8x8x196xf32>
    %c0_2 = arith.constant 0 : index
    %c0_3 = arith.constant 0 : index
    %c0_4 = arith.constant 0 : index
    %2 = vector.load %arg2[%c0_2, %c0_3, %c0_4] : memref<1x16x4xf32, #tpu.memory_space<vmem>>, vector<1x16x4xf32>
    %3 = vector.extract_strided_slice %1 {offsets = [0, 0, 0], sizes = [8, 1, 196], strides = [1, 1, 1]} : vector<8x8x196xf32> to vector<8x1x196xf32>
    %4 = vector.extract_strided_slice %1 {offsets = [0, 4, 0], sizes = [8, 1, 196], strides = [1, 1, 1]} : vector<8x8x196xf32> to vector<8x1x196xf32>
    %5 = vector.extract_strided_slice %2 {offsets = [0, 0, 0], sizes = [1, 16, 1], strides = [1, 1, 1]} : vector<1x16x4xf32> to vector<1x16x1xf32>
    %cst = arith.constant 5.000000e-01 : f32
    %6 = vector.broadcast %cst : f32 to vector<1x16x1xf32>
    %7 = arith.cmpf ogt, %5, %6 : vector<1x16x1xf32>
    %8 = vector.shape_cast %7 : vector<1x16x1xi1> to vector<1x16x1xi1>
    %9 = vector.broadcast %8 : vector<1x16x1xi1> to vector<8x16x196xi1>
    %10 = vector.shape_cast %4 : vector<8x1x196xf32> to vector<8x1x196xf32>
    %11 = vector.broadcast %10 : vector<8x1x196xf32> to vector<8x16x196xf32>
    %12 = vector.shape_cast %3 : vector<8x1x196xf32> to vector<8x1x196xf32>
    %13 = vector.broadcast %12 : vector<8x1x196xf32> to vector<8x16x196xf32>
    %14 = arith.select %9, %11, %13 : vector<8x16x196xi1>, vector<8x16x196xf32>
    %15 = vector.extract_strided_slice %1 {offsets = [0, 1, 0], sizes = [8, 1, 196], strides = [1, 1, 1]} : vector<8x8x196xf32> to vector<8x1x196xf32>
    %16 = vector.extract_strided_slice %1 {offsets = [0, 5, 0], sizes = [8, 1, 196], strides = [1, 1, 1]} : vector<8x8x196xf32> to vector<8x1x196xf32>
    %17 = vector.extract_strided_slice %2 {offsets = [0, 0, 1], sizes = [1, 16, 1], strides = [1, 1, 1]} : vector<1x16x4xf32> to vector<1x16x1xf32>
    %cst_5 = arith.constant 5.000000e-01 : f32
    %18 = vector.broadcast %cst_5 : f32 to vector<1x16x1xf32>
    %19 = arith.cmpf ogt, %17, %18 : vector<1x16x1xf32>
    %20 = vector.shape_cast %19 : vector<1x16x1xi1> to vector<1x16x1xi1>
    %21 = vector.broadcast %20 : vector<1x16x1xi1> to vector<8x16x196xi1>
    %22 = vector.shape_cast %16 : vector<8x1x196xf32> to vector<8x1x196xf32>
    %23 = vector.broadcast %22 : vector<8x1x196xf32> to vector<8x16x196xf32>
    %24 = vector.shape_cast %15 : vector<8x1x196xf32> to vector<8x1x196xf32>
    %25 = vector.broadcast %24 : vector<8x1x196xf32> to vector<8x16x196xf32>
    %26 = arith.select %21, %23, %25 : vector<8x16x196xi1>, vector<8x16x196xf32>
    %27 = arith.mulf %14, %26 : vector<8x16x196xf32>
    %28 = vector.extract_strided_slice %1 {offsets = [0, 2, 0], sizes = [8, 1, 196], strides = [1, 1, 1]} : vector<8x8x196xf32> to vector<8x1x196xf32>
    %29 = vector.extract_strided_slice %1 {offsets = [0, 6, 0], sizes = [8, 1, 196], strides = [1, 1, 1]} : vector<8x8x196xf32> to vector<8x1x196xf32>
    %30 = vector.extract_strided_slice %2 {offsets = [0, 0, 2], sizes = [1, 16, 1], strides = [1, 1, 1]} : vector<1x16x4xf32> to vector<1x16x1xf32>
    %cst_6 = arith.constant 5.000000e-01 : f32
    %31 = vector.broadcast %cst_6 : f32 to vector<1x16x1xf32>
    %32 = arith.cmpf ogt, %30, %31 : vector<1x16x1xf32>
    %33 = vector.shape_cast %32 : vector<1x16x1xi1> to vector<1x16x1xi1>
    %34 = vector.broadcast %33 : vector<1x16x1xi1> to vector<8x16x196xi1>
    %35 = vector.shape_cast %29 : vector<8x1x196xf32> to vector<8x1x196xf32>
    %36 = vector.broadcast %35 : vector<8x1x196xf32> to vector<8x16x196xf32>
    %37 = vector.shape_cast %28 : vector<8x1x196xf32> to vector<8x1x196xf32>
    %38 = vector.broadcast %37 : vector<8x1x196xf32> to vector<8x16x196xf32>
    %39 = arith.select %34, %36, %38 : vector<8x16x196xi1>, vector<8x16x196xf32>
    %40 = arith.mulf %27, %39 : vector<8x16x196xf32>
    %41 = vector.extract_strided_slice %1 {offsets = [0, 3, 0], sizes = [8, 1, 196], strides = [1, 1, 1]} : vector<8x8x196xf32> to vector<8x1x196xf32>
    %42 = vector.extract_strided_slice %1 {offsets = [0, 7, 0], sizes = [8, 1, 196], strides = [1, 1, 1]} : vector<8x8x196xf32> to vector<8x1x196xf32>
    %43 = vector.extract_strided_slice %2 {offsets = [0, 0, 3], sizes = [1, 16, 1], strides = [1, 1, 1]} : vector<1x16x4xf32> to vector<1x16x1xf32>
    %cst_7 = arith.constant 5.000000e-01 : f32
    %44 = vector.broadcast %cst_7 : f32 to vector<1x16x1xf32>
    %45 = arith.cmpf ogt, %43, %44 : vector<1x16x1xf32>
    %46 = vector.shape_cast %45 : vector<1x16x1xi1> to vector<1x16x1xi1>
    %47 = vector.broadcast %46 : vector<1x16x1xi1> to vector<8x16x196xi1>
    %48 = vector.shape_cast %42 : vector<8x1x196xf32> to vector<8x1x196xf32>
    %49 = vector.broadcast %48 : vector<8x1x196xf32> to vector<8x16x196xf32>
    %50 = vector.shape_cast %41 : vector<8x1x196xf32> to vector<8x1x196xf32>
    %51 = vector.broadcast %50 : vector<8x1x196xf32> to vector<8x16x196xf32>
    %52 = arith.select %47, %49, %51 : vector<8x16x196xi1>, vector<8x16x196xf32>
    %53 = arith.mulf %40, %52 : vector<8x16x196xf32>
    %c0_8 = arith.constant 0 : index
    %c0_9 = arith.constant 0 : index
    %54 = vector.load %arg3[%c0_8, %c0_9] : memref<32x16xbf16, #tpu.memory_space<vmem>>, vector<32x16xbf16>
    %55 = vector.shape_cast %54 : vector<32x16xbf16> to vector<1x32x16xbf16>
    %56 = vector.broadcast %55 : vector<1x32x16xbf16> to vector<8x32x16xbf16>
    %57 = arith.truncf %53 : vector<8x16x196xf32> to vector<8x16x196xbf16>
    %cst_10 = arith.constant dense<0.000000e+00> : vector<8x32x196xf32>
    %58 = tpu.matmul %56, %57, %cst_10 {dimension_numbers = #tpu.dot_dimension_numbers<[2], [1], [1], [2], [0, 0, 0, 1, 1, 2], [0], [0]>} : vector<8x32x16xbf16>, vector<8x16x196xbf16>, vector<8x32x196xf32> -> vector<8x32x196xf32>
    %59 = arith.mulf %58, %58 : vector<8x32x196xf32>
    %c0_11 = arith.constant 0 : index
    %c0_12 = arith.constant 0 : index
    %60 = vector.load %arg4[%c0_11, %c0_12] : memref<4x32xbf16, #tpu.memory_space<vmem>>, vector<4x32xbf16>
    %61 = vector.shape_cast %60 : vector<4x32xbf16> to vector<1x4x32xbf16>
    %62 = vector.broadcast %61 : vector<1x4x32xbf16> to vector<8x4x32xbf16>
    %63 = arith.truncf %59 : vector<8x32x196xf32> to vector<8x32x196xbf16>
    %cst_13 = arith.constant dense<0.000000e+00> : vector<8x4x196xf32>
    %64 = tpu.matmul %62, %63, %cst_13 {dimension_numbers = #tpu.dot_dimension_numbers<[2], [1], [1], [2], [0, 0, 0, 1, 1, 2], [0], [0]>} : vector<8x4x32xbf16>, vector<8x32x196xbf16>, vector<8x4x196xf32> -> vector<8x4x196xf32>
    %c0_14 = arith.constant 0 : index
    %c0_15 = arith.constant 0 : index
    %c0_16 = arith.constant 0 : index
    %65 = vector.load %arg8[%c0_14, %c0_15, %c0_16] : memref<8x4x196xf32, #tpu.memory_space<vmem>>, vector<8x4x196xf32>
    tpu.vector_store %arg8[%c0_14, %c0_15, %c0_16], %64 {strides = array<i32>} : memref<8x4x196xf32, #tpu.memory_space<vmem>>, vector<8x4x196xf32>,
    %cst_17 = arith.constant 0.000000e+00 : f32
    %66 = vector.broadcast %cst_17 : f32 to vector<8x128xf32>
    %c0_18 = arith.constant 0 : index
    %c0_19 = arith.constant 0 : index
    %c0_20 = arith.constant 0 : index
    %67 = vector.load %arg8[%c0_18, %c0_19, %c0_20] : memref<8x4x196xf32, #tpu.memory_space<vmem>>, vector<8x1x196xf32>
    %68 = vector.shape_cast %67 : vector<8x1x196xf32> to vector<8x196xf32>
    %69 = arith.truncf %68 : vector<8x196xf32> to vector<8x196xbf16>
    %c0_21 = arith.constant 0 : index
    %c0_22 = arith.constant 0 : index
    %c0_23 = arith.constant 0 : index
    %70 = vector.load %arg5[%c0_21, %c0_22, %c0_23] : memref<4x196x128xbf16, #tpu.memory_space<vmem>>, vector<1x196x128xbf16>
    %71 = vector.shape_cast %70 : vector<1x196x128xbf16> to vector<196x128xbf16>
    %cst_24 = arith.constant dense<0.000000e+00> : vector<8x128xf32>
    %72 = tpu.matmul %69, %71, %cst_24 {dimension_numbers = #tpu.dot_dimension_numbers<[1], [0], [0], [1], [0, 0, 1, 1], [], []>} : vector<8x196xbf16>, vector<196x128xbf16>, vector<8x128xf32> -> vector<8x128xf32>
    %73 = arith.addf %66, %72 : vector<8x128xf32>
    %c0_25 = arith.constant 0 : index
    %c1 = arith.constant 1 : index
    %c0_26 = arith.constant 0 : index
    %74 = vector.load %arg8[%c0_25, %c1, %c0_26] : memref<8x4x196xf32, #tpu.memory_space<vmem>>, vector<8x1x196xf32>
    %75 = vector.shape_cast %74 : vector<8x1x196xf32> to vector<8x196xf32>
    %76 = arith.truncf %75 : vector<8x196xf32> to vector<8x196xbf16>
    %c1_27 = arith.constant 1 : index
    %c0_28 = arith.constant 0 : index
    %c0_29 = arith.constant 0 : index
    %77 = vector.load %arg5[%c1_27, %c0_28, %c0_29] : memref<4x196x128xbf16, #tpu.memory_space<vmem>>, vector<1x196x128xbf16>
    %78 = vector.shape_cast %77 : vector<1x196x128xbf16> to vector<196x128xbf16>
    %cst_30 = arith.constant dense<0.000000e+00> : vector<8x128xf32>
    %79 = tpu.matmul %76, %78, %cst_30 {dimension_numbers = #tpu.dot_dimension_numbers<[1], [0], [0], [1], [0, 0, 1, 1], [], []>} : vector<8x196xbf16>, vector<196x128xbf16>, vector<8x128xf32> -> vector<8x128xf32>
    %80 = arith.addf %73, %79 : vector<8x128xf32>
    %c0_31 = arith.constant 0 : index
    %c2 = arith.constant 2 : index
    %c0_32 = arith.constant 0 : index
    %81 = vector.load %arg8[%c0_31, %c2, %c0_32] : memref<8x4x196xf32, #tpu.memory_space<vmem>>, vector<8x1x196xf32>
    %82 = vector.shape_cast %81 : vector<8x1x196xf32> to vector<8x196xf32>
    %83 = arith.truncf %82 : vector<8x196xf32> to vector<8x196xbf16>
    %c2_33 = arith.constant 2 : index
    %c0_34 = arith.constant 0 : index
    %c0_35 = arith.constant 0 : index
    %84 = vector.load %arg5[%c2_33, %c0_34, %c0_35] : memref<4x196x128xbf16, #tpu.memory_space<vmem>>, vector<1x196x128xbf16>
    %85 = vector.shape_cast %84 : vector<1x196x128xbf16> to vector<196x128xbf16>
    %cst_36 = arith.constant dense<0.000000e+00> : vector<8x128xf32>
    %86 = tpu.matmul %83, %85, %cst_36 {dimension_numbers = #tpu.dot_dimension_numbers<[1], [0], [0], [1], [0, 0, 1, 1], [], []>} : vector<8x196xbf16>, vector<196x128xbf16>, vector<8x128xf32> -> vector<8x128xf32>
    %87 = arith.addf %80, %86 : vector<8x128xf32>
    %c0_37 = arith.constant 0 : index
    %c3 = arith.constant 3 : index
    %c0_38 = arith.constant 0 : index
    %88 = vector.load %arg8[%c0_37, %c3, %c0_38] : memref<8x4x196xf32, #tpu.memory_space<vmem>>, vector<8x1x196xf32>
    %89 = vector.shape_cast %88 : vector<8x1x196xf32> to vector<8x196xf32>
    %90 = arith.truncf %89 : vector<8x196xf32> to vector<8x196xbf16>
    %c3_39 = arith.constant 3 : index
    %c0_40 = arith.constant 0 : index
    %c0_41 = arith.constant 0 : index
    %91 = vector.load %arg5[%c3_39, %c0_40, %c0_41] : memref<4x196x128xbf16, #tpu.memory_space<vmem>>, vector<1x196x128xbf16>
    %92 = vector.shape_cast %91 : vector<1x196x128xbf16> to vector<196x128xbf16>
    %cst_42 = arith.constant dense<0.000000e+00> : vector<8x128xf32>
    %93 = tpu.matmul %90, %92, %cst_42 {dimension_numbers = #tpu.dot_dimension_numbers<[1], [0], [0], [1], [0, 0, 1, 1], [], []>} : vector<8x196xbf16>, vector<196x128xbf16>, vector<8x128xf32> -> vector<8x128xf32>
    %94 = arith.addf %87, %93 : vector<8x128xf32>
    %c0_43 = arith.constant 0 : index
    %c0_44 = arith.constant 0 : index
    %95 = vector.load %arg6[%c0_43, %c0_44] : memref<1x128xf32, #tpu.memory_space<vmem>>, vector<1x128xf32>
    %96 = vector.broadcast %95 : vector<1x128xf32> to vector<8x128xf32>
    %97 = arith.addf %94, %96 : vector<8x128xf32>
    %cst_45 = arith.constant dense<0xFF800000> : vector<8xf32>
    %98 = vector.multi_reduction <maximumf>, %97, %cst_45 [1] : vector<8x128xf32> to vector<8xf32>
    %99 = vector.shape_cast %98 : vector<8xf32> to vector<8x1xf32>
    %100 = vector.broadcast %99 : vector<8x1xf32> to vector<8x128xf32>
    %101 = arith.subf %97, %100 : vector<8x128xf32>
    %102 = math.exp %101 : vector<8x128xf32>
    %cst_46 = arith.constant dense<0.000000e+00> : vector<8xf32>
    %103 = vector.multi_reduction <add>, %102, %cst_46 [1] : vector<8x128xf32> to vector<8xf32>
    %104 = vector.shape_cast %103 : vector<8xf32> to vector<8x1xf32>
    %105 = math.log %104 : vector<8x1xf32>
    %106 = vector.broadcast %105 : vector<8x1xf32> to vector<8x128xf32>
    %107 = arith.subf %101, %106 : vector<8x128xf32>
    %c0_47 = arith.constant 0 : index
    %c0_48 = arith.constant 0 : index
    %108 = vector.load %arg7[%c0_47, %c0_48] : memref<8x128xf32, #tpu.memory_space<vmem>>, vector<8x128xf32>
    tpu.vector_store %arg7[%c0_47, %c0_48], %107 {strides = array<i32>} : memref<8x128xf32, #tpu.memory_space<vmem>>, vector<8x128xf32>,
    return
  }
  func.func @transform_0(%arg0: i32) -> (i32, i32, i32) {
    %c0_i32 = arith.constant 0 : i32
    %c0_i32_0 = arith.constant 0 : i32
    %c0_i32_1 = arith.constant 0 : i32
    return %arg0, %c0_i32, %c0_i32_0 : i32, i32, i32
  }
  func.func @transform_1(%arg0: i32) -> (i32, i32, i32) {
    %c0_i32 = arith.constant 0 : i32
    %c0_i32_0 = arith.constant 0 : i32
    %c0_i32_1 = arith.constant 0 : i32
    %c0_i32_2 = arith.constant 0 : i32
    return %c0_i32, %c0_i32_0, %c0_i32_1 : i32, i32, i32
  }
  func.func @transform_2(%arg0: i32) -> (i32, i32) {
    %c0_i32 = arith.constant 0 : i32
    %c0_i32_0 = arith.constant 0 : i32
    %c0_i32_1 = arith.constant 0 : i32
    return %c0_i32, %c0_i32_0 : i32, i32
  }
  func.func @transform_3(%arg0: i32) -> (i32, i32) {
    %c0_i32 = arith.constant 0 : i32
    %c0_i32_0 = arith.constant 0 : i32
    %c0_i32_1 = arith.constant 0 : i32
    return %c0_i32, %c0_i32_0 : i32, i32
  }
  func.func @transform_4(%arg0: i32) -> (i32, i32, i32) {
    %c0_i32 = arith.constant 0 : i32
    %c0_i32_0 = arith.constant 0 : i32
    %c0_i32_1 = arith.constant 0 : i32
    %c0_i32_2 = arith.constant 0 : i32
    return %c0_i32, %c0_i32_0, %c0_i32_1 : i32, i32, i32
  }
  func.func @transform_5(%arg0: i32) -> (i32, i32) {
    %c0_i32 = arith.constant 0 : i32
    %c0_i32_0 = arith.constant 0 : i32
    %c0_i32_1 = arith.constant 0 : i32
    return %c0_i32, %c0_i32_0 : i32, i32
  }
  func.func @transform_6(%arg0: i32) -> (i32, i32) {
    %c0_i32 = arith.constant 0 : i32
    %c0_i32_0 = arith.constant 0 : i32
    return %arg0, %c0_i32 : i32, i32
  }
}

</mosaic_0001>

<llo_original>
// kernel: hybrid_model_forward.1
$region0: #{hybrid_model_forward.1}
  #allocation0 [shape = 'u32[]', space=smem, size = 0x4, offset = 0x4, fixed_abs, tag = 'smem constant byte address 0x4 - core index']
  #allocation1 [shape = 'u32[144,128]{1,0:T(1,128)}', space=vmem, size = 0x12000, scoped, tag = 'internal scratch']
  #allocation2 [shape = 'f32[8,4,196]{2,1,0:T(4,128)}', space=vmem, size = 0x8000, scoped, tag = 'scratch operand']
  %s0 = inlined_call_operand.vmem [shape: bf16[16,8,196], index: 0, kind: input, shape index: {}]
  %s1 = inlined_call_operand.vmem [shape: f32[1,16,4], index: 1, kind: input, shape index: {}]
  %s2 = inlined_call_operand.vmem [shape: bf16[32,16], index: 2, kind: input, shape index: {}]
  %s3 = inlined_call_operand.vmem [shape: bf16[4,32], index: 3, kind: input, shape index: {}]
  %s4 = inlined_call_operand.vmem [shape: bf16[4,196,128], index: 4, kind: input, shape index: {}]
  %s5 = inlined_call_operand.vmem [shape: f32[1,128], index: 5, kind: input, shape index: {}]
  %s6 = inlined_call_operand.vmem [shape: f32[16,128], index: 6, kind: output, shape index: {}]
  %s7 = sld [smem:[#allocation0]]
  $region57: #{hybrid_model_forward.1} parent=0
    _
  %s9 = ssub.s32 1, %s7
  %s10 = scalar_select 0, %s9, %s7
  loop: start=0, step=1, limit=4
  $region2: #{hybrid_model_forward.1} parent=0 // loop_pre_header
    _
  $region3: #{hybrid_model_forward.1} parent=0 // loop_header
    %s12 = sphi 0, %s16
    %p13 = scmp.ge.s32.totalorder %s12, 4
    %s22 = sphi 0, %s24
    %s25 = sphi 0, %s22
    %s26 = sphi 0, %s25
    %s42 = sphi 0, %s26
    %s46 = sphi 0, %s46
    %s48 = sphi 0, %s46
    %s49 = sphi 0, %s48
    %s63 = sphi 0, %s49
    %s67 = sphi 0, %s67
    %s69 = sphi 0, %s67
    %s70 = sphi 0, %s69
    %s84 = sphi 0, %s70
    %s88 = sphi 0, %s88
    %s90 = sphi 0, %s88
    %s91 = sphi 0, %s90
    %s105 = sphi 0, %s91
    %s109 = sphi 0, %s109
    %s111 = sphi 0, %s109
    %s112 = sphi 0, %s111
    %s126 = sphi 0, %s112
    %s130 = sphi 0, %s130
    %s132 = sphi 0, %s130
    %s133 = sphi 0, %s132
    %s147 = sphi 0, %s133
    %s153 = sphi 0, %s155
    %s156 = sphi 0, %s153
    %s157 = sphi 0, %s156
    %s173 = sphi 0, %s157
  $region4: #{hybrid_model_forward.1} parent=0 // loop_header_branch
    %15 = sbr.rel (%p13) target = $region8
  $region5: #{hybrid_model_forward.1} parent=0 // loop_body
    %s17 = ssub.s32 %s12, 1
    %s18 = ssub.s32 %s12, 2
    %s19 = sadd.s32 %s12, 1
    %s20 = ssub.s32 %s12, %s19
    %p21 = scmp.eq.s32.totalorder %s20, 0
    %s23 = sadd.s32 %s22, 1
    %s24 = scalar_select %p21, %s22, %s23
    %p27 = pneg %p21
    %p28 = scmp.eq.s32.totalorder %s12, 1
    %p29 = por %p27, %p28
    %p30 = scmp.ne.s32.totalorder %s22, %s25
    %p31 = scmp.eq.s32.totalorder %s12, 0
    %p32 = por %p30, %p31
    %p33 = scmp.ne.s32.totalorder %s22, %s25
    %p34 = scmp.eq.s32.totalorder %s17, 1
    %p35 = por %p33, %p34
    %p36 = scmp.ne.s32.totalorder %s25, %s26
    %p37 = scmp.eq.s32.totalorder %s17, 0
    %p38 = por %p36, %p37
    %p39 = scmp.ne.s32.totalorder %s25, %s26
    %p40 = scmp.eq.s32.totalorder %s18, 1
    %p41 = por %p39, %p40
    %p43 = scmp.ne.s32.totalorder %s26, %s42
    %p44 = scmp.eq.s32.totalorder %s18, 0
    %p45 = por %p43, %p44
    %s47 = sadd.s32 %s46, 1
    %p50 = scmp.eq.s32.totalorder %s12, 1
    %p51 = scmp.ne.s32.totalorder %s46, %s48
    %p52 = scmp.eq.s32.totalorder %s12, 0
    %p53 = por %p51, %p52
    %p54 = scmp.ne.s32.totalorder %s46, %s48
    %p55 = scmp.eq.s32.totalorder %s17, 1
    %p56 = por %p54, %p55
    %p57 = scmp.ne.s32.totalorder %s48, %s49
    %p58 = scmp.eq.s32.totalorder %s17, 0
    %p59 = por %p57, %p58
    %p60 = scmp.ne.s32.totalorder %s48, %s49
    %p61 = scmp.eq.s32.totalorder %s18, 1
    %p62 = por %p60, %p61
    %p64 = scmp.ne.s32.totalorder %s49, %s63
    %p65 = scmp.eq.s32.totalorder %s18, 0
    %p66 = por %p64, %p65
    %s68 = sadd.s32 %s67, 1
    %p71 = scmp.eq.s32.totalorder %s12, 1
    %p72 = scmp.ne.s32.totalorder %s67, %s69
    %p73 = scmp.eq.s32.totalorder %s12, 0
    %p74 = por %p72, %p73
    %p75 = scmp.ne.s32.totalorder %s67, %s69
    %p76 = scmp.eq.s32.totalorder %s17, 1
    %p77 = por %p75, %p76
    %p78 = scmp.ne.s32.totalorder %s69, %s70
    %p79 = scmp.eq.s32.totalorder %s17, 0
    %p80 = por %p78, %p79
    %p81 = scmp.ne.s32.totalorder %s69, %s70
    %p82 = scmp.eq.s32.totalorder %s18, 1
    %p83 = por %p81, %p82
    %p85 = scmp.ne.s32.totalorder %s70, %s84
    %p86 = scmp.eq.s32.totalorder %s18, 0
    %p87 = por %p85, %p86
    %s89 = sadd.s32 %s88, 1
    %p92 = scmp.eq.s32.totalorder %s12, 1
    %p93 = scmp.ne.s32.totalorder %s88, %s90
    %p94 = scmp.eq.s32.totalorder %s12, 0
    %p95 = por %p93, %p94
    %p96 = scmp.ne.s32.totalorder %s88, %s90
    %p97 = scmp.eq.s32.totalorder %s17, 1
    %p98 = por %p96, %p97
    %p99 = scmp.ne.s32.totalorder %s90, %s91
    %p100 = scmp.eq.s32.totalorder %s17, 0
    %p101 = por %p99, %p100
    %p102 = scmp.ne.s32.totalorder %s90, %s91
    %p103 = scmp.eq.s32.totalorder %s18, 1
    %p104 = por %p102, %p103
    %p106 = scmp.ne.s32.totalorder %s91, %s105
    %p107 = scmp.eq.s32.totalorder %s18, 0
    %p108 = por %p106, %p107
    %s110 = sadd.s32 %s109, 1
    %p113 = scmp.eq.s32.totalorder %s12, 1
    %p114 = scmp.ne.s32.totalorder %s109, %s111
    %p115 = scmp.eq.s32.totalorder %s12, 0
    %p116 = por %p114, %p115
    %p117 = scmp.ne.s32.totalorder %s109, %s111
    %p118 = scmp.eq.s32.totalorder %s17, 1
    %p119 = por %p117, %p118
    %p120 = scmp.ne.s32.totalorder %s111, %s112
    %p121 = scmp.eq.s32.totalorder %s17, 0
    %p122 = por %p120, %p121
    %p123 = scmp.ne.s32.totalorder %s111, %s112
    %p124 = scmp.eq.s32.totalorder %s18, 1
    %p125 = por %p123, %p124
    %p127 = scmp.ne.s32.totalorder %s112, %s126
    %p128 = scmp.eq.s32.totalorder %s18, 0
    %p129 = por %p127, %p128
    %s131 = sadd.s32 %s130, 1
    %p134 = scmp.eq.s32.totalorder %s12, 1
    %p135 = scmp.ne.s32.totalorder %s130, %s132
    %p136 = scmp.eq.s32.totalorder %s12, 0
    %p137 = por %p135, %p136
    %p138 = scmp.ne.s32.totalorder %s130, %s132
    %p139 = scmp.eq.s32.totalorder %s17, 1
    %p140 = por %p138, %p139
    %p141 = scmp.ne.s32.totalorder %s132, %s133
    %p142 = scmp.eq.s32.totalorder %s17, 0
    %p143 = por %p141, %p142
    %p144 = scmp.ne.s32.totalorder %s132, %s133
    %p145 = scmp.eq.s32.totalorder %s18, 1
    %p146 = por %p144, %p145
    %p148 = scmp.ne.s32.totalorder %s133, %s147
    %p149 = scmp.eq.s32.totalorder %s18, 0
    %p150 = por %p148, %p149
    %s151 = ssub.s32 %s12, %s19
    %p152 = scmp.eq.s32.totalorder %s151, 0
    %s154 = sadd.s32 %s153, 1
    %s155 = scalar_select %p152, %s153, %s154
    %p158 = pneg %p152
    %p159 = scmp.eq.s32.totalorder %s12, 1
    %p160 = por %p158, %p159
    %p161 = scmp.ne.s32.totalorder %s153, %s156
    %p162 = scmp.eq.s32.totalorder %s12, 0
    %p163 = por %p161, %p162
    %p164 = scmp.ne.s32.totalorder %s153, %s156
    %p165 = scmp.eq.s32.totalorder %s17, 1
    %p166 = por %p164, %p165
    %p167 = scmp.ne.s32.totalorder %s156, %s157
    %p168 = scmp.eq.s32.totalorder %s17, 0
    %p169 = por %p167, %p168
    %p170 = scmp.ne.s32.totalorder %s156, %s157
    %p171 = scmp.eq.s32.totalorder %s18, 1
    %p172 = por %p170, %p171
    %p174 = scmp.ne.s32.totalorder %s157, %s173
    %p175 = scmp.eq.s32.totalorder %s18, 0
    %p176 = por %p174, %p175
    %p177 = scmp.le.s32.totalorder 1, %s12
    %p178 = scmp.lt.s32.totalorder %s12, 3
    %p179 = pnand %p177, %p178
    %p180 = pneg %p179
    // Predicated region
    $region9: #{hybrid_model_forward.1} parent=5 // pred_check
      _
    $region10: #{hybrid_model_forward.1} parent=5 // pred_check_branch
      %182 = sbr.rel (%p179) target = $region12
    $region11: #{hybrid_model_forward.1} parent=5 // pred_region
      %s183 = ssub.s32 %s12, 1
      // Predicated region
      $region13: #{hybrid_model_forward.1} parent=11 // pred_check
        %p184 = pneg %p59
      $region14: #{hybrid_model_forward.1} parent=11 // pred_check_branch
        %186 = sbr.rel (%p184) target = $region16
      $region15: #{hybrid_model_forward.1} parent=11 // pred_region
        _
      $region16: #{hybrid_model_forward.1} parent=11 // pred_fallthru
        _
      // Predicated region
      $region17: #{hybrid_model_forward.1} parent=11 // pred_check
        %p187 = pneg %p80
      $region18: #{hybrid_model_forward.1} parent=11 // pred_check_branch
        %189 = sbr.rel (%p187) target = $region20
      $region19: #{hybrid_model_forward.1} parent=11 // pred_region
        _
      $region20: #{hybrid_model_forward.1} parent=11 // pred_fallthru
        _
      // Predicated region
      $region21: #{hybrid_model_forward.1} parent=11 // pred_check
        %p190 = pneg %p101
      $region22: #{hybrid_model_forward.1} parent=11 // pred_check_branch
        %192 = sbr.rel (%p190) target = $region24
      $region23: #{hybrid_model_forward.1} parent=11 // pred_region
        _
      $region24: #{hybrid_model_forward.1} parent=11 // pred_fallthru
        _
      // Predicated region
      $region25: #{hybrid_model_forward.1} parent=11 // pred_check
        %p193 = pneg %p122
      $region26: #{hybrid_model_forward.1} parent=11 // pred_check_branch
        %195 = sbr.rel (%p193) target = $region28
      $region27: #{hybrid_model_forward.1} parent=11 // pred_region
        _
      $region28: #{hybrid_model_forward.1} parent=11 // pred_fallthru
        _
      // Predicated region
      $region29: #{hybrid_model_forward.1} parent=11 // pred_check
        %p196 = pneg %p143
      $region30: #{hybrid_model_forward.1} parent=11 // pred_check_branch
        %198 = sbr.rel (%p196) target = $region32
      $region31: #{hybrid_model_forward.1} parent=11 // pred_region
        _
      $region32: #{hybrid_model_forward.1} parent=11 // pred_fallthru
        _
    $region12: #{hybrid_model_forward.1} parent=5 // pred_fallthru
      _
    %p199 = scmp.lt.s32.totalorder %s12, 2
    // Predicated region
    $region33: #{hybrid_model_forward.1} parent=5 // pred_check
      %p200 = pneg %p199
    $region34: #{hybrid_model_forward.1} parent=5 // pred_check_branch
      %202 = sbr.rel (%p200) target = $region36
    $region35: #{hybrid_model_forward.1} parent=5 // pred_region
      // Predicated region
      $region37: #{hybrid_model_forward.1} parent=35 // pred_check
        %p203 = pneg %p32
      $region38: #{hybrid_model_forward.1} parent=35 // pred_check_branch
        %205 = sbr.rel (%p203) target = $region40
      $region39: #{hybrid_model_forward.1} parent=35 // pred_region
        %s206 = smul.u32 8, %s12
        %p207 = scmp.lt.s32.totalorder %s206, 15
        %s208 = scalar_select %p207, %s206, 15
        %s209 = smul.addr %s208, 2
        %s210 = smul.addr %s209, 4
        %s211 = scalar_lea.vmem %s0, %s210
        %s212 = smul.u32 8, %s12
      $region40: #{hybrid_model_forward.1} parent=35 // pred_fallthru
        _
    $region36: #{hybrid_model_forward.1} parent=5 // pred_fallthru
      _
    %p213 = scmp.le.s32.totalorder 1, %s12
    %p214 = scmp.lt.s32.totalorder %s12, 3
    %p215 = pnand %p213, %p214
    %p216 = pneg %p215
    // Predicated region
    $region41: #{hybrid_model_forward.1} parent=5 // pred_check
      _
    $region42: #{hybrid_model_forward.1} parent=5 // pred_check_branch
      %218 = sbr.rel (%p215) target = $region44
    $region43: #{hybrid_model_forward.1} parent=5 // pred_region
      %s219 = ssub.s32 %s12, 1
      %s220 = smul.u32 8, %s17
      %p221 = scmp.lt.s32.totalorder %s220, 15
      %s222 = scalar_select %p221, %s220, 15
      %s223 = smul.addr %s222, 2
      %s224 = smul.addr %s223, 4
      %s225 = scalar_lea.vmem %s0, %s224
      %p226 = pneg %p38
      %p227 = pneg %p35
      %p228 = pneg %p59
      %p229 = pneg %p56
      %p230 = pneg %p80
      %p231 = pneg %p77
      %p232 = pneg %p101
      %p233 = pneg %p98
      %p234 = pneg %p122
      %p235 = pneg %p119
      %p236 = pneg %p143
      %p237 = pneg %p140
      %p238 = pneg %p169
      %p239 = pneg %p166
      %p240 = scmp.lt.s32.totalorder %s17, 1
      %s241 = scalar_select %p240, %s17, 1
      %s242 = smul.addr %s241, 8
      %s243 = scalar_lea.vmem %s6, %s242
      %s244 = smul.u32 8, %s17
      %p245 = scmp.lt.s32.totalorder %s244, 15
      %s246 = scalar_select %p245, %s244, 15
      %s247 = smul.addr %s246, 2
      %s248 = smul.addr %s247, 4
      %s249 = scalar_lea.vmem %s0, %s248
      %s250 = smul.u32 8, %s17
      %p251 = scmp.lt.s32.totalorder %s17, 1
      %s252 = scalar_select %p251, %s17, 1
      %s253 = smul.addr %s252, 8
      %s254 = scalar_lea.vmem %s6, %s253
      %v256 = vld [vmem:[%s249] sm:$0xff]
      %v257 = vld [vmem:[%s249 + $0x8] sm:$0xff]
      %v258 = vld [vmem:[%s249 + $0x10] sm:$0xff]
      %v259 = vld [vmem:[%s249 + $0x18] sm:$0xff]
      %v260 = vld [vmem:[%s249 + $0x20] sm:$0xff]
      %v261 = vld [vmem:[%s249 + $0x28] sm:$0xff]
      %v262 = vld [vmem:[%s249 + $0x30] sm:$0xff]
      %v263 = vld [vmem:[%s249 + $0x38] sm:$0xff]
      %v264 = vunpack.c.l.bf16 %v256
      %v265 = vunpack.c.h.bf16 %v256
      %v266 = vunpack.c.l.bf16 %v257
      %v267 = vunpack.c.h.bf16 %v257
      %v268 = vunpack.c.l.bf16 %v258
      %v269 = vunpack.c.h.bf16 %v258
      %v270 = vunpack.c.l.bf16 %v259
      %v271 = vunpack.c.h.bf16 %v259
      %v272 = vunpack.c.l.bf16 %v260
      %v273 = vunpack.c.h.bf16 %v260
      %v274 = vunpack.c.l.bf16 %v261
      %v275 = vunpack.c.h.bf16 %v261
      %v276 = vunpack.c.l.bf16 %v262
      %v277 = vunpack.c.h.bf16 %v262
      %v278 = vunpack.c.l.bf16 %v263
      %v279 = vunpack.c.h.bf16 %v263
      %v280 = vld [vmem:[%s1] sm:$0xff]
      %v281 = vld [vmem:[%s1 + $0x8] sm:$0xff]
      %vm282 = vcmp.gt.f32.partialorder %v280, 0.5
      %vm283 = vcmp.gt.f32.partialorder %v281, 0.5
      %v284 = vsel %vm282, 1, 0
      %v285 = vsel %vm283, 1, 0
      %286 = vset.pattern.permute.xlu0 0
      %287 = vperm.xlu0 %286, %v284
      %v288 = vpop.permute.xlu0 %287
      %289 = vset.pattern.permute.xlu0 0
      %290 = vperm.xlu0 %289, %v285
      %v291 = vpop.permute.xlu0 %290
      %vm292 = vcmp.eq.s32.totalorder %v288, 1
      %vm293 = vcmp.eq.s32.totalorder %v291, 1
      %v294 = vlaneseq
      %v295 = vshrl.u32 %v294, 7
      %v296 = vsub.s32 4, %v295
      %v297 = vrot.slane %v264, %v296
      %v298 = vlaneseq
      %v299 = vshrl.u32 %v298, 7
      %v300 = vsub.s32 4, %v299
      %v301 = vrot.slane %v265, %v300
      %v302 = vlaneseq
      %v303 = vshrl.u32 %v302, 7
      %v304 = vsub.s32 4, %v303
      %v305 = vrot.slane %v266, %v304
      %v306 = vlaneseq
      %v307 = vshrl.u32 %v306, 7
      %v308 = vsub.s32 4, %v307
      %v309 = vrot.slane %v267, %v308
      %v310 = vlaneseq
      %v311 = vshrl.u32 %v310, 7
      %v312 = vsub.s32 4, %v311
      %v313 = vrot.slane %v268, %v312
      %v314 = vlaneseq
      %v315 = vshrl.u32 %v314, 7
      %v316 = vsub.s32 4, %v315
      %v317 = vrot.slane %v269, %v316
      %v318 = vlaneseq
      %v319 = vshrl.u32 %v318, 7
      %v320 = vsub.s32 4, %v319
      %v321 = vrot.slane %v270, %v320
      %v322 = vlaneseq
      %v323 = vshrl.u32 %v322, 7
      %v324 = vsub.s32 4, %v323
      %v325 = vrot.slane %v271, %v324
      %v326 = vlaneseq
      %v327 = vshrl.u32 %v326, 7
      %v328 = vsub.s32 4, %v327
      %v329 = vrot.slane %v272, %v328
      %v330 = vlaneseq
      %v331 = vshrl.u32 %v330, 7
      %v332 = vsub.s32 4, %v331
      %v333 = vrot.slane %v273, %v332
      %v334 = vlaneseq
      %v335 = vshrl.u32 %v334, 7
      %v336 = vsub.s32 4, %v335
      %v337 = vrot.slane %v274, %v336
      %v338 = vlaneseq
      %v339 = vshrl.u32 %v338, 7
      %v340 = vsub.s32 4, %v339
      %v341 = vrot.slane %v275, %v340
      %v342 = vlaneseq
      %v343 = vshrl.u32 %v342, 7
      %v344 = vsub.s32 4, %v343
      %v345 = vrot.slane %v276, %v344
      %v346 = vlaneseq
      %v347 = vshrl.u32 %v346, 7
      %v348 = vsub.s32 4, %v347
      %v349 = vrot.slane %v277, %v348
      %v350 = vlaneseq
      %v351 = vshrl.u32 %v350, 7
      %v352 = vsub.s32 4, %v351
      %v353 = vrot.slane %v278, %v352
      %v354 = vlaneseq
      %v355 = vshrl.u32 %v354, 7
      %v356 = vsub.s32 4, %v355
      %v357 = vrot.slane %v279, %v356
      %v358 = vlaneseq
      %v359 = vshrl.u32 %v358, 7
      %v360 = vsub.s32 0, %v359
      %v361 = vrot.slane %v264, %v360
      %v362 = vlaneseq
      %v363 = vshrl.u32 %v362, 7
      %v364 = vsub.s32 0, %v363
      %v365 = vrot.slane %v265, %v364
      %v366 = vlaneseq
      %v367 = vshrl.u32 %v366, 7
      %v368 = vsub.s32 0, %v367
      %v369 = vrot.slane %v266, %v368
      %v370 = vlaneseq
      %v371 = vshrl.u32 %v370, 7
      %v372 = vsub.s32 0, %v371
      %v373 = vrot.slane %v267, %v372
      %v374 = vlaneseq
      %v375 = vshrl.u32 %v374, 7
      %v376 = vsub.s32 0, %v375
      %v377 = vrot.slane %v268, %v376
      %v378 = vlaneseq
      %v379 = vshrl.u32 %v378, 7
      %v380 = vsub.s32 0, %v379
      %v381 = vrot.slane %v269, %v380
      %v382 = vlaneseq
      %v383 = vshrl.u32 %v382, 7
      %v384 = vsub.s32 0, %v383
      %v385 = vrot.slane %v270, %v384
      %v386 = vlaneseq
      %v387 = vshrl.u32 %v386, 7
      %v388 = vsub.s32 0, %v387
      %v389 = vrot.slane %v271, %v388
      %v390 = vlaneseq
      %v391 = vshrl.u32 %v390, 7
      %v392 = vsub.s32 0, %v391
      %v393 = vrot.slane %v272, %v392
      %v394 = vlaneseq
      %v395 = vshrl.u32 %v394, 7
      %v396 = vsub.s32 0, %v395
      %v397 = vrot.slane %v273, %v396
      %v398 = vlaneseq
      %v399 = vshrl.u32 %v398, 7
      %v400 = vsub.s32 0, %v399
      %v401 = vrot.slane %v274, %v400
      %v402 = vlaneseq
      %v403 = vshrl.u32 %v402, 7
      %v404 = vsub.s32 0, %v403
      %v405 = vrot.slane %v275, %v404
      %v406 = vlaneseq
      %v407 = vshrl.u32 %v406, 7
      %v408 = vsub.s32 0, %v407
      %v409 = vrot.slane %v276, %v408
      %v410 = vlaneseq
      %v411 = vshrl.u32 %v410, 7
      %v412 = vsub.s32 0, %v411
      %v413 = vrot.slane %v277, %v412
      %v414 = vlaneseq
      %v415 = vshrl.u32 %v414, 7
      %v416 = vsub.s32 0, %v415
      %v417 = vrot.slane %v278, %v416
      %v418 = vlaneseq
      %v419 = vshrl.u32 %v418, 7
      %v420 = vsub.s32 0, %v419
      %v421 = vrot.slane %v279, %v420
      %v422 = vsel %vm292, %v297, %v361
      %v423 = vsel %vm292, %v301, %v365
      %v424 = vsel %vm293, %v297, %v361
      %v425 = vsel %vm293, %v301, %v365
      %v426 = vsel %vm292, %v305, %v369
      %v427 = vsel %vm292, %v309, %v373
      %v428 = vsel %vm293, %v305, %v369
      %v429 = vsel %vm293, %v309, %v373
      %v430 = vsel %vm292, %v313, %v377
      %v431 = vsel %vm292, %v317, %v381
      %v432 = vsel %vm293, %v313, %v377
      %v433 = vsel %vm293, %v317, %v381
      %v434 = vsel %vm292, %v321, %v385
      %v435 = vsel %vm292, %v325, %v389
      %v436 = vsel %vm293, %v321, %v385
      %v437 = vsel %vm293, %v325, %v389
      %v438 = vsel %vm292, %v329, %v393
      %v439 = vsel %vm292, %v333, %v397
      %v440 = vsel %vm293, %v329, %v393
      %v441 = vsel %vm293, %v333, %v397
      %v442 = vsel %vm292, %v337, %v401
      %v443 = vsel %vm292, %v341, %v405
      %v444 = vsel %vm293, %v337, %v401
      %v445 = vsel %vm293, %v341, %v405
      %v446 = vsel %vm292, %v345, %v409
      %v447 = vsel %vm292, %v349, %v413
      %v448 = vsel %vm293, %v345, %v409
      %v449 = vsel %vm293, %v349, %v413
      %v450 = vsel %vm292, %v353, %v417
      %v451 = vsel %vm292, %v357, %v421
      %v452 = vsel %vm293, %v353, %v417
      %v453 = vsel %vm293, %v357, %v421
      %454 = vset.pattern.permute.xlu0 1
      %455 = vperm.xlu0 %454, %v284
      %v456 = vpop.permute.xlu0 %455
      %457 = vset.pattern.permute.xlu0 1
      %458 = vperm.xlu0 %457, %v285
      %v459 = vpop.permute.xlu0 %458
      %vm460 = vcmp.eq.s32.totalorder %v456, 1
      %vm461 = vcmp.eq.s32.totalorder %v459, 1
      %v462 = vlaneseq
      %v463 = vshrl.u32 %v462, 7
      %v464 = vsub.s32 5, %v463
      %v465 = vrot.slane %v264, %v464
      %v466 = vlaneseq
      %v467 = vshrl.u32 %v466, 7
      %v468 = vsub.s32 5, %v467
      %v469 = vrot.slane %v265, %v468
      %v470 = vlaneseq
      %v471 = vshrl.u32 %v470, 7
      %v472 = vsub.s32 5, %v471
      %v473 = vrot.slane %v266, %v472
      %v474 = vlaneseq
      %v475 = vshrl.u32 %v474, 7
      %v476 = vsub.s32 5, %v475
      %v477 = vrot.slane %v267, %v476
      %v478 = vlaneseq
      %v479 = vshrl.u32 %v478, 7
      %v480 = vsub.s32 5, %v479
      %v481 = vrot.slane %v268, %v480
      %v482 = vlaneseq
      %v483 = vshrl.u32 %v482, 7
      %v484 = vsub.s32 5, %v483
      %v485 = vrot.slane %v269, %v484
      %v486 = vlaneseq
      %v487 = vshrl.u32 %v486, 7
      %v488 = vsub.s32 5, %v487
      %v489 = vrot.slane %v270, %v488
      %v490 = vlaneseq
      %v491 = vshrl.u32 %v490, 7
      %v492 = vsub.s32 5, %v491
      %v493 = vrot.slane %v271, %v492
      %v494 = vlaneseq
      %v495 = vshrl.u32 %v494, 7
      %v496 = vsub.s32 5, %v495
      %v497 = vrot.slane %v272, %v496
      %v498 = vlaneseq
      %v499 = vshrl.u32 %v498, 7
      %v500 = vsub.s32 5, %v499
      %v501 = vrot.slane %v273, %v500
      %v502 = vlaneseq
      %v503 = vshrl.u32 %v502, 7
      %v504 = vsub.s32 5, %v503
      %v505 = vrot.slane %v274, %v504
      %v506 = vlaneseq
      %v507 = vshrl.u32 %v506, 7
      %v508 = vsub.s32 5, %v507
      %v509 = vrot.slane %v275, %v508
      %v510 = vlaneseq
      %v511 = vshrl.u32 %v510, 7
      %v512 = vsub.s32 5, %v511
      %v513 = vrot.slane %v276, %v512
      %v514 = vlaneseq
      %v515 = vshrl.u32 %v514, 7
      %v516 = vsub.s32 5, %v515
      %v517 = vrot.slane %v277, %v516
      %v518 = vlaneseq
      %v519 = vshrl.u32 %v518, 7
      %v520 = vsub.s32 5, %v519
      %v521 = vrot.slane %v278, %v520
      %v522 = vlaneseq
      %v523 = vshrl.u32 %v522, 7
      %v524 = vsub.s32 5, %v523
      %v525 = vrot.slane %v279, %v524
      %v526 = vlaneseq
      %v527 = vshrl.u32 %v526, 7
      %v528 = vsub.s32 1, %v527
      %v529 = vrot.slane %v264, %v528
      %v530 = vlaneseq
      %v531 = vshrl.u32 %v530, 7
      %v532 = vsub.s32 1, %v531
      %v533 = vrot.slane %v265, %v532
      %v534 = vlaneseq
      %v535 = vshrl.u32 %v534, 7
      %v536 = vsub.s32 1, %v535
      %v537 = vrot.slane %v266, %v536
      %v538 = vlaneseq
      %v539 = vshrl.u32 %v538, 7
      %v540 = vsub.s32 1, %v539
      %v541 = vrot.slane %v267, %v540
      %v542 = vlaneseq
      %v543 = vshrl.u32 %v542, 7
      %v544 = vsub.s32 1, %v543
      %v545 = vrot.slane %v268, %v544
      %v546 = vlaneseq
      %v547 = vshrl.u32 %v546, 7
      %v548 = vsub.s32 1, %v547
      %v549 = vrot.slane %v269, %v548
      %v550 = vlaneseq
      %v551 = vshrl.u32 %v550, 7
      %v552 = vsub.s32 1, %v551
      %v553 = vrot.slane %v270, %v552
      %v554 = vlaneseq
      %v555 = vshrl.u32 %v554, 7
      %v556 = vsub.s32 1, %v555
      %v557 = vrot.slane %v271, %v556
      %v558 = vlaneseq
      %v559 = vshrl.u32 %v558, 7
      %v560 = vsub.s32 1, %v559
      %v561 = vrot.slane %v272, %v560
      %v562 = vlaneseq
      %v563 = vshrl.u32 %v562, 7
      %v564 = vsub.s32 1, %v563
      %v565 = vrot.slane %v273, %v564
      %v566 = vlaneseq
      %v567 = vshrl.u32 %v566, 7
      %v568 = vsub.s32 1, %v567
      %v569 = vrot.slane %v274, %v568
      %v570 = vlaneseq
      %v571 = vshrl.u32 %v570, 7
      %v572 = vsub.s32 1, %v571
      %v573 = vrot.slane %v275, %v572
      %v574 = vlaneseq
      %v575 = vshrl.u32 %v574, 7
      %v576 = vsub.s32 1, %v575
      %v577 = vrot.slane %v276, %v576
      %v578 = vlaneseq
      %v579 = vshrl.u32 %v578, 7
      %v580 = vsub.s32 1, %v579
      %v581 = vrot.slane %v277, %v580
      %v582 = vlaneseq
      %v583 = vshrl.u32 %v582, 7
      %v584 = vsub.s32 1, %v583
      %v585 = vrot.slane %v278, %v584
      %v586 = vlaneseq
      %v587 = vshrl.u32 %v586, 7
      %v588 = vsub.s32 1, %v587
      %v589 = vrot.slane %v279, %v588
      %v590 = vsel %vm460, %v465, %v529
      %v591 = vsel %vm460, %v469, %v533
      %v592 = vsel %vm461, %v465, %v529
      %v593 = vsel %vm461, %v469, %v533
      %v594 = vsel %vm460, %v473, %v537
      %v595 = vsel %vm460, %v477, %v541
      %v596 = vsel %vm461, %v473, %v537
      %v597 = vsel %vm461, %v477, %v541
      %v598 = vsel %vm460, %v481, %v545
      %v599 = vsel %vm460, %v485, %v549
      %v600 = vsel %vm461, %v481, %v545
      %v601 = vsel %vm461, %v485, %v549
      %v602 = vsel %vm460, %v489, %v553
      %v603 = vsel %vm460, %v493, %v557
      %v604 = vsel %vm461, %v489, %v553
      %v605 = vsel %vm461, %v493, %v557
      %v606 = vsel %vm460, %v497, %v561
      %v607 = vsel %vm460, %v501, %v565
      %v608 = vsel %vm461, %v497, %v561
      %v609 = vsel %vm461, %v501, %v565
      %v610 = vsel %vm460, %v505, %v569
      %v611 = vsel %vm460, %v509, %v573
      %v612 = vsel %vm461, %v505, %v569
      %v613 = vsel %vm461, %v509, %v573
      %v614 = vsel %vm460, %v513, %v577
      %v615 = vsel %vm460, %v517, %v581
      %v616 = vsel %vm461, %v513, %v577
      %v617 = vsel %vm461, %v517, %v581
      %v618 = vsel %vm460, %v521, %v585
      %v619 = vsel %vm460, %v525, %v589
      %v620 = vsel %vm461, %v521, %v585
      %v621 = vsel %vm461, %v525, %v589
      %v622 = vmul.f32 %v422, %v590
      %v623 = vmul.f32 %v423, %v591
      %v624 = vmul.f32 %v424, %v592
      %v625 = vmul.f32 %v425, %v593
      %v626 = vmul.f32 %v426, %v594
      %v627 = vmul.f32 %v427, %v595
      %v628 = vmul.f32 %v428, %v596
      %v629 = vmul.f32 %v429, %v597
      %v630 = vmul.f32 %v430, %v598
      %v631 = vmul.f32 %v431, %v599
      %v632 = vmul.f32 %v432, %v600
      %v633 = vmul.f32 %v433, %v601
      %v634 = vmul.f32 %v434, %v602
      %v635 = vmul.f32 %v435, %v603
      %v636 = vmul.f32 %v436, %v604
      %v637 = vmul.f32 %v437, %v605
      %v638 = vmul.f32 %v438, %v606
      %v639 = vmul.f32 %v439, %v607
      %v640 = vmul.f32 %v440, %v608
      %v641 = vmul.f32 %v441, %v609
      %v642 = vmul.f32 %v442, %v610
      %v643 = vmul.f32 %v443, %v611
      %v644 = vmul.f32 %v444, %v612
      %v645 = vmul.f32 %v445, %v613
      %v646 = vmul.f32 %v446, %v614
      %v647 = vmul.f32 %v447, %v615
      %v648 = vmul.f32 %v448, %v616
      %v649 = vmul.f32 %v449, %v617
      %v650 = vmul.f32 %v450, %v618
      %v651 = vmul.f32 %v451, %v619
      %v652 = vmul.f32 %v452, %v620
      %v653 = vmul.f32 %v453, %v621
      %654 = vset.pattern.permute.xlu0 2
      %655 = vperm.xlu0 %654, %v284
      %v656 = vpop.permute.xlu0 %655
      %657 = vset.pattern.permute.xlu0 2
      %658 = vperm.xlu0 %657, %v285
      %v659 = vpop.permute.xlu0 %658
      %vm660 = vcmp.eq.s32.totalorder %v656, 1
      %vm661 = vcmp.eq.s32.totalorder %v659, 1
      %v662 = vlaneseq
      %v663 = vshrl.u32 %v662, 7
      %v664 = vsub.s32 6, %v663
      %v665 = vrot.slane %v264, %v664
      %v666 = vlaneseq
      %v667 = vshrl.u32 %v666, 7
      %v668 = vsub.s32 6, %v667
      %v669 = vrot.slane %v265, %v668
      %v670 = vlaneseq
      %v671 = vshrl.u32 %v670, 7
      %v672 = vsub.s32 6, %v671
      %v673 = vrot.slane %v266, %v672
      %v674 = vlaneseq
      %v675 = vshrl.u32 %v674, 7
      %v676 = vsub.s32 6, %v675
      %v677 = vrot.slane %v267, %v676
      %v678 = vlaneseq
      %v679 = vshrl.u32 %v678, 7
      %v680 = vsub.s32 6, %v679
      %v681 = vrot.slane %v268, %v680
      %v682 = vlaneseq
      %v683 = vshrl.u32 %v682, 7
      %v684 = vsub.s32 6, %v683
      %v685 = vrot.slane %v269, %v684
      %v686 = vlaneseq
      %v687 = vshrl.u32 %v686, 7
      %v688 = vsub.s32 6, %v687
      %v689 = vrot.slane %v270, %v688
      %v690 = vlaneseq
      %v691 = vshrl.u32 %v690, 7
      %v692 = vsub.s32 6, %v691
      %v693 = vrot.slane %v271, %v692
      %v694 = vlaneseq
      %v695 = vshrl.u32 %v694, 7
      %v696 = vsub.s32 6, %v695
      %v697 = vrot.slane %v272, %v696
      %v698 = vlaneseq
      %v699 = vshrl.u32 %v698, 7
      %v700 = vsub.s32 6, %v699
      %v701 = vrot.slane %v273, %v700
      %v702 = vlaneseq
      %v703 = vshrl.u32 %v702, 7
      %v704 = vsub.s32 6, %v703
      %v705 = vrot.slane %v274, %v704
      %v706 = vlaneseq
      %v707 = vshrl.u32 %v706, 7
      %v708 = vsub.s32 6, %v707
      %v709 = vrot.slane %v275, %v708
      %v710 = vlaneseq
      %v711 = vshrl.u32 %v710, 7
      %v712 = vsub.s32 6, %v711
      %v713 = vrot.slane %v276, %v712
      %v714 = vlaneseq
      %v715 = vshrl.u32 %v714, 7
      %v716 = vsub.s32 6, %v715
      %v717 = vrot.slane %v277, %v716
      %v718 = vlaneseq
      %v719 = vshrl.u32 %v718, 7
      %v720 = vsub.s32 6, %v719
      %v721 = vrot.slane %v278, %v720
      %v722 = vlaneseq
      %v723 = vshrl.u32 %v722, 7
      %v724 = vsub.s32 6, %v723
      %v725 = vrot.slane %v279, %v724
      %v726 = vlaneseq
      %v727 = vshrl.u32 %v726, 7
      %v728 = vsub.s32 2, %v727
      %v729 = vrot.slane %v264, %v728
      %v730 = vlaneseq
      %v731 = vshrl.u32 %v730, 7
      %v732 = vsub.s32 2, %v731
      %v733 = vrot.slane %v265, %v732
      %v734 = vlaneseq
      %v735 = vshrl.u32 %v734, 7
      %v736 = vsub.s32 2, %v735
      %v737 = vrot.slane %v266, %v736
      %v738 = vlaneseq
      %v739 = vshrl.u32 %v738, 7
      %v740 = vsub.s32 2, %v739
      %v741 = vrot.slane %v267, %v740
      %v742 = vlaneseq
      %v743 = vshrl.u32 %v742, 7
      %v744 = vsub.s32 2, %v743
      %v745 = vrot.slane %v268, %v744
      %v746 = vlaneseq
      %v747 = vshrl.u32 %v746, 7
      %v748 = vsub.s32 2, %v747
      %v749 = vrot.slane %v269, %v748
      %v750 = vlaneseq
      %v751 = vshrl.u32 %v750, 7
      %v752 = vsub.s32 2, %v751
      %v753 = vrot.slane %v270, %v752
      %v754 = vlaneseq
      %v755 = vshrl.u32 %v754, 7
      %v756 = vsub.s32 2, %v755
      %v757 = vrot.slane %v271, %v756
      %v758 = vlaneseq
      %v759 = vshrl.u32 %v758, 7
      %v760 = vsub.s32 2, %v759
      %v761 = vrot.slane %v272, %v760
      %v762 = vlaneseq
      %v763 = vshrl.u32 %v762, 7
      %v764 = vsub.s32 2, %v763
      %v765 = vrot.slane %v273, %v764
      %v766 = vlaneseq
      %v767 = vshrl.u32 %v766, 7
      %v768 = vsub.s32 2, %v767
      %v769 = vrot.slane %v274, %v768
      %v770 = vlaneseq
      %v771 = vshrl.u32 %v770, 7
      %v772 = vsub.s32 2, %v771
      %v773 = vrot.slane %v275, %v772
      %v774 = vlaneseq
      %v775 = vshrl.u32 %v774, 7
      %v776 = vsub.s32 2, %v775
      %v777 = vrot.slane %v276, %v776
      %v778 = vlaneseq
      %v779 = vshrl.u32 %v778, 7
      %v780 = vsub.s32 2, %v779
      %v781 = vrot.slane %v277, %v780
      %v782 = vlaneseq
      %v783 = vshrl.u32 %v782, 7
      %v784 = vsub.s32 2, %v783
      %v785 = vrot.slane %v278, %v784
      %v786 = vlaneseq
      %v787 = vshrl.u32 %v786, 7
      %v788 = vsub.s32 2, %v787
      %v789 = vrot.slane %v279, %v788
      %v790 = vsel %vm660, %v665, %v729
      %v791 = vsel %vm660, %v669, %v733
      %v792 = vsel %vm661, %v665, %v729
      %v793 = vsel %vm661, %v669, %v733
      %v794 = vsel %vm660, %v673, %v737
      %v795 = vsel %vm660, %v677, %v741
      %v796 = vsel %vm661, %v673, %v737
      %v797 = vsel %vm661, %v677, %v741
      %v798 = vsel %vm660, %v681, %v745
      %v799 = vsel %vm660, %v685, %v749
      %v800 = vsel %vm661, %v681, %v745
      %v801 = vsel %vm661, %v685, %v749
      %v802 = vsel %vm660, %v689, %v753
      %v803 = vsel %vm660, %v693, %v757
      %v804 = vsel %vm661, %v689, %v753
      %v805 = vsel %vm661, %v693, %v757
      %v806 = vsel %vm660, %v697, %v761
      %v807 = vsel %vm660, %v701, %v765
      %v808 = vsel %vm661, %v697, %v761
      %v809 = vsel %vm661, %v701, %v765
      %v810 = vsel %vm660, %v705, %v769
      %v811 = vsel %vm660, %v709, %v773
      %v812 = vsel %vm661, %v705, %v769
      %v813 = vsel %vm661, %v709, %v773
      %v814 = vsel %vm660, %v713, %v777
      %v815 = vsel %vm660, %v717, %v781
      %v816 = vsel %vm661, %v713, %v777
      %v817 = vsel %vm661, %v717, %v781
      %v818 = vsel %vm660, %v721, %v785
      %v819 = vsel %vm660, %v725, %v789
      %v820 = vsel %vm661, %v721, %v785
      %v821 = vsel %vm661, %v725, %v789
      %v822 = vmul.f32 %v622, %v790
      %v823 = vmul.f32 %v623, %v791
      %v824 = vmul.f32 %v624, %v792
      %v825 = vmul.f32 %v625, %v793
      %v826 = vmul.f32 %v626, %v794
      %v827 = vmul.f32 %v627, %v795
      %v828 = vmul.f32 %v628, %v796
      %v829 = vmul.f32 %v629, %v797
      %v830 = vmul.f32 %v630, %v798
      %v831 = vmul.f32 %v631, %v799
      %v832 = vmul.f32 %v632, %v800
      %v833 = vmul.f32 %v633, %v801
      %v834 = vmul.f32 %v634, %v802
      %v835 = vmul.f32 %v635, %v803
      %v836 = vmul.f32 %v636, %v804
      %v837 = vmul.f32 %v637, %v805
      %v838 = vmul.f32 %v638, %v806
      %v839 = vmul.f32 %v639, %v807
      %v840 = vmul.f32 %v640, %v808
      %v841 = vmul.f32 %v641, %v809
      %v842 = vmul.f32 %v642, %v810
      %v843 = vmul.f32 %v643, %v811
      %v844 = vmul.f32 %v644, %v812
      %v845 = vmul.f32 %v645, %v813
      %v846 = vmul.f32 %v646, %v814
      %v847 = vmul.f32 %v647, %v815
      %v848 = vmul.f32 %v648, %v816
      %v849 = vmul.f32 %v649, %v817
      %v850 = vmul.f32 %v650, %v818
      %v851 = vmul.f32 %v651, %v819
      %v852 = vmul.f32 %v652, %v820
      %v853 = vmul.f32 %v653, %v821
      %854 = vset.pattern.permute.xlu0 3
      %855 = vperm.xlu0 %854, %v284
      %v856 = vpop.permute.xlu0 %855
      %857 = vset.pattern.permute.xlu0 3
      %858 = vperm.xlu0 %857, %v285
      %v859 = vpop.permute.xlu0 %858
      %vm860 = vcmp.eq.s32.totalorder %v856, 1
      %vm861 = vcmp.eq.s32.totalorder %v859, 1
      %v862 = vlaneseq
      %v863 = vshrl.u32 %v862, 7
      %v864 = vsub.s32 7, %v863
      %v865 = vrot.slane %v264, %v864
      %v866 = vlaneseq
      %v867 = vshrl.u32 %v866, 7
      %v868 = vsub.s32 7, %v867
      %v869 = vrot.slane %v265, %v868
      %v870 = vlaneseq
      %v871 = vshrl.u32 %v870, 7
      %v872 = vsub.s32 7, %v871
      %v873 = vrot.slane %v266, %v872
      %v874 = vlaneseq
      %v875 = vshrl.u32 %v874, 7
      %v876 = vsub.s32 7, %v875
      %v877 = vrot.slane %v267, %v876
      %v878 = vlaneseq
      %v879 = vshrl.u32 %v878, 7
      %v880 = vsub.s32 7, %v879
      %v881 = vrot.slane %v268, %v880
      %v882 = vlaneseq
      %v883 = vshrl.u32 %v882, 7
      %v884 = vsub.s32 7, %v883
      %v885 = vrot.slane %v269, %v884
      %v886 = vlaneseq
      %v887 = vshrl.u32 %v886, 7
      %v888 = vsub.s32 7, %v887
      %v889 = vrot.slane %v270, %v888
      %v890 = vlaneseq
      %v891 = vshrl.u32 %v890, 7
      %v892 = vsub.s32 7, %v891
      %v893 = vrot.slane %v271, %v892
      %v894 = vlaneseq
      %v895 = vshrl.u32 %v894, 7
      %v896 = vsub.s32 7, %v895
      %v897 = vrot.slane %v272, %v896
      %v898 = vlaneseq
      %v899 = vshrl.u32 %v898, 7
      %v900 = vsub.s32 7, %v899
      %v901 = vrot.slane %v273, %v900
      %v902 = vlaneseq
      %v903 = vshrl.u32 %v902, 7
      %v904 = vsub.s32 7, %v903
      %v905 = vrot.slane %v274, %v904
      %v906 = vlaneseq
      %v907 = vshrl.u32 %v906, 7
      %v908 = vsub.s32 7, %v907
      %v909 = vrot.slane %v275, %v908
      %v910 = vlaneseq
      %v911 = vshrl.u32 %v910, 7
      %v912 = vsub.s32 7, %v911
      %v913 = vrot.slane %v276, %v912
      %v914 = vlaneseq
      %v915 = vshrl.u32 %v914, 7
      %v916 = vsub.s32 7, %v915
      %v917 = vrot.slane %v277, %v916
      %v918 = vlaneseq
      %v919 = vshrl.u32 %v918, 7
      %v920 = vsub.s32 7, %v919
      %v921 = vrot.slane %v278, %v920
      %v922 = vlaneseq
      %v923 = vshrl.u32 %v922, 7
      %v924 = vsub.s32 7, %v923
      %v925 = vrot.slane %v279, %v924
      %v926 = vlaneseq
      %v927 = vshrl.u32 %v926, 7
      %v928 = vsub.s32 3, %v927
      %v929 = vrot.slane %v264, %v928
      %v930 = vlaneseq
      %v931 = vshrl.u32 %v930, 7
      %v932 = vsub.s32 3, %v931
      %v933 = vrot.slane %v265, %v932
      %v934 = vlaneseq
      %v935 = vshrl.u32 %v934, 7
      %v936 = vsub.s32 3, %v935
      %v937 = vrot.slane %v266, %v936
      %v938 = vlaneseq
      %v939 = vshrl.u32 %v938, 7
      %v940 = vsub.s32 3, %v939
      %v941 = vrot.slane %v267, %v940
      %v942 = vlaneseq
      %v943 = vshrl.u32 %v942, 7
      %v944 = vsub.s32 3, %v943
      %v945 = vrot.slane %v268, %v944
      %v946 = vlaneseq
      %v947 = vshrl.u32 %v946, 7
      %v948 = vsub.s32 3, %v947
      %v949 = vrot.slane %v269, %v948
      %v950 = vlaneseq
      %v951 = vshrl.u32 %v950, 7
      %v952 = vsub.s32 3, %v951
      %v953 = vrot.slane %v270, %v952
      %v954 = vlaneseq
      %v955 = vshrl.u32 %v954, 7
      %v956 = vsub.s32 3, %v955
      %v957 = vrot.slane %v271, %v956
      %v958 = vlaneseq
      %v959 = vshrl.u32 %v958, 7
      %v960 = vsub.s32 3, %v959
      %v961 = vrot.slane %v272, %v960
      %v962 = vlaneseq
      %v963 = vshrl.u32 %v962, 7
      %v964 = vsub.s32 3, %v963
      %v965 = vrot.slane %v273, %v964
      %v966 = vlaneseq
      %v967 = vshrl.u32 %v966, 7
      %v968 = vsub.s32 3, %v967
      %v969 = vrot.slane %v274, %v968
      %v970 = vlaneseq
      %v971 = vshrl.u32 %v970, 7
      %v972 = vsub.s32 3, %v971
      %v973 = vrot.slane %v275, %v972
      %v974 = vlaneseq
      %v975 = vshrl.u32 %v974, 7
      %v976 = vsub.s32 3, %v975
      %v977 = vrot.slane %v276, %v976
      %v978 = vlaneseq
      %v979 = vshrl.u32 %v978, 7
      %v980 = vsub.s32 3, %v979
      %v981 = vrot.slane %v277, %v980
      %v982 = vlaneseq
      %v983 = vshrl.u32 %v982, 7
      %v984 = vsub.s32 3, %v983
      %v985 = vrot.slane %v278, %v984
      %v986 = vlaneseq
      %v987 = vshrl.u32 %v986, 7
      %v988 = vsub.s32 3, %v987
      %v989 = vrot.slane %v279, %v988
      %v990 = vsel %vm860, %v865, %v929
      %v991 = vsel %vm860, %v869, %v933
      %v992 = vsel %vm861, %v865, %v929
      %v993 = vsel %vm861, %v869, %v933
      %v994 = vsel %vm860, %v873, %v937
      %v995 = vsel %vm860, %v877, %v941
      %v996 = vsel %vm861, %v873, %v937
      %v997 = vsel %vm861, %v877, %v941
      %v998 = vsel %vm860, %v881, %v945
      %v999 = vsel %vm860, %v885, %v949
      %v1000 = vsel %vm861, %v881, %v945
      %v1001 = vsel %vm861, %v885, %v949
      %v1002 = vsel %vm860, %v889, %v953
      %v1003 = vsel %vm860, %v893, %v957
      %v1004 = vsel %vm861, %v889, %v953
      %v1005 = vsel %vm861, %v893, %v957
      %v1006 = vsel %vm860, %v897, %v961
      %v1007 = vsel %vm860, %v901, %v965
      %v1008 = vsel %vm861, %v897, %v961
      %v1009 = vsel %vm861, %v901, %v965
      %v1010 = vsel %vm860, %v905, %v969
      %v1011 = vsel %vm860, %v909, %v973
      %v1012 = vsel %vm861, %v905, %v969
      %v1013 = vsel %vm861, %v909, %v973
      %v1014 = vsel %vm860, %v913, %v977
      %v1015 = vsel %vm860, %v917, %v981
      %v1016 = vsel %vm861, %v913, %v977
      %v1017 = vsel %vm861, %v917, %v981
      %v1018 = vsel %vm860, %v921, %v985
      %v1019 = vsel %vm860, %v925, %v989
      %v1020 = vsel %vm861, %v921, %v985
      %v1021 = vsel %vm861, %v925, %v989
      %v1022 = vmul.f32 %v822, %v990
      %v1023 = vmul.f32 %v823, %v991
      %v1024 = vmul.f32 %v824, %v992
      %v1025 = vmul.f32 %v825, %v993
      %v1026 = vmul.f32 %v826, %v994
      %v1027 = vmul.f32 %v827, %v995
      %v1028 = vmul.f32 %v828, %v996
      %v1029 = vmul.f32 %v829, %v997
      %v1030 = vmul.f32 %v830, %v998
      %v1031 = vmul.f32 %v831, %v999
      %v1032 = vmul.f32 %v832, %v1000
      %v1033 = vmul.f32 %v833, %v1001
      %v1034 = vmul.f32 %v834, %v1002
      %v1035 = vmul.f32 %v835, %v1003
      %v1036 = vmul.f32 %v836, %v1004
      %v1037 = vmul.f32 %v837, %v1005
      %v1038 = vmul.f32 %v838, %v1006
      %v1039 = vmul.f32 %v839, %v1007
      %v1040 = vmul.f32 %v840, %v1008
      %v1041 = vmul.f32 %v841, %v1009
      %v1042 = vmul.f32 %v842, %v1010
      %v1043 = vmul.f32 %v843, %v1011
      %v1044 = vmul.f32 %v844, %v1012
      %v1045 = vmul.f32 %v845, %v1013
      %v1046 = vmul.f32 %v846, %v1014
      %v1047 = vmul.f32 %v847, %v1015
      %v1048 = vmul.f32 %v848, %v1016
      %v1049 = vmul.f32 %v849, %v1017
      %v1050 = vmul.f32 %v850, %v1018
      %v1051 = vmul.f32 %v851, %v1019
      %v1052 = vmul.f32 %v852, %v1020
      %v1053 = vmul.f32 %v853, %v1021
      %v1054 = vld [vmem:[%s2] sm:$0xf]
      %v1055 = vld [vmem:[%s2 + $0x4] sm:$0xf]
      %v1056 = vld [vmem:[%s2 + $0x8] sm:$0xf]
      %v1057 = vld [vmem:[%s2 + $0xc] sm:$0xf]
      %v1058 = vpack.c.bf16 %v1024, %v1022
      %v1059 = vpack.c.bf16 %v1025, %v1023
      %v1060 = vpack.c.bf16 %v1028, %v1026
      %v1061 = vpack.c.bf16 %v1029, %v1027
      %v1062 = vpack.c.bf16 %v1032, %v1030
      %v1063 = vpack.c.bf16 %v1033, %v1031
      %v1064 = vpack.c.bf16 %v1036, %v1034
      %v1065 = vpack.c.bf16 %v1037, %v1035
      %v1066 = vpack.c.bf16 %v1040, %v1038
      %v1067 = vpack.c.bf16 %v1041, %v1039
      %v1068 = vpack.c.bf16 %v1044, %v1042
      %v1069 = vpack.c.bf16 %v1045, %v1043
      %v1070 = vpack.c.bf16 %v1048, %v1046
      %v1071 = vpack.c.bf16 %v1049, %v1047
      %v1072 = vpack.c.bf16 %v1052, %v1050
      %v1073 = vpack.c.bf16 %v1053, %v1051
      %v1078 = vunpack.c.l.b16 %v1054
      %v1079 = vunpack.c.l.b16 %v1055
      %v1080 = vunpack.c.l.b16 %v1056
      %v1081 = vunpack.c.l.b16 %v1057
      %v1082 = vpack.c.b16 %v1079, %v1078
      %v1083 = vpack.c.b16 %v1081, %v1080
      %vm1084 = vcmask 130048
      %v1086 = vsel %vm1084, %v1082, 0
      %v1089 = vsel %vm1084, %v1083, 0
      %1091 = vmatprep.subr.bf16.mxu0 0
      %1092 = vmatpush1.bf16.msra.mxu0 0
      %1093 = vmatprep.subr.bf16.mxu0 0
      %1094 = vmatpush1.bf16.msra.mxu0 0
      %1095 = vmatprep.subr.bf16.mxu0 0
      %1096 = vmatpush1.bf16.msra.mxu0 0
      %1097 = vmatprep.subr.bf16.mxu0 0
      %1098 = vmatpush1.bf16.msra.mxu0 0
      %1099 = vmatprep.subr.bf16.mxu0 0
      %1100 = vmatpush1.bf16.msra.mxu0 0
      %1101 = vmatprep.subr.bf16.mxu0 0
      %1102 = vmatpush1.bf16.msra.mxu0 0
      %1103 = vmatprep.subr.bf16.mxu0 0
      %1104 = vmatpush1.bf16.msra.mxu0 0
      %1105 = vmatprep.subr.bf16.mxu0 %v1059
      %1106 = vmatpush1.bf16.msra.mxu0 %v1058
      %1107 = vmatprep.subr.bf16.mxu0 0
      %1108 = vmatpush2.bf16.msra.mxu0 0
      %1109 = vmatprep.subr.bf16.mxu0 0
      %1110 = vmatpush2.bf16.msra.mxu0 0
      %1111 = vmatprep.subr.bf16.mxu0 0
      %1112 = vmatpush2.bf16.msra.mxu0 0
      %1113 = vmatprep.subr.bf16.mxu0 0
      %1114 = vmatpush2.bf16.msra.mxu0 0
      %1115 = vmatprep.subr.bf16.mxu0 0
      %1116 = vmatpush2.bf16.msra.mxu0 0
      %1117 = vmatprep.subr.bf16.mxu0 0
      %1118 = vmatpush2.bf16.msra.mxu0 0
      %1119 = vmatprep.subr.bf16.mxu0 0
      %1120 = vmatpush2.bf16.msra.mxu0 0
      %1121 = vmatprep.subr.bf16.mxu0 0
      %1122 = vmatpush2.bf16.msra.mxu0 0
      %1123 = vmatprep.mubr.bf16.mxu0 0
      %1124 = vmatmul.mubr.bf16.gmra.mxu0 %v1086
      %v1125 = vpop.f32.mrf.mxu0
      %v1126 = vadd.f32 0.0, %v1125
      %v1127 = vpop.f32.mrf.mxu0
      %v1128 = vadd.f32 0.0, %v1127
      %v1129 = vpop.f32.mrf.mxu0
      %v1130 = vadd.f32 0.0, %v1129
      %v1131 = vpop.f32.mrf.mxu0
      %v1132 = vadd.f32 0.0, %v1131
      %1133 = vmatprep.mubr.bf16.mxu0 0
      %1134 = vmatmul.mubr.bf16.gmra.mxu0 %v1089
      %v1135 = vpop.f32.mrf.mxu0
      %v1136 = vadd.f32 0.0, %v1135
      %v1137 = vpop.f32.mrf.mxu0
      %v1138 = vadd.f32 0.0, %v1137
      %v1139 = vpop.f32.mrf.mxu0
      %v1140 = vadd.f32 0.0, %v1139
      %v1141 = vpop.f32.mrf.mxu0
      %v1142 = vadd.f32 0.0, %v1141
      %1143 = vdwg.mxu0
      %1144 = vmatprep.subr.bf16.mxu0 0
      %1145 = vmatpush1.bf16.msra.mxu0 0
      %1146 = vmatprep.subr.bf16.mxu0 0
      %1147 = vmatpush1.bf16.msra.mxu0 0
      %1148 = vmatprep.subr.bf16.mxu0 0
      %1149 = vmatpush1.bf16.msra.mxu0 0
      %1150 = vmatprep.subr.bf16.mxu0 0
      %1151 = vmatpush1.bf16.msra.mxu0 0
      %1152 = vmatprep.subr.bf16.mxu0 0
      %1153 = vmatpush1.bf16.msra.mxu0 0
      %1154 = vmatprep.subr.bf16.mxu0 0
      %1155 = vmatpush1.bf16.msra.mxu0 0
      %1156 = vmatprep.subr.bf16.mxu0 0
      %1157 = vmatpush1.bf16.msra.mxu0 0
      %1158 = vmatprep.subr.bf16.mxu0 %v1061
      %1159 = vmatpush1.bf16.msra.mxu0 %v1060
      %1160 = vmatprep.subr.bf16.mxu0 0
      %1161 = vmatpush2.bf16.msra.mxu0 0
      %1162 = vmatprep.subr.bf16.mxu0 0
      %1163 = vmatpush2.bf16.msra.mxu0 0
      %1164 = vmatprep.subr.bf16.mxu0 0
      %1165 = vmatpush2.bf16.msra.mxu0 0
      %1166 = vmatprep.subr.bf16.mxu0 0
      %1167 = vmatpush2.bf16.msra.mxu0 0
      %1168 = vmatprep.subr.bf16.mxu0 0
      %1169 = vmatpush2.bf16.msra.mxu0 0
      %1170 = vmatprep.subr.bf16.mxu0 0
      %1171 = vmatpush2.bf16.msra.mxu0 0
      %1172 = vmatprep.subr.bf16.mxu0 0
      %1173 = vmatpush2.bf16.msra.mxu0 0
      %1174 = vmatprep.subr.bf16.mxu0 0
      %1175 = vmatpush2.bf16.msra.mxu0 0
      %1176 = vmatprep.mubr.bf16.mxu0 0
      %1177 = vmatmul.mubr.bf16.gmra.mxu0 %v1086
      %v1178 = vpop.f32.mrf.mxu0
      %v1179 = vadd.f32 0.0, %v1178
      %v1180 = vpop.f32.mrf.mxu0
      %v1181 = vadd.f32 0.0, %v1180
      %v1182 = vpop.f32.mrf.mxu0
      %v1183 = vadd.f32 0.0, %v1182
      %v1184 = vpop.f32.mrf.mxu0
      %v1185 = vadd.f32 0.0, %v1184
      %1186 = vmatprep.mubr.bf16.mxu0 0
      %1187 = vmatmul.mubr.bf16.gmra.mxu0 %v1089
      %v1188 = vpop.f32.mrf.mxu0
      %v1189 = vadd.f32 0.0, %v1188
      %v1190 = vpop.f32.mrf.mxu0
      %v1191 = vadd.f32 0.0, %v1190
      %v1192 = vpop.f32.mrf.mxu0
      %v1193 = vadd.f32 0.0, %v1192
      %v1194 = vpop.f32.mrf.mxu0
      %v1195 = vadd.f32 0.0, %v1194
      %1196 = vdwg.mxu0
      %1197 = vmatprep.subr.bf16.mxu0 0
      %1198 = vmatpush1.bf16.msra.mxu0 0
      %1199 = vmatprep.subr.bf16.mxu0 0
      %1200 = vmatpush1.bf16.msra.mxu0 0
      %1201 = vmatprep.subr.bf16.mxu0 0
      %1202 = vmatpush1.bf16.msra.mxu0 0
      %1203 = vmatprep.subr.bf16.mxu0 0
      %1204 = vmatpush1.bf16.msra.mxu0 0
      %1205 = vmatprep.subr.bf16.mxu0 0
      %1206 = vmatpush1.bf16.msra.mxu0 0
      %1207 = vmatprep.subr.bf16.mxu0 0
      %1208 = vmatpush1.bf16.msra.mxu0 0
      %1209 = vmatprep.subr.bf16.mxu0 0
      %1210 = vmatpush1.bf16.msra.mxu0 0
      %1211 = vmatprep.subr.bf16.mxu0 %v1063
      %1212 = vmatpush1.bf16.msra.mxu0 %v1062
      %1213 = vmatprep.subr.bf16.mxu0 0
      %1214 = vmatpush2.bf16.msra.mxu0 0
      %1215 = vmatprep.subr.bf16.mxu0 0
      %1216 = vmatpush2.bf16.msra.mxu0 0
      %1217 = vmatprep.subr.bf16.mxu0 0
      %1218 = vmatpush2.bf16.msra.mxu0 0
      %1219 = vmatprep.subr.bf16.mxu0 0
      %1220 = vmatpush2.bf16.msra.mxu0 0
      %1221 = vmatprep.subr.bf16.mxu0 0
      %1222 = vmatpush2.bf16.msra.mxu0 0
      %1223 = vmatprep.subr.bf16.mxu0 0
      %1224 = vmatpush2.bf16.msra.mxu0 0
      %1225 = vmatprep.subr.bf16.mxu0 0
      %1226 = vmatpush2.bf16.msra.mxu0 0
      %1227 = vmatprep.subr.bf16.mxu0 0
      %1228 = vmatpush2.bf16.msra.mxu0 0
      %1229 = vmatprep.mubr.bf16.mxu0 0
      %1230 = vmatmul.mubr.bf16.gmra.mxu0 %v1086
      %v1231 = vpop.f32.mrf.mxu0
      %v1232 = vadd.f32 0.0, %v1231
      %v1233 = vpop.f32.mrf.mxu0
      %v1234 = vadd.f32 0.0, %v1233
      %v1235 = vpop.f32.mrf.mxu0
      %v1236 = vadd.f32 0.0, %v1235
      %v1237 = vpop.f32.mrf.mxu0
      %v1238 = vadd.f32 0.0, %v1237
      %1239 = vmatprep.mubr.bf16.mxu0 0
      %1240 = vmatmul.mubr.bf16.gmra.mxu0 %v1089
      %v1241 = vpop.f32.mrf.mxu0
      %v1242 = vadd.f32 0.0, %v1241
      %v1243 = vpop.f32.mrf.mxu0
      %v1244 = vadd.f32 0.0, %v1243
      %v1245 = vpop.f32.mrf.mxu0
      %v1246 = vadd.f32 0.0, %v1245
      %v1247 = vpop.f32.mrf.mxu0
      %v1248 = vadd.f32 0.0, %v1247
      %1249 = vdwg.mxu0
      %1250 = vmatprep.subr.bf16.mxu0 0
      %1251 = vmatpush1.bf16.msra.mxu0 0
      %1252 = vmatprep.subr.bf16.mxu0 0
      %1253 = vmatpush1.bf16.msra.mxu0 0
      %1254 = vmatprep.subr.bf16.mxu0 0
      %1255 = vmatpush1.bf16.msra.mxu0 0
      %1256 = vmatprep.subr.bf16.mxu0 0
      %1257 = vmatpush1.bf16.msra.mxu0 0
      %1258 = vmatprep.subr.bf16.mxu0 0
      %1259 = vmatpush1.bf16.msra.mxu0 0
      %1260 = vmatprep.subr.bf16.mxu0 0
      %1261 = vmatpush1.bf16.msra.mxu0 0
      %1262 = vmatprep.subr.bf16.mxu0 0
      %1263 = vmatpush1.bf16.msra.mxu0 0
      %1264 = vmatprep.subr.bf16.mxu0 %v1065
      %1265 = vmatpush1.bf16.msra.mxu0 %v1064
      %1266 = vmatprep.subr.bf16.mxu0 0
      %1267 = vmatpush2.bf16.msra.mxu0 0
      %1268 = vmatprep.subr.bf16.mxu0 0
      %1269 = vmatpush2.bf16.msra.mxu0 0
      %1270 = vmatprep.subr.bf16.mxu0 0
      %1271 = vmatpush2.bf16.msra.mxu0 0
      %1272 = vmatprep.subr.bf16.mxu0 0
      %1273 = vmatpush2.bf16.msra.mxu0 0
      %1274 = vmatprep.subr.bf16.mxu0 0
      %1275 = vmatpush2.bf16.msra.mxu0 0
      %1276 = vmatprep.subr.bf16.mxu0 0
      %1277 = vmatpush2.bf16.msra.mxu0 0
      %1278 = vmatprep.subr.bf16.mxu0 0
      %1279 = vmatpush2.bf16.msra.mxu0 0
      %1280 = vmatprep.subr.bf16.mxu0 0
      %1281 = vmatpush2.bf16.msra.mxu0 0
      %1282 = vmatprep.mubr.bf16.mxu0 0
      %1283 = vmatmul.mubr.bf16.gmra.mxu0 %v1086
      %v1284 = vpop.f32.mrf.mxu0
      %v1285 = vadd.f32 0.0, %v1284
      %v1286 = vpop.f32.mrf.mxu0
      %v1287 = vadd.f32 0.0, %v1286
      %v1288 = vpop.f32.mrf.mxu0
      %v1289 = vadd.f32 0.0, %v1288
      %v1290 = vpop.f32.mrf.mxu0
      %v1291 = vadd.f32 0.0, %v1290
      %1292 = vmatprep.mubr.bf16.mxu0 0
      %1293 = vmatmul.mubr.bf16.gmra.mxu0 %v1089
      %v1294 = vpop.f32.mrf.mxu0
      %v1295 = vadd.f32 0.0, %v1294
      %v1296 = vpop.f32.mrf.mxu0
      %v1297 = vadd.f32 0.0, %v1296
      %v1298 = vpop.f32.mrf.mxu0
      %v1299 = vadd.f32 0.0, %v1298
      %v1300 = vpop.f32.mrf.mxu0
      %v1301 = vadd.f32 0.0, %v1300
      %1302 = vdwg.mxu0
      %1303 = vmatprep.subr.bf16.mxu0 0
      %1304 = vmatpush1.bf16.msra.mxu0 0
      %1305 = vmatprep.subr.bf16.mxu0 0
      %1306 = vmatpush1.bf16.msra.mxu0 0
      %1307 = vmatprep.subr.bf16.mxu0 0
      %1308 = vmatpush1.bf16.msra.mxu0 0
      %1309 = vmatprep.subr.bf16.mxu0 0
      %1310 = vmatpush1.bf16.msra.mxu0 0
      %1311 = vmatprep.subr.bf16.mxu0 0
      %1312 = vmatpush1.bf16.msra.mxu0 0
      %1313 = vmatprep.subr.bf16.mxu0 0
      %1314 = vmatpush1.bf16.msra.mxu0 0
      %1315 = vmatprep.subr.bf16.mxu0 0
      %1316 = vmatpush1.bf16.msra.mxu0 0
      %1317 = vmatprep.subr.bf16.mxu0 %v1067
      %1318 = vmatpush1.bf16.msra.mxu0 %v1066
      %1319 = vmatprep.subr.bf16.mxu0 0
      %1320 = vmatpush2.bf16.msra.mxu0 0
      %1321 = vmatprep.subr.bf16.mxu0 0
      %1322 = vmatpush2.bf16.msra.mxu0 0
      %1323 = vmatprep.subr.bf16.mxu0 0
      %1324 = vmatpush2.bf16.msra.mxu0 0
      %1325 = vmatprep.subr.bf16.mxu0 0
      %1326 = vmatpush2.bf16.msra.mxu0 0
      %1327 = vmatprep.subr.bf16.mxu0 0
      %1328 = vmatpush2.bf16.msra.mxu0 0
      %1329 = vmatprep.subr.bf16.mxu0 0
      %1330 = vmatpush2.bf16.msra.mxu0 0
      %1331 = vmatprep.subr.bf16.mxu0 0
      %1332 = vmatpush2.bf16.msra.mxu0 0
      %1333 = vmatprep.subr.bf16.mxu0 0
      %1334 = vmatpush2.bf16.msra.mxu0 0
      %1335 = vmatprep.mubr.bf16.mxu0 0
      %1336 = vmatmul.mubr.bf16.gmra.mxu0 %v1086
      %v1337 = vpop.f32.mrf.mxu0
      %v1338 = vadd.f32 0.0, %v1337
      %v1339 = vpop.f32.mrf.mxu0
      %v1340 = vadd.f32 0.0, %v1339
      %v1341 = vpop.f32.mrf.mxu0
      %v1342 = vadd.f32 0.0, %v1341
      %v1343 = vpop.f32.mrf.mxu0
      %v1344 = vadd.f32 0.0, %v1343
      %1345 = vmatprep.mubr.bf16.mxu0 0
      %1346 = vmatmul.mubr.bf16.gmra.mxu0 %v1089
      %v1347 = vpop.f32.mrf.mxu0
      %v1348 = vadd.f32 0.0, %v1347
      %v1349 = vpop.f32.mrf.mxu0
      %v1350 = vadd.f32 0.0, %v1349
      %v1351 = vpop.f32.mrf.mxu0
      %v1352 = vadd.f32 0.0, %v1351
      %v1353 = vpop.f32.mrf.mxu0
      %v1354 = vadd.f32 0.0, %v1353
      %1355 = vdwg.mxu0
      %1356 = vmatprep.subr.bf16.mxu0 0
      %1357 = vmatpush1.bf16.msra.mxu0 0
      %1358 = vmatprep.subr.bf16.mxu0 0
      %1359 = vmatpush1.bf16.msra.mxu0 0
      %1360 = vmatprep.subr.bf16.mxu0 0
      %1361 = vmatpush1.bf16.msra.mxu0 0
      %1362 = vmatprep.subr.bf16.mxu0 0
      %1363 = vmatpush1.bf16.msra.mxu0 0
      %1364 = vmatprep.subr.bf16.mxu0 0
      %1365 = vmatpush1.bf16.msra.mxu0 0
      %1366 = vmatprep.subr.bf16.mxu0 0
      %1367 = vmatpush1.bf16.msra.mxu0 0
      %1368 = vmatprep.subr.bf16.mxu0 0
      %1369 = vmatpush1.bf16.msra.mxu0 0
      %1370 = vmatprep.subr.bf16.mxu0 %v1069
      %1371 = vmatpush1.bf16.msra.mxu0 %v1068
      %1372 = vmatprep.subr.bf16.mxu0 0
      %1373 = vmatpush2.bf16.msra.mxu0 0
      %1374 = vmatprep.subr.bf16.mxu0 0
      %1375 = vmatpush2.bf16.msra.mxu0 0
      %1376 = vmatprep.subr.bf16.mxu0 0
      %1377 = vmatpush2.bf16.msra.mxu0 0
      %1378 = vmatprep.subr.bf16.mxu0 0
      %1379 = vmatpush2.bf16.msra.mxu0 0
      %1380 = vmatprep.subr.bf16.mxu0 0
      %1381 = vmatpush2.bf16.msra.mxu0 0
      %1382 = vmatprep.subr.bf16.mxu0 0
      %1383 = vmatpush2.bf16.msra.mxu0 0
      %1384 = vmatprep.subr.bf16.mxu0 0
      %1385 = vmatpush2.bf16.msra.mxu0 0
      %1386 = vmatprep.subr.bf16.mxu0 0
      %1387 = vmatpush2.bf16.msra.mxu0 0
      %1388 = vmatprep.mubr.bf16.mxu0 0
      %1389 = vmatmul.mubr.bf16.gmra.mxu0 %v1086
      %v1390 = vpop.f32.mrf.mxu0
      %v1391 = vadd.f32 0.0, %v1390
      %v1392 = vpop.f32.mrf.mxu0
      %v1393 = vadd.f32 0.0, %v1392
      %v1394 = vpop.f32.mrf.mxu0
      %v1395 = vadd.f32 0.0, %v1394
      %v1396 = vpop.f32.mrf.mxu0
      %v1397 = vadd.f32 0.0, %v1396
      %1398 = vmatprep.mubr.bf16.mxu0 0
      %1399 = vmatmul.mubr.bf16.gmra.mxu0 %v1089
      %v1400 = vpop.f32.mrf.mxu0
      %v1401 = vadd.f32 0.0, %v1400
      %v1402 = vpop.f32.mrf.mxu0
      %v1403 = vadd.f32 0.0, %v1402
      %v1404 = vpop.f32.mrf.mxu0
      %v1405 = vadd.f32 0.0, %v1404
      %v1406 = vpop.f32.mrf.mxu0
      %v1407 = vadd.f32 0.0, %v1406
      %1408 = vdwg.mxu0
      %1409 = vmatprep.subr.bf16.mxu0 0
      %1410 = vmatpush1.bf16.msra.mxu0 0
      %1411 = vmatprep.subr.bf16.mxu0 0
      %1412 = vmatpush1.bf16.msra.mxu0 0
      %1413 = vmatprep.subr.bf16.mxu0 0
      %1414 = vmatpush1.bf16.msra.mxu0 0
      %1415 = vmatprep.subr.bf16.mxu0 0
      %1416 = vmatpush1.bf16.msra.mxu0 0
      %1417 = vmatprep.subr.bf16.mxu0 0
      %1418 = vmatpush1.bf16.msra.mxu0 0
      %1419 = vmatprep.subr.bf16.mxu0 0
      %1420 = vmatpush1.bf16.msra.mxu0 0
      %1421 = vmatprep.subr.bf16.mxu0 0
      %1422 = vmatpush1.bf16.msra.mxu0 0
      %1423 = vmatprep.subr.bf16.mxu0 %v1071
      %1424 = vmatpush1.bf16.msra.mxu0 %v1070
      %1425 = vmatprep.subr.bf16.mxu0 0
      %1426 = vmatpush2.bf16.msra.mxu0 0
      %1427 = vmatprep.subr.bf16.mxu0 0
      %1428 = vmatpush2.bf16.msra.mxu0 0
      %1429 = vmatprep.subr.bf16.mxu0 0
      %1430 = vmatpush2.bf16.msra.mxu0 0
      %1431 = vmatprep.subr.bf16.mxu0 0
      %1432 = vmatpush2.bf16.msra.mxu0 0
      %1433 = vmatprep.subr.bf16.mxu0 0
      %1434 = vmatpush2.bf16.msra.mxu0 0
      %1435 = vmatprep.subr.bf16.mxu0 0
      %1436 = vmatpush2.bf16.msra.mxu0 0
      %1437 = vmatprep.subr.bf16.mxu0 0
      %1438 = vmatpush2.bf16.msra.mxu0 0
      %1439 = vmatprep.subr.bf16.mxu0 0
      %1440 = vmatpush2.bf16.msra.mxu0 0
      %1441 = vmatprep.mubr.bf16.mxu0 0
      %1442 = vmatmul.mubr.bf16.gmra.mxu0 %v1086
      %v1443 = vpop.f32.mrf.mxu0
      %v1444 = vadd.f32 0.0, %v1443
      %v1445 = vpop.f32.mrf.mxu0
      %v1446 = vadd.f32 0.0, %v1445
      %v1447 = vpop.f32.mrf.mxu0
      %v1448 = vadd.f32 0.0, %v1447
      %v1449 = vpop.f32.mrf.mxu0
      %v1450 = vadd.f32 0.0, %v1449
      %1451 = vmatprep.mubr.bf16.mxu0 0
      %1452 = vmatmul.mubr.bf16.gmra.mxu0 %v1089
      %v1453 = vpop.f32.mrf.mxu0
      %v1454 = vadd.f32 0.0, %v1453
      %v1455 = vpop.f32.mrf.mxu0
      %v1456 = vadd.f32 0.0, %v1455
      %v1457 = vpop.f32.mrf.mxu0
      %v1458 = vadd.f32 0.0, %v1457
      %v1459 = vpop.f32.mrf.mxu0
      %v1460 = vadd.f32 0.0, %v1459
      %1461 = vdwg.mxu0
      %1462 = vmatprep.subr.bf16.mxu0 0
      %1463 = vmatpush1.bf16.msra.mxu0 0
      %1464 = vmatprep.subr.bf16.mxu0 0
      %1465 = vmatpush1.bf16.msra.mxu0 0
      %1466 = vmatprep.subr.bf16.mxu0 0
      %1467 = vmatpush1.bf16.msra.mxu0 0
      %1468 = vmatprep.subr.bf16.mxu0 0
      %1469 = vmatpush1.bf16.msra.mxu0 0
      %1470 = vmatprep.subr.bf16.mxu0 0
      %1471 = vmatpush1.bf16.msra.mxu0 0
      %1472 = vmatprep.subr.bf16.mxu0 0
      %1473 = vmatpush1.bf16.msra.mxu0 0
      %1474 = vmatprep.subr.bf16.mxu0 0
      %1475 = vmatpush1.bf16.msra.mxu0 0
      %1476 = vmatprep.subr.bf16.mxu0 %v1073
      %1477 = vmatpush1.bf16.msra.mxu0 %v1072
      %1478 = vmatprep.subr.bf16.mxu0 0
      %1479 = vmatpush2.bf16.msra.mxu0 0
      %1480 = vmatprep.subr.bf16.mxu0 0
      %1481 = vmatpush2.bf16.msra.mxu0 0
      %1482 = vmatprep.subr.bf16.mxu0 0
      %1483 = vmatpush2.bf16.msra.mxu0 0
      %1484 = vmatprep.subr.bf16.mxu0 0
      %1485 = vmatpush2.bf16.msra.mxu0 0
      %1486 = vmatprep.subr.bf16.mxu0 0
      %1487 = vmatpush2.bf16.msra.mxu0 0
      %1488 = vmatprep.subr.bf16.mxu0 0
      %1489 = vmatpush2.bf16.msra.mxu0 0
      %1490 = vmatprep.subr.bf16.mxu0 0
      %1491 = vmatpush2.bf16.msra.mxu0 0
      %1492 = vmatprep.subr.bf16.mxu0 0
      %1493 = vmatpush2.bf16.msra.mxu0 0
      %1494 = vmatprep.mubr.bf16.mxu0 0
      %1495 = vmatmul.mubr.bf16.gmra.mxu0 %v1086
      %v1496 = vpop.f32.mrf.mxu0
      %v1497 = vadd.f32 0.0, %v1496
      %v1498 = vpop.f32.mrf.mxu0
      %v1499 = vadd.f32 0.0, %v1498
      %v1500 = vpop.f32.mrf.mxu0
      %v1501 = vadd.f32 0.0, %v1500
      %v1502 = vpop.f32.mrf.mxu0
      %v1503 = vadd.f32 0.0, %v1502
      %1504 = vmatprep.mubr.bf16.mxu0 0
      %1505 = vmatmul.mubr.bf16.gmra.mxu0 %v1089
      %v1506 = vpop.f32.mrf.mxu0
      %v1507 = vadd.f32 0.0, %v1506
      %v1508 = vpop.f32.mrf.mxu0
      %v1509 = vadd.f32 0.0, %v1508
      %v1510 = vpop.f32.mrf.mxu0
      %v1511 = vadd.f32 0.0, %v1510
      %v1512 = vpop.f32.mrf.mxu0
      %v1513 = vadd.f32 0.0, %v1512
      %1514 = vdwg.mxu0
      %v1515 = vmul.f32 %v1126, %v1126
      %v1516 = vmul.f32 %v1128, %v1128
      %v1517 = vmul.f32 %v1130, %v1130
      %v1518 = vmul.f32 %v1132, %v1132
      %v1519 = vmul.f32 %v1136, %v1136
      %v1520 = vmul.f32 %v1138, %v1138
      %v1521 = vmul.f32 %v1140, %v1140
      %v1522 = vmul.f32 %v1142, %v1142
      %v1523 = vmul.f32 %v1179, %v1179
      %v1524 = vmul.f32 %v1181, %v1181
      %v1525 = vmul.f32 %v1183, %v1183
      %v1526 = vmul.f32 %v1185, %v1185
      %v1527 = vmul.f32 %v1189, %v1189
      %v1528 = vmul.f32 %v1191, %v1191
      %v1529 = vmul.f32 %v1193, %v1193
      %v1530 = vmul.f32 %v1195, %v1195
      %v1531 = vmul.f32 %v1232, %v1232
      %v1532 = vmul.f32 %v1234, %v1234
      %v1533 = vmul.f32 %v1236, %v1236
      %v1534 = vmul.f32 %v1238, %v1238
      %v1535 = vmul.f32 %v1242, %v1242
      %v1536 = vmul.f32 %v1244, %v1244
      %v1537 = vmul.f32 %v1246, %v1246
      %v1538 = vmul.f32 %v1248, %v1248
      %v1539 = vmul.f32 %v1285, %v1285
      %v1540 = vmul.f32 %v1287, %v1287
      %v1541 = vmul.f32 %v1289, %v1289
      %v1542 = vmul.f32 %v1291, %v1291
      %v1543 = vmul.f32 %v1295, %v1295
      %v1544 = vmul.f32 %v1297, %v1297
      %v1545 = vmul.f32 %v1299, %v1299
      %v1546 = vmul.f32 %v1301, %v1301
      %v1547 = vmul.f32 %v1338, %v1338
      %v1548 = vmul.f32 %v1340, %v1340
      %v1549 = vmul.f32 %v1342, %v1342
      %v1550 = vmul.f32 %v1344, %v1344
      %v1551 = vmul.f32 %v1348, %v1348
      %v1552 = vmul.f32 %v1350, %v1350
      %v1553 = vmul.f32 %v1352, %v1352
      %v1554 = vmul.f32 %v1354, %v1354
      %v1555 = vmul.f32 %v1391, %v1391
      %v1556 = vmul.f32 %v1393, %v1393
      %v1557 = vmul.f32 %v1395, %v1395
      %v1558 = vmul.f32 %v1397, %v1397
      %v1559 = vmul.f32 %v1401, %v1401
      %v1560 = vmul.f32 %v1403, %v1403
      %v1561 = vmul.f32 %v1405, %v1405
      %v1562 = vmul.f32 %v1407, %v1407
      %v1563 = vmul.f32 %v1444, %v1444
      %v1564 = vmul.f32 %v1446, %v1446
      %v1565 = vmul.f32 %v1448, %v1448
      %v1566 = vmul.f32 %v1450, %v1450
      %v1567 = vmul.f32 %v1454, %v1454
      %v1568 = vmul.f32 %v1456, %v1456
      %v1569 = vmul.f32 %v1458, %v1458
      %v1570 = vmul.f32 %v1460, %v1460
      %v1571 = vmul.f32 %v1497, %v1497
      %v1572 = vmul.f32 %v1499, %v1499
      %v1573 = vmul.f32 %v1501, %v1501
      %v1574 = vmul.f32 %v1503, %v1503
      %v1575 = vmul.f32 %v1507, %v1507
      %v1576 = vmul.f32 %v1509, %v1509
      %v1577 = vmul.f32 %v1511, %v1511
      %v1578 = vmul.f32 %v1513, %v1513
      %v1579 = vld [vmem:[%s3] sm:$0x3]
      %v1580 = vpack.c.bf16 %v1517, %v1515
      %v1581 = vpack.c.bf16 %v1518, %v1516
      %v1582 = vpack.c.bf16 %v1521, %v1519
      %v1583 = vpack.c.bf16 %v1522, %v1520
      %v1584 = vpack.c.bf16 %v1525, %v1523
      %v1585 = vpack.c.bf16 %v1526, %v1524
      %v1586 = vpack.c.bf16 %v1529, %v1527
      %v1587 = vpack.c.bf16 %v1530, %v1528
      %v1588 = vpack.c.bf16 %v1533, %v1531
      %v1589 = vpack.c.bf16 %v1534, %v1532
      %v1590 = vpack.c.bf16 %v1537, %v1535
      %v1591 = vpack.c.bf16 %v1538, %v1536
      %v1592 = vpack.c.bf16 %v1541, %v1539
      %v1593 = vpack.c.bf16 %v1542, %v1540
      %v1594 = vpack.c.bf16 %v1545, %v1543
      %v1595 = vpack.c.bf16 %v1546, %v1544
      %v1596 = vpack.c.bf16 %v1549, %v1547
      %v1597 = vpack.c.bf16 %v1550, %v1548
      %v1598 = vpack.c.bf16 %v1553, %v1551
      %v1599 = vpack.c.bf16 %v1554, %v1552
      %v1600 = vpack.c.bf16 %v1557, %v1555
      %v1601 = vpack.c.bf16 %v1558, %v1556
      %v1602 = vpack.c.bf16 %v1561, %v1559
      %v1603 = vpack.c.bf16 %v1562, %v1560
      %v1604 = vpack.c.bf16 %v1565, %v1563
      %v1605 = vpack.c.bf16 %v1566, %v1564
      %v1606 = vpack.c.bf16 %v1569, %v1567
      %v1607 = vpack.c.bf16 %v1570, %v1568
      %v1608 = vpack.c.bf16 %v1573, %v1571
      %v1609 = vpack.c.bf16 %v1574, %v1572
      %v1610 = vpack.c.bf16 %v1577, %v1575
      %v1611 = vpack.c.bf16 %v1578, %v1576
      %vm1612 = vcmask 261120
      %v1614 = vsel %vm1612, %v1579, 0
      %1616 = vmatprep.subr.bf16.mxu0 0
      %1617 = vmatpush1.bf16.msra.mxu0 0
      %1618 = vmatprep.subr.bf16.mxu0 0
      %1619 = vmatpush1.bf16.msra.mxu0 0
      %1620 = vmatprep.subr.bf16.mxu0 0
      %1621 = vmatpush1.bf16.msra.mxu0 0
      %1622 = vmatprep.subr.bf16.mxu0 0
      %1623 = vmatpush1.bf16.msra.mxu0 0
      %1624 = vmatprep.subr.bf16.mxu0 0
      %1625 = vmatpush1.bf16.msra.mxu0 0
      %1626 = vmatprep.subr.bf16.mxu0 0
      %1627 = vmatpush1.bf16.msra.mxu0 0
      %1628 = vmatprep.subr.bf16.mxu0 %v1583
      %1629 = vmatpush1.bf16.msra.mxu0 %v1582
      %1630 = vmatprep.subr.bf16.mxu0 %v1581
      %1631 = vmatpush1.bf16.msra.mxu0 %v1580
      %1632 = vmatprep.subr.bf16.mxu0 0
      %1633 = vmatpush2.bf16.msra.mxu0 0
      %1634 = vmatprep.subr.bf16.mxu0 0
      %1635 = vmatpush2.bf16.msra.mxu0 0
      %1636 = vmatprep.subr.bf16.mxu0 0
      %1637 = vmatpush2.bf16.msra.mxu0 0
      %1638 = vmatprep.subr.bf16.mxu0 0
      %1639 = vmatpush2.bf16.msra.mxu0 0
      %1640 = vmatprep.subr.bf16.mxu0 0
      %1641 = vmatpush2.bf16.msra.mxu0 0
      %1642 = vmatprep.subr.bf16.mxu0 0
      %1643 = vmatpush2.bf16.msra.mxu0 0
      %1644 = vmatprep.subr.bf16.mxu0 0
      %1645 = vmatpush2.bf16.msra.mxu0 0
      %1646 = vmatprep.subr.bf16.mxu0 0
      %1647 = vmatpush2.bf16.msra.mxu0 0
      %1648 = vmatprep.mubr.bf16.mxu0 0
      %1649 = vmatmul.mubr.bf16.gmra.mxu0 %v1614
      %v1650 = vpop.f32.mrf.mxu0
      %v1651 = vadd.f32 0.0, %v1650
      %v1652 = vpop.f32.mrf.mxu0
      %v1653 = vadd.f32 0.0, %v1652
      %v1654 = vpop.f32.mrf.mxu0
      %v1655 = vpop.f32.mrf.mxu0
      %1656 = vdwg.mxu0
      %1657 = vmatprep.subr.bf16.mxu0 0
      %1658 = vmatpush1.bf16.msra.mxu0 0
      %1659 = vmatprep.subr.bf16.mxu0 0
      %1660 = vmatpush1.bf16.msra.mxu0 0
      %1661 = vmatprep.subr.bf16.mxu0 0
      %1662 = vmatpush1.bf16.msra.mxu0 0
      %1663 = vmatprep.subr.bf16.mxu0 0
      %1664 = vmatpush1.bf16.msra.mxu0 0
      %1665 = vmatprep.subr.bf16.mxu0 0
      %1666 = vmatpush1.bf16.msra.mxu0 0
      %1667 = vmatprep.subr.bf16.mxu0 0
      %1668 = vmatpush1.bf16.msra.mxu0 0
      %1669 = vmatprep.subr.bf16.mxu0 %v1587
      %1670 = vmatpush1.bf16.msra.mxu0 %v1586
      %1671 = vmatprep.subr.bf16.mxu0 %v1585
      %1672 = vmatpush1.bf16.msra.mxu0 %v1584
      %1673 = vmatprep.subr.bf16.mxu0 0
      %1674 = vmatpush2.bf16.msra.mxu0 0
      %1675 = vmatprep.subr.bf16.mxu0 0
      %1676 = vmatpush2.bf16.msra.mxu0 0
      %1677 = vmatprep.subr.bf16.mxu0 0
      %1678 = vmatpush2.bf16.msra.mxu0 0
      %1679 = vmatprep.subr.bf16.mxu0 0
      %1680 = vmatpush2.bf16.msra.mxu0 0
      %1681 = vmatprep.subr.bf16.mxu0 0
      %1682 = vmatpush2.bf16.msra.mxu0 0
      %1683 = vmatprep.subr.bf16.mxu0 0
      %1684 = vmatpush2.bf16.msra.mxu0 0
      %1685 = vmatprep.subr.bf16.mxu0 0
      %1686 = vmatpush2.bf16.msra.mxu0 0
      %1687 = vmatprep.subr.bf16.mxu0 0
      %1688 = vmatpush2.bf16.msra.mxu0 0
      %1689 = vmatprep.mubr.bf16.mxu0 0
      %1690 = vmatmul.mubr.bf16.gmra.mxu0 %v1614
      %v1691 = vpop.f32.mrf.mxu0
      %v1692 = vadd.f32 0.0, %v1691
      %v1693 = vpop.f32.mrf.mxu0
      %v1694 = vadd.f32 0.0, %v1693
      %v1695 = vpop.f32.mrf.mxu0
      %v1696 = vpop.f32.mrf.mxu0
      %1697 = vdwg.mxu0
      %1698 = vmatprep.subr.bf16.mxu0 0
      %1699 = vmatpush1.bf16.msra.mxu0 0
      %1700 = vmatprep.subr.bf16.mxu0 0
      %1701 = vmatpush1.bf16.msra.mxu0 0
      %1702 = vmatprep.subr.bf16.mxu0 0
      %1703 = vmatpush1.bf16.msra.mxu0 0
      %1704 = vmatprep.subr.bf16.mxu0 0
      %1705 = vmatpush1.bf16.msra.mxu0 0
      %1706 = vmatprep.subr.bf16.mxu0 0
      %1707 = vmatpush1.bf16.msra.mxu0 0
      %1708 = vmatprep.subr.bf16.mxu0 0
      %1709 = vmatpush1.bf16.msra.mxu0 0
      %1710 = vmatprep.subr.bf16.mxu0 %v1591
      %1711 = vmatpush1.bf16.msra.mxu0 %v1590
      %1712 = vmatprep.subr.bf16.mxu0 %v1589
      %1713 = vmatpush1.bf16.msra.mxu0 %v1588
      %1714 = vmatprep.subr.bf16.mxu0 0
      %1715 = vmatpush2.bf16.msra.mxu0 0
      %1716 = vmatprep.subr.bf16.mxu0 0
      %1717 = vmatpush2.bf16.msra.mxu0 0
      %1718 = vmatprep.subr.bf16.mxu0 0
      %1719 = vmatpush2.bf16.msra.mxu0 0
      %1720 = vmatprep.subr.bf16.mxu0 0
      %1721 = vmatpush2.bf16.msra.mxu0 0
      %1722 = vmatprep.subr.bf16.mxu0 0
      %1723 = vmatpush2.bf16.msra.mxu0 0
      %1724 = vmatprep.subr.bf16.mxu0 0
      %1725 = vmatpush2.bf16.msra.mxu0 0
      %1726 = vmatprep.subr.bf16.mxu0 0
      %1727 = vmatpush2.bf16.msra.mxu0 0
      %1728 = vmatprep.subr.bf16.mxu0 0
      %1729 = vmatpush2.bf16.msra.mxu0 0
      %1730 = vmatprep.mubr.bf16.mxu0 0
      %1731 = vmatmul.mubr.bf16.gmra.mxu0 %v1614
      %v1732 = vpop.f32.mrf.mxu0
      %v1733 = vadd.f32 0.0, %v1732
      %v1734 = vpop.f32.mrf.mxu0
      %v1735 = vadd.f32 0.0, %v1734
      %v1736 = vpop.f32.mrf.mxu0
      %v1737 = vpop.f32.mrf.mxu0
      %1738 = vdwg.mxu0
      %1739 = vmatprep.subr.bf16.mxu0 0
      %1740 = vmatpush1.bf16.msra.mxu0 0
      %1741 = vmatprep.subr.bf16.mxu0 0
      %1742 = vmatpush1.bf16.msra.mxu0 0
      %1743 = vmatprep.subr.bf16.mxu0 0
      %1744 = vmatpush1.bf16.msra.mxu0 0
      %1745 = vmatprep.subr.bf16.mxu0 0
      %1746 = vmatpush1.bf16.msra.mxu0 0
      %1747 = vmatprep.subr.bf16.mxu0 0
      %1748 = vmatpush1.bf16.msra.mxu0 0
      %1749 = vmatprep.subr.bf16.mxu0 0
      %1750 = vmatpush1.bf16.msra.mxu0 0
      %1751 = vmatprep.subr.bf16.mxu0 %v1595
      %1752 = vmatpush1.bf16.msra.mxu0 %v1594
      %1753 = vmatprep.subr.bf16.mxu0 %v1593
      %1754 = vmatpush1.bf16.msra.mxu0 %v1592
      %1755 = vmatprep.subr.bf16.mxu0 0
      %1756 = vmatpush2.bf16.msra.mxu0 0
      %1757 = vmatprep.subr.bf16.mxu0 0
      %1758 = vmatpush2.bf16.msra.mxu0 0
      %1759 = vmatprep.subr.bf16.mxu0 0
      %1760 = vmatpush2.bf16.msra.mxu0 0
      %1761 = vmatprep.subr.bf16.mxu0 0
      %1762 = vmatpush2.bf16.msra.mxu0 0
      %1763 = vmatprep.subr.bf16.mxu0 0
      %1764 = vmatpush2.bf16.msra.mxu0 0
      %1765 = vmatprep.subr.bf16.mxu0 0
      %1766 = vmatpush2.bf16.msra.mxu0 0
      %1767 = vmatprep.subr.bf16.mxu0 0
      %1768 = vmatpush2.bf16.msra.mxu0 0
      %1769 = vmatprep.subr.bf16.mxu0 0
      %1770 = vmatpush2.bf16.msra.mxu0 0
      %1771 = vmatprep.mubr.bf16.mxu0 0
      %1772 = vmatmul.mubr.bf16.gmra.mxu0 %v1614
      %v1773 = vpop.f32.mrf.mxu0
      %v1774 = vadd.f32 0.0, %v1773
      %v1775 = vpop.f32.mrf.mxu0
      %v1776 = vadd.f32 0.0, %v1775
      %v1777 = vpop.f32.mrf.mxu0
      %v1778 = vpop.f32.mrf.mxu0
      %1779 = vdwg.mxu0
      %1780 = vmatprep.subr.bf16.mxu0 0
      %1781 = vmatpush1.bf16.msra.mxu0 0
      %1782 = vmatprep.subr.bf16.mxu0 0
      %1783 = vmatpush1.bf16.msra.mxu0 0
      %1784 = vmatprep.subr.bf16.mxu0 0
      %1785 = vmatpush1.bf16.msra.mxu0 0
      %1786 = vmatprep.subr.bf16.mxu0 0
      %1787 = vmatpush1.bf16.msra.mxu0 0
      %1788 = vmatprep.subr.bf16.mxu0 0
      %1789 = vmatpush1.bf16.msra.mxu0 0
      %1790 = vmatprep.subr.bf16.mxu0 0
      %1791 = vmatpush1.bf16.msra.mxu0 0
      %1792 = vmatprep.subr.bf16.mxu0 %v1599
      %1793 = vmatpush1.bf16.msra.mxu0 %v1598
      %1794 = vmatprep.subr.bf16.mxu0 %v1597
      %1795 = vmatpush1.bf16.msra.mxu0 %v1596
      %1796 = vmatprep.subr.bf16.mxu0 0
      %1797 = vmatpush2.bf16.msra.mxu0 0
      %1798 = vmatprep.subr.bf16.mxu0 0
      %1799 = vmatpush2.bf16.msra.mxu0 0
      %1800 = vmatprep.subr.bf16.mxu0 0
      %1801 = vmatpush2.bf16.msra.mxu0 0
      %1802 = vmatprep.subr.bf16.mxu0 0
      %1803 = vmatpush2.bf16.msra.mxu0 0
      %1804 = vmatprep.subr.bf16.mxu0 0
      %1805 = vmatpush2.bf16.msra.mxu0 0
      %1806 = vmatprep.subr.bf16.mxu0 0
      %1807 = vmatpush2.bf16.msra.mxu0 0
      %1808 = vmatprep.subr.bf16.mxu0 0
      %1809 = vmatpush2.bf16.msra.mxu0 0
      %1810 = vmatprep.subr.bf16.mxu0 0
      %1811 = vmatpush2.bf16.msra.mxu0 0
      %1812 = vmatprep.mubr.bf16.mxu0 0
      %1813 = vmatmul.mubr.bf16.gmra.mxu0 %v1614
      %v1814 = vpop.f32.mrf.mxu0
      %v1815 = vadd.f32 0.0, %v1814
      %v1816 = vpop.f32.mrf.mxu0
      %v1817 = vadd.f32 0.0, %v1816
      %v1818 = vpop.f32.mrf.mxu0
      %v1819 = vpop.f32.mrf.mxu0
      %1820 = vdwg.mxu0
      %1821 = vmatprep.subr.bf16.mxu0 0
      %1822 = vmatpush1.bf16.msra.mxu0 0
      %1823 = vmatprep.subr.bf16.mxu0 0
      %1824 = vmatpush1.bf16.msra.mxu0 0
      %1825 = vmatprep.subr.bf16.mxu0 0
      %1826 = vmatpush1.bf16.msra.mxu0 0
      %1827 = vmatprep.subr.bf16.mxu0 0
      %1828 = vmatpush1.bf16.msra.mxu0 0
      %1829 = vmatprep.subr.bf16.mxu0 0
      %1830 = vmatpush1.bf16.msra.mxu0 0
      %1831 = vmatprep.subr.bf16.mxu0 0
      %1832 = vmatpush1.bf16.msra.mxu0 0
      %1833 = vmatprep.subr.bf16.mxu0 %v1603
      %1834 = vmatpush1.bf16.msra.mxu0 %v1602
      %1835 = vmatprep.subr.bf16.mxu0 %v1601
      %1836 = vmatpush1.bf16.msra.mxu0 %v1600
      %1837 = vmatprep.subr.bf16.mxu0 0
      %1838 = vmatpush2.bf16.msra.mxu0 0
      %1839 = vmatprep.subr.bf16.mxu0 0
      %1840 = vmatpush2.bf16.msra.mxu0 0
      %1841 = vmatprep.subr.bf16.mxu0 0
      %1842 = vmatpush2.bf16.msra.mxu0 0
      %1843 = vmatprep.subr.bf16.mxu0 0
      %1844 = vmatpush2.bf16.msra.mxu0 0
      %1845 = vmatprep.subr.bf16.mxu0 0
      %1846 = vmatpush2.bf16.msra.mxu0 0
      %1847 = vmatprep.subr.bf16.mxu0 0
      %1848 = vmatpush2.bf16.msra.mxu0 0
      %1849 = vmatprep.subr.bf16.mxu0 0
      %1850 = vmatpush2.bf16.msra.mxu0 0
      %1851 = vmatprep.subr.bf16.mxu0 0
      %1852 = vmatpush2.bf16.msra.mxu0 0
      %1853 = vmatprep.mubr.bf16.mxu0 0
      %1854 = vmatmul.mubr.bf16.gmra.mxu0 %v1614
      %v1855 = vpop.f32.mrf.mxu0
      %v1856 = vadd.f32 0.0, %v1855
      %v1857 = vpop.f32.mrf.mxu0
      %v1858 = vadd.f32 0.0, %v1857
      %v1859 = vpop.f32.mrf.mxu0
      %v1860 = vpop.f32.mrf.mxu0
      %1861 = vdwg.mxu0
      %1862 = vmatprep.subr.bf16.mxu0 0
      %1863 = vmatpush1.bf16.msra.mxu0 0
      %1864 = vmatprep.subr.bf16.mxu0 0
      %1865 = vmatpush1.bf16.msra.mxu0 0
      %1866 = vmatprep.subr.bf16.mxu0 0
      %1867 = vmatpush1.bf16.msra.mxu0 0
      %1868 = vmatprep.subr.bf16.mxu0 0
      %1869 = vmatpush1.bf16.msra.mxu0 0
      %1870 = vmatprep.subr.bf16.mxu0 0
      %1871 = vmatpush1.bf16.msra.mxu0 0
      %1872 = vmatprep.subr.bf16.mxu0 0
      %1873 = vmatpush1.bf16.msra.mxu0 0
      %1874 = vmatprep.subr.bf16.mxu0 %v1607
      %1875 = vmatpush1.bf16.msra.mxu0 %v1606
      %1876 = vmatprep.subr.bf16.mxu0 %v1605
      %1877 = vmatpush1.bf16.msra.mxu0 %v1604
      %1878 = vmatprep.subr.bf16.mxu0 0
      %1879 = vmatpush2.bf16.msra.mxu0 0
      %1880 = vmatprep.subr.bf16.mxu0 0
      %1881 = vmatpush2.bf16.msra.mxu0 0
      %1882 = vmatprep.subr.bf16.mxu0 0
      %1883 = vmatpush2.bf16.msra.mxu0 0
      %1884 = vmatprep.subr.bf16.mxu0 0
      %1885 = vmatpush2.bf16.msra.mxu0 0
      %1886 = vmatprep.subr.bf16.mxu0 0
      %1887 = vmatpush2.bf16.msra.mxu0 0
      %1888 = vmatprep.subr.bf16.mxu0 0
      %1889 = vmatpush2.bf16.msra.mxu0 0
      %1890 = vmatprep.subr.bf16.mxu0 0
      %1891 = vmatpush2.bf16.msra.mxu0 0
      %1892 = vmatprep.subr.bf16.mxu0 0
      %1893 = vmatpush2.bf16.msra.mxu0 0
      %1894 = vmatprep.mubr.bf16.mxu0 0
      %1895 = vmatmul.mubr.bf16.gmra.mxu0 %v1614
      %v1896 = vpop.f32.mrf.mxu0
      %v1897 = vadd.f32 0.0, %v1896
      %v1898 = vpop.f32.mrf.mxu0
      %v1899 = vadd.f32 0.0, %v1898
      %v1900 = vpop.f32.mrf.mxu0
      %v1901 = vpop.f32.mrf.mxu0
      %1902 = vdwg.mxu0
      %1903 = vmatprep.subr.bf16.mxu0 0
      %1904 = vmatpush1.bf16.msra.mxu0 0
      %1905 = vmatprep.subr.bf16.mxu0 0
      %1906 = vmatpush1.bf16.msra.mxu0 0
      %1907 = vmatprep.subr.bf16.mxu0 0
      %1908 = vmatpush1.bf16.msra.mxu0 0
      %1909 = vmatprep.subr.bf16.mxu0 0
      %1910 = vmatpush1.bf16.msra.mxu0 0
      %1911 = vmatprep.subr.bf16.mxu0 0
      %1912 = vmatpush1.bf16.msra.mxu0 0
      %1913 = vmatprep.subr.bf16.mxu0 0
      %1914 = vmatpush1.bf16.msra.mxu0 0
      %1915 = vmatprep.subr.bf16.mxu0 %v1611
      %1916 = vmatpush1.bf16.msra.mxu0 %v1610
      %1917 = vmatprep.subr.bf16.mxu0 %v1609
      %1918 = vmatpush1.bf16.msra.mxu0 %v1608
      %1919 = vmatprep.subr.bf16.mxu0 0
      %1920 = vmatpush2.bf16.msra.mxu0 0
      %1921 = vmatprep.subr.bf16.mxu0 0
      %1922 = vmatpush2.bf16.msra.mxu0 0
      %1923 = vmatprep.subr.bf16.mxu0 0
      %1924 = vmatpush2.bf16.msra.mxu0 0
      %1925 = vmatprep.subr.bf16.mxu0 0
      %1926 = vmatpush2.bf16.msra.mxu0 0
      %1927 = vmatprep.subr.bf16.mxu0 0
      %1928 = vmatpush2.bf16.msra.mxu0 0
      %1929 = vmatprep.subr.bf16.mxu0 0
      %1930 = vmatpush2.bf16.msra.mxu0 0
      %1931 = vmatprep.subr.bf16.mxu0 0
      %1932 = vmatpush2.bf16.msra.mxu0 0
      %1933 = vmatprep.subr.bf16.mxu0 0
      %1934 = vmatpush2.bf16.msra.mxu0 0
      %1935 = vmatprep.mubr.bf16.mxu0 0
      %1936 = vmatmul.mubr.bf16.gmra.mxu0 %v1614
      %v1937 = vpop.f32.mrf.mxu0
      %v1938 = vadd.f32 0.0, %v1937
      %v1939 = vpop.f32.mrf.mxu0
      %v1940 = vadd.f32 0.0, %v1939
      %v1941 = vpop.f32.mrf.mxu0
      %v1942 = vpop.f32.mrf.mxu0
      %1943 = vdwg.mxu0
      %v1960 = vcombine.low %v1651, %v1653
      %v1961 = vcombine.low %v1692, %v1694
      %v1962 = vcombine.low %v1733, %v1735
      %v1963 = vcombine.low %v1774, %v1776
      %v1964 = vcombine.low %v1815, %v1817
      %v1965 = vcombine.low %v1856, %v1858
      %v1966 = vcombine.low %v1897, %v1899
      %v1967 = vcombine.low %v1938, %v1940
      %vm1976 = vcmask 1043456
      %vm1977 = vcmask 556036
      %vm1978 = vmor %vm1977, %vm1976
      %1979 = vst.msk [vmem:[#allocation2] sm:$0xff] %vm1978, %v1960
      %1980 = vst.msk [vmem:[#allocation2 + $0x8] sm:$0xff] %vm1978, %v1961
      %1981 = vst.msk [vmem:[#allocation2 + $0x10] sm:$0xff] %vm1978, %v1962
      %1982 = vst.msk [vmem:[#allocation2 + $0x18] sm:$0xff] %vm1978, %v1963
      %1983 = vst.msk [vmem:[#allocation2 + $0x20] sm:$0xff] %vm1978, %v1964
      %1984 = vst.msk [vmem:[#allocation2 + $0x28] sm:$0xff] %vm1978, %v1965
      %1985 = vst.msk [vmem:[#allocation2 + $0x30] sm:$0xff] %vm1978, %v1966
      %1986 = vst.msk [vmem:[#allocation2 + $0x38] sm:$0xff] %vm1978, %v1967
      %v1987 = vld [vmem:[#allocation2] ss:$4 sm:$0x3]
      %s1988 = scalar_lea.vmem [#allocation2], 8
      %v1989 = vld [vmem:[%s1988] ss:$4 sm:$0x3]
      %s1990 = scalar_lea.vmem [#allocation2], 16
      %v1991 = vld [vmem:[%s1990] ss:$4 sm:$0x3]
      %s1992 = scalar_lea.vmem [#allocation2], 24
      %v1993 = vld [vmem:[%s1992] ss:$4 sm:$0x3]
      %s1994 = scalar_lea.vmem [#allocation2], 32
      %v1995 = vld [vmem:[%s1994] ss:$4 sm:$0x3]
      %s1996 = scalar_lea.vmem [#allocation2], 40
      %v1997 = vld [vmem:[%s1996] ss:$4 sm:$0x3]
      %s1998 = scalar_lea.vmem [#allocation2], 48
      %v1999 = vld [vmem:[%s1998] ss:$4 sm:$0x3]
      %s2000 = scalar_lea.vmem [#allocation2], 56
      %v2001 = vld [vmem:[%s2000] ss:$4 sm:$0x3]
      %v2010 = vlaneseq
      %v2011 = vshrl.u32 %v2010, 7
      %v2012 = vsub.s32 0, %v2011
      %v2013 = vrot.slane %v1987, %v2012
      %v2014 = vlaneseq
      %v2015 = vshrl.u32 %v2014, 7
      %v2016 = vsub.s32 1, %v2015
      %v2017 = vrot.slane %v1987, %v2016
      %v2018 = vlaneseq
      %v2019 = vshrl.u32 %v2018, 7
      %v2020 = vsub.s32 0, %v2019
      %v2021 = vrot.slane %v1989, %v2020
      %v2022 = vlaneseq
      %v2023 = vshrl.u32 %v2022, 7
      %v2024 = vsub.s32 1, %v2023
      %v2025 = vrot.slane %v1989, %v2024
      %v2026 = vlaneseq
      %v2027 = vshrl.u32 %v2026, 7
      %v2028 = vsub.s32 0, %v2027
      %v2029 = vrot.slane %v1991, %v2028
      %v2030 = vlaneseq
      %v2031 = vshrl.u32 %v2030, 7
      %v2032 = vsub.s32 1, %v2031
      %v2033 = vrot.slane %v1991, %v2032
      %v2034 = vlaneseq
      %v2035 = vshrl.u32 %v2034, 7
      %v2036 = vsub.s32 0, %v2035
      %v2037 = vrot.slane %v1993, %v2036
      %v2038 = vlaneseq
      %v2039 = vshrl.u32 %v2038, 7
      %v2040 = vsub.s32 1, %v2039
      %v2041 = vrot.slane %v1993, %v2040
      %v2042 = vlaneseq
      %v2043 = vshrl.u32 %v2042, 7
      %v2044 = vsub.s32 0, %v2043
      %v2045 = vrot.slane %v1995, %v2044
      %v2046 = vlaneseq
      %v2047 = vshrl.u32 %v2046, 7
      %v2048 = vsub.s32 1, %v2047
      %v2049 = vrot.slane %v1995, %v2048
      %v2050 = vlaneseq
      %v2051 = vshrl.u32 %v2050, 7
      %v2052 = vsub.s32 0, %v2051
      %v2053 = vrot.slane %v1997, %v2052
      %v2054 = vlaneseq
      %v2055 = vshrl.u32 %v2054, 7
      %v2056 = vsub.s32 1, %v2055
      %v2057 = vrot.slane %v1997, %v2056
      %v2058 = vlaneseq
      %v2059 = vshrl.u32 %v2058, 7
      %v2060 = vsub.s32 0, %v2059
      %v2061 = vrot.slane %v1999, %v2060
      %v2062 = vlaneseq
      %v2063 = vshrl.u32 %v2062, 7
      %v2064 = vsub.s32 1, %v2063
      %v2065 = vrot.slane %v1999, %v2064
      %v2066 = vlaneseq
      %v2067 = vshrl.u32 %v2066, 7
      %v2068 = vsub.s32 0, %v2067
      %v2069 = vrot.slane %v2001, %v2068
      %v2070 = vlaneseq
      %v2071 = vshrl.u32 %v2070, 7
      %v2072 = vsub.s32 1, %v2071
      %v2073 = vrot.slane %v2001, %v2072
      %v2090 = vpack.c.bf16 %v2013, %v2013
      %v2091 = vpack.c.bf16 %v2017, %v2017
      %v2092 = vpack.c.bf16 %v2021, %v2021
      %v2093 = vpack.c.bf16 %v2025, %v2025
      %v2094 = vpack.c.bf16 %v2029, %v2029
      %v2095 = vpack.c.bf16 %v2033, %v2033
      %v2096 = vpack.c.bf16 %v2037, %v2037
      %v2097 = vpack.c.bf16 %v2041, %v2041
      %v2098 = vpack.c.bf16 %v2045, %v2045
      %v2099 = vpack.c.bf16 %v2049, %v2049
      %v2100 = vpack.c.bf16 %v2053, %v2053
      %v2101 = vpack.c.bf16 %v2057, %v2057
      %v2102 = vpack.c.bf16 %v2061, %v2061
      %v2103 = vpack.c.bf16 %v2065, %v2065
      %v2104 = vpack.c.bf16 %v2069, %v2069
      %v2105 = vpack.c.bf16 %v2073, %v2073
      %v2106 = vld [vmem:[%s4] sm:$0xf]
      %v2107 = vld [vmem:[%s4 + $0x4] sm:$0xf]
      %v2108 = vld [vmem:[%s4 + $0x8] sm:$0xf]
      %v2109 = vld [vmem:[%s4 + $0xc] sm:$0xf]
      %v2110 = vld [vmem:[%s4 + $0x10] sm:$0xf]
      %v2111 = vld [vmem:[%s4 + $0x14] sm:$0xf]
      %v2112 = vld [vmem:[%s4 + $0x18] sm:$0xf]
      %v2113 = vld [vmem:[%s4 + $0x1c] sm:$0xf]
      %v2114 = vld [vmem:[%s4 + $0x20] sm:$0xf]
      %v2115 = vld [vmem:[%s4 + $0x24] sm:$0xf]
      %v2116 = vld [vmem:[%s4 + $0x28] sm:$0xf]
      %v2117 = vld [vmem:[%s4 + $0x2c] sm:$0xf]
      %v2118 = vld [vmem:[%s4 + $0x30] sm:$0xf]
      %v2119 = vld [vmem:[%s4 + $0x34] sm:$0xf]
      %v2120 = vld [vmem:[%s4 + $0x38] sm:$0xf]
      %v2121 = vld [vmem:[%s4 + $0x3c] sm:$0xf]
      %v2122 = vld [vmem:[%s4 + $0x40] sm:$0xf]
      %v2123 = vld [vmem:[%s4 + $0x44] sm:$0xf]
      %v2124 = vld [vmem:[%s4 + $0x48] sm:$0xf]
      %v2125 = vld [vmem:[%s4 + $0x4c] sm:$0xf]
      %v2126 = vld [vmem:[%s4 + $0x50] sm:$0xf]
      %v2127 = vld [vmem:[%s4 + $0x54] sm:$0xf]
      %v2128 = vld [vmem:[%s4 + $0x58] sm:$0xf]
      %v2129 = vld [vmem:[%s4 + $0x5c] sm:$0xf]
      %v2130 = vld [vmem:[%s4 + $0x60] sm:$0x3]
      %s2131 = scalar_lea.vmem [#allocation2], 1
      %v2132 = vld [vmem:[%s2131] ss:$4 sm:$0x3]
      %s2133 = scalar_lea.vmem [#allocation2], 9
      %v2134 = vld [vmem:[%s2133] ss:$4 sm:$0x3]
      %s2135 = scalar_lea.vmem [#allocation2], 17
      %v2136 = vld [vmem:[%s2135] ss:$4 sm:$0x3]
      %s2137 = scalar_lea.vmem [#allocation2], 25
      %v2138 = vld [vmem:[%s2137] ss:$4 sm:$0x3]
      %s2139 = scalar_lea.vmem [#allocation2], 33
      %v2140 = vld [vmem:[%s2139] ss:$4 sm:$0x3]
      %s2141 = scalar_lea.vmem [#allocation2], 41
      %v2142 = vld [vmem:[%s2141] ss:$4 sm:$0x3]
      %s2143 = scalar_lea.vmem [#allocation2], 49
      %v2144 = vld [vmem:[%s2143] ss:$4 sm:$0x3]
      %s2145 = scalar_lea.vmem [#allocation2], 57
      %v2146 = vld [vmem:[%s2145] ss:$4 sm:$0x3]
      %v2155 = vlaneseq
      %v2156 = vshrl.u32 %v2155, 7
      %v2157 = vsub.s32 0, %v2156
      %v2158 = vrot.slane %v2132, %v2157
      %v2159 = vlaneseq
      %v2160 = vshrl.u32 %v2159, 7
      %v2161 = vsub.s32 1, %v2160
      %v2162 = vrot.slane %v2132, %v2161
      %v2163 = vlaneseq
      %v2164 = vshrl.u32 %v2163, 7
      %v2165 = vsub.s32 0, %v2164
      %v2166 = vrot.slane %v2134, %v2165
      %v2167 = vlaneseq
      %v2168 = vshrl.u32 %v2167, 7
      %v2169 = vsub.s32 1, %v2168
      %v2170 = vrot.slane %v2134, %v2169
      %v2171 = vlaneseq
      %v2172 = vshrl.u32 %v2171, 7
      %v2173 = vsub.s32 0, %v2172
      %v2174 = vrot.slane %v2136, %v2173
      %v2175 = vlaneseq
      %v2176 = vshrl.u32 %v2175, 7
      %v2177 = vsub.s32 1, %v2176
      %v2178 = vrot.slane %v2136, %v2177
      %v2179 = vlaneseq
      %v2180 = vshrl.u32 %v2179, 7
      %v2181 = vsub.s32 0, %v2180
      %v2182 = vrot.slane %v2138, %v2181
      %v2183 = vlaneseq
      %v2184 = vshrl.u32 %v2183, 7
      %v2185 = vsub.s32 1, %v2184
      %v2186 = vrot.slane %v2138, %v2185
      %v2187 = vlaneseq
      %v2188 = vshrl.u32 %v2187, 7
      %v2189 = vsub.s32 0, %v2188
      %v2190 = vrot.slane %v2140, %v2189
      %v2191 = vlaneseq
      %v2192 = vshrl.u32 %v2191, 7
      %v2193 = vsub.s32 1, %v2192
      %v2194 = vrot.slane %v2140, %v2193
      %v2195 = vlaneseq
      %v2196 = vshrl.u32 %v2195, 7
      %v2197 = vsub.s32 0, %v2196
      %v2198 = vrot.slane %v2142, %v2197
      %v2199 = vlaneseq
      %v2200 = vshrl.u32 %v2199, 7
      %v2201 = vsub.s32 1, %v2200
      %v2202 = vrot.slane %v2142, %v2201
      %v2203 = vlaneseq
      %v2204 = vshrl.u32 %v2203, 7
      %v2205 = vsub.s32 0, %v2204
      %v2206 = vrot.slane %v2144, %v2205
      %v2207 = vlaneseq
      %v2208 = vshrl.u32 %v2207, 7
      %v2209 = vsub.s32 1, %v2208
      %v2210 = vrot.slane %v2144, %v2209
      %v2211 = vlaneseq
      %v2212 = vshrl.u32 %v2211, 7
      %v2213 = vsub.s32 0, %v2212
      %v2214 = vrot.slane %v2146, %v2213
      %v2215 = vlaneseq
      %v2216 = vshrl.u32 %v2215, 7
      %v2217 = vsub.s32 1, %v2216
      %v2218 = vrot.slane %v2146, %v2217
      %v2235 = vpack.c.bf16 %v2158, %v2158
      %v2236 = vpack.c.bf16 %v2162, %v2162
      %v2237 = vpack.c.bf16 %v2166, %v2166
      %v2238 = vpack.c.bf16 %v2170, %v2170
      %v2239 = vpack.c.bf16 %v2174, %v2174
      %v2240 = vpack.c.bf16 %v2178, %v2178
      %v2241 = vpack.c.bf16 %v2182, %v2182
      %v2242 = vpack.c.bf16 %v2186, %v2186
      %v2243 = vpack.c.bf16 %v2190, %v2190
      %v2244 = vpack.c.bf16 %v2194, %v2194
      %v2245 = vpack.c.bf16 %v2198, %v2198
      %v2246 = vpack.c.bf16 %v2202, %v2202
      %v2247 = vpack.c.bf16 %v2206, %v2206
      %v2248 = vpack.c.bf16 %v2210, %v2210
      %v2249 = vpack.c.bf16 %v2214, %v2214
      %v2250 = vpack.c.bf16 %v2218, %v2218
      %s2251 = scalar_lea.vmem %s4, 100
      %v2252 = vld [vmem:[%s2251] sm:$0xf]
      %v2253 = vld [vmem:[%s2251 + $0x4] sm:$0xf]
      %v2254 = vld [vmem:[%s2251 + $0x8] sm:$0xf]
      %v2255 = vld [vmem:[%s2251 + $0xc] sm:$0xf]
      %v2256 = vld [vmem:[%s2251 + $0x10] sm:$0xf]
      %v2257 = vld [vmem:[%s2251 + $0x14] sm:$0xf]
      %v2258 = vld [vmem:[%s2251 + $0x18] sm:$0xf]
      %v2259 = vld [vmem:[%s2251 + $0x1c] sm:$0xf]
      %v2260 = vld [vmem:[%s2251 + $0x20] sm:$0xf]
      %v2261 = vld [vmem:[%s2251 + $0x24] sm:$0xf]
      %v2262 = vld [vmem:[%s2251 + $0x28] sm:$0xf]
      %v2263 = vld [vmem:[%s2251 + $0x2c] sm:$0xf]
      %v2264 = vld [vmem:[%s2251 + $0x30] sm:$0xf]
      %v2265 = vld [vmem:[%s2251 + $0x34] sm:$0xf]
      %v2266 = vld [vmem:[%s2251 + $0x38] sm:$0xf]
      %v2267 = vld [vmem:[%s2251 + $0x3c] sm:$0xf]
      %v2268 = vld [vmem:[%s2251 + $0x40] sm:$0xf]
      %v2269 = vld [vmem:[%s2251 + $0x44] sm:$0xf]
      %v2270 = vld [vmem:[%s2251 + $0x48] sm:$0xf]
      %v2271 = vld [vmem:[%s2251 + $0x4c] sm:$0xf]
      %v2272 = vld [vmem:[%s2251 + $0x50] sm:$0xf]
      %v2273 = vld [vmem:[%s2251 + $0x54] sm:$0xf]
      %v2274 = vld [vmem:[%s2251 + $0x58] sm:$0xf]
      %v2275 = vld [vmem:[%s2251 + $0x5c] sm:$0xf]
      %v2276 = vld [vmem:[%s2251 + $0x60] sm:$0x3]
      %v2293 = vunpack.c.l.b16 %v2235
      %v2294 = vunpack.c.l.b16 %v2236
      %v2295 = vunpack.c.l.b16 %v2237
      %v2296 = vunpack.c.l.b16 %v2238
      %v2297 = vunpack.c.l.b16 %v2239
      %v2298 = vunpack.c.l.b16 %v2240
      %v2299 = vunpack.c.l.b16 %v2241
      %v2300 = vunpack.c.l.b16 %v2242
      %v2301 = vunpack.c.l.b16 %v2243
      %v2302 = vunpack.c.l.b16 %v2244
      %v2303 = vunpack.c.l.b16 %v2245
      %v2304 = vunpack.c.l.b16 %v2246
      %v2305 = vunpack.c.l.b16 %v2247
      %v2306 = vunpack.c.l.b16 %v2248
      %v2307 = vunpack.c.l.b16 %v2249
      %v2308 = vunpack.c.l.b16 %v2250
      %v2309 = vrot.slane %v2295, 7
      %vm2310 = vcmask 1041409
      %v2311 = vsel %vm2310, %v2309, %v2293
      %v2312 = vrot.slane %v2297, 6
      %vm2313 = vcmask 1042434
      %v2314 = vsel %vm2313, %v2312, %v2311
      %v2315 = vrot.slane %v2299, 5
      %vm2316 = vcmask 1043459
      %v2317 = vsel %vm2316, %v2315, %v2314
      %v2318 = vrot.slane %v2301, 4
      %vm2319 = vcmask 1044484
      %v2320 = vsel %vm2319, %v2318, %v2317
      %v2321 = vrot.slane %v2303, 3
      %vm2322 = vcmask 1045509
      %v2323 = vsel %vm2322, %v2321, %v2320
      %v2324 = vrot.slane %v2305, 2
      %vm2325 = vcmask 1046534
      %v2326 = vsel %vm2325, %v2324, %v2323
      %v2327 = vrot.slane %v2307, 1
      %vm2328 = vcmask 1047559
      %v2329 = vsel %vm2328, %v2327, %v2326
      %v2330 = vrot.slane %v2296, 7
      %v2331 = vsel %vm2310, %v2330, %v2294
      %v2332 = vrot.slane %v2298, 6
      %v2333 = vsel %vm2313, %v2332, %v2331
      %v2334 = vrot.slane %v2300, 5
      %v2335 = vsel %vm2316, %v2334, %v2333
      %v2336 = vrot.slane %v2302, 4
      %v2337 = vsel %vm2319, %v2336, %v2335
      %v2338 = vrot.slane %v2304, 3
      %v2339 = vsel %vm2322, %v2338, %v2337
      %v2340 = vrot.slane %v2306, 2
      %v2341 = vsel %vm2325, %v2340, %v2339
      %v2342 = vrot.slane %v2308, 1
      %v2343 = vsel %vm2328, %v2342, %v2341
      %v2344 = vpack.c.b16 %v2329, %v2329
      %v2345 = vpack.c.b16 %v2343, %v2343
      %v2372 = vunpack.c.l.b16 %v2252
      %v2373 = vunpack.c.l.b16 %v2253
      %v2374 = vunpack.c.l.b16 %v2254
      %v2375 = vunpack.c.l.b16 %v2255
      %v2376 = vunpack.c.l.b16 %v2256
      %v2377 = vunpack.c.l.b16 %v2257
      %v2378 = vunpack.c.l.b16 %v2258
      %v2379 = vunpack.c.l.b16 %v2259
      %v2380 = vunpack.c.l.b16 %v2260
      %v2381 = vunpack.c.l.b16 %v2261
      %v2382 = vunpack.c.l.b16 %v2262
      %v2383 = vunpack.c.l.b16 %v2263
      %v2384 = vunpack.c.l.b16 %v2264
      %v2385 = vunpack.c.l.b16 %v2265
      %v2386 = vunpack.c.l.b16 %v2266
      %v2387 = vunpack.c.l.b16 %v2267
      %v2388 = vunpack.c.l.b16 %v2268
      %v2389 = vunpack.c.l.b16 %v2269
      %v2390 = vunpack.c.l.b16 %v2270
      %v2391 = vunpack.c.l.b16 %v2271
      %v2392 = vunpack.c.l.b16 %v2272
      %v2393 = vunpack.c.l.b16 %v2273
      %v2394 = vunpack.c.l.b16 %v2274
      %v2395 = vunpack.c.l.b16 %v2275
      %v2396 = vunpack.c.l.b16 %v2276
      %v2397 = vpack.c.b16 %v2373, %v2372
      %v2398 = vpack.c.b16 %v2375, %v2374
      %v2399 = vpack.c.b16 %v2377, %v2376
      %v2400 = vpack.c.b16 %v2379, %v2378
      %v2401 = vpack.c.b16 %v2381, %v2380
      %v2402 = vpack.c.b16 %v2383, %v2382
      %v2403 = vpack.c.b16 %v2385, %v2384
      %v2404 = vpack.c.b16 %v2387, %v2386
      %v2405 = vpack.c.b16 %v2389, %v2388
      %v2406 = vpack.c.b16 %v2391, %v2390
      %v2407 = vpack.c.b16 %v2393, %v2392
      %v2408 = vpack.c.b16 %v2395, %v2394
      %v2409 = vpack.c.b16 %v2396, %v2396
      %vm2422 = vcmask 556032
      %v2424 = vsel %vm2422, %v2345, 0
      %vm2426 = vcmask 1041408
      %v2428 = vsel %vm2426, %v2409, 0
      %2430 = vmatprep.subr.bf16.mxu0 0
      %2431 = vmatpush1.bf16.msra.mxu0 %v2404
      %2432 = vmatprep.subr.bf16.mxu0 0
      %2433 = vmatpush1.bf16.msra.mxu0 %v2403
      %2434 = vmatprep.subr.bf16.mxu0 0
      %2435 = vmatpush1.bf16.msra.mxu0 %v2402
      %2436 = vmatprep.subr.bf16.mxu0 0
      %2437 = vmatpush1.bf16.msra.mxu0 %v2401
      %2438 = vmatprep.subr.bf16.mxu0 0
      %2439 = vmatpush1.bf16.msra.mxu0 %v2400
      %2440 = vmatprep.subr.bf16.mxu0 0
      %2441 = vmatpush1.bf16.msra.mxu0 %v2399
      %2442 = vmatprep.subr.bf16.mxu0 0
      %2443 = vmatpush1.bf16.msra.mxu0 %v2398
      %2444 = vmatprep.subr.bf16.mxu0 0
      %2445 = vmatpush1.bf16.msra.mxu0 %v2397
      %2446 = vmatprep.subr.bf16.mxu0 0
      %2447 = vmatpush2.bf16.msra.mxu0 0
      %2448 = vmatprep.subr.bf16.mxu0 0
      %2449 = vmatpush2.bf16.msra.mxu0 0
      %2450 = vmatprep.subr.bf16.mxu0 0
      %2451 = vmatpush2.bf16.msra.mxu0 0
      %2452 = vmatprep.subr.bf16.mxu0 0
      %2453 = vmatpush2.bf16.msra.mxu0 %v2428
      %2454 = vmatprep.subr.bf16.mxu0 0
      %2455 = vmatpush2.bf16.msra.mxu0 %v2408
      %2456 = vmatprep.subr.bf16.mxu0 0
      %2457 = vmatpush2.bf16.msra.mxu0 %v2407
      %2458 = vmatprep.subr.bf16.mxu0 0
      %2459 = vmatpush2.bf16.msra.mxu0 %v2406
      %2460 = vmatprep.subr.bf16.mxu0 0
      %2461 = vmatpush2.bf16.msra.mxu0 %v2405
      %2462 = vmatprep.mubr.bf16.mxu0 %v2424
      %2463 = vmatmul.mubr.bf16.gmra.mxu0 %v2344
      %v2464 = vpop.f32.mrf.mxu0
      %v2465 = vadd.f32 0.0, %v2464
      %v2466 = vpop.f32.mrf.mxu0
      %v2467 = vpop.f32.mrf.mxu0
      %v2468 = vpop.f32.mrf.mxu0
      %2469 = vdwg.mxu0
      %v2486 = vunpack.c.l.b16 %v2090
      %v2487 = vunpack.c.l.b16 %v2091
      %v2488 = vunpack.c.l.b16 %v2092
      %v2489 = vunpack.c.l.b16 %v2093
      %v2490 = vunpack.c.l.b16 %v2094
      %v2491 = vunpack.c.l.b16 %v2095
      %v2492 = vunpack.c.l.b16 %v2096
      %v2493 = vunpack.c.l.b16 %v2097
      %v2494 = vunpack.c.l.b16 %v2098
      %v2495 = vunpack.c.l.b16 %v2099
      %v2496 = vunpack.c.l.b16 %v2100
      %v2497 = vunpack.c.l.b16 %v2101
      %v2498 = vunpack.c.l.b16 %v2102
      %v2499 = vunpack.c.l.b16 %v2103
      %v2500 = vunpack.c.l.b16 %v2104
      %v2501 = vunpack.c.l.b16 %v2105
      %v2502 = vrot.slane %v2488, 7
      %v2503 = vsel %vm2310, %v2502, %v2486
      %v2504 = vrot.slane %v2490, 6
      %v2505 = vsel %vm2313, %v2504, %v2503
      %v2506 = vrot.slane %v2492, 5
      %v2507 = vsel %vm2316, %v2506, %v2505
      %v2508 = vrot.slane %v2494, 4
      %v2509 = vsel %vm2319, %v2508, %v2507
      %v2510 = vrot.slane %v2496, 3
      %v2511 = vsel %vm2322, %v2510, %v2509
      %v2512 = vrot.slane %v2498, 2
      %v2513 = vsel %vm2325, %v2512, %v2511
      %v2514 = vrot.slane %v2500, 1
      %v2515 = vsel %vm2328, %v2514, %v2513
      %v2516 = vrot.slane %v2489, 7
      %v2517 = vsel %vm2310, %v2516, %v2487
      %v2518 = vrot.slane %v2491, 6
      %v2519 = vsel %vm2313, %v2518, %v2517
      %v2520 = vrot.slane %v2493, 5
      %v2521 = vsel %vm2316, %v2520, %v2519
      %v2522 = vrot.slane %v2495, 4
      %v2523 = vsel %vm2319, %v2522, %v2521
      %v2524 = vrot.slane %v2497, 3
      %v2525 = vsel %vm2322, %v2524, %v2523
      %v2526 = vrot.slane %v2499, 2
      %v2527 = vsel %vm2325, %v2526, %v2525
      %v2528 = vrot.slane %v2501, 1
      %v2529 = vsel %vm2328, %v2528, %v2527
      %v2530 = vpack.c.b16 %v2515, %v2515
      %v2531 = vpack.c.b16 %v2529, %v2529
      %v2558 = vunpack.c.l.b16 %v2106
      %v2559 = vunpack.c.l.b16 %v2107
      %v2560 = vunpack.c.l.b16 %v2108
      %v2561 = vunpack.c.l.b16 %v2109
      %v2562 = vunpack.c.l.b16 %v2110
      %v2563 = vunpack.c.l.b16 %v2111
      %v2564 = vunpack.c.l.b16 %v2112
      %v2565 = vunpack.c.l.b16 %v2113
      %v2566 = vunpack.c.l.b16 %v2114
      %v2567 = vunpack.c.l.b16 %v2115
      %v2568 = vunpack.c.l.b16 %v2116
      %v2569 = vunpack.c.l.b16 %v2117
      %v2570 = vunpack.c.l.b16 %v2118
      %v2571 = vunpack.c.l.b16 %v2119
      %v2572 = vunpack.c.l.b16 %v2120
      %v2573 = vunpack.c.l.b16 %v2121
      %v2574 = vunpack.c.l.b16 %v2122
      %v2575 = vunpack.c.l.b16 %v2123
      %v2576 = vunpack.c.l.b16 %v2124
      %v2577 = vunpack.c.l.b16 %v2125
      %v2578 = vunpack.c.l.b16 %v2126
      %v2579 = vunpack.c.l.b16 %v2127
      %v2580 = vunpack.c.l.b16 %v2128
      %v2581 = vunpack.c.l.b16 %v2129
      %v2582 = vunpack.c.l.b16 %v2130
      %v2583 = vpack.c.b16 %v2559, %v2558
      %v2584 = vpack.c.b16 %v2561, %v2560
      %v2585 = vpack.c.b16 %v2563, %v2562
      %v2586 = vpack.c.b16 %v2565, %v2564
      %v2587 = vpack.c.b16 %v2567, %v2566
      %v2588 = vpack.c.b16 %v2569, %v2568
      %v2589 = vpack.c.b16 %v2571, %v2570
      %v2590 = vpack.c.b16 %v2573, %v2572
      %v2591 = vpack.c.b16 %v2575, %v2574
      %v2592 = vpack.c.b16 %v2577, %v2576
      %v2593 = vpack.c.b16 %v2579, %v2578
      %v2594 = vpack.c.b16 %v2581, %v2580
      %v2595 = vpack.c.b16 %v2582, %v2582
      %v2609 = vsel %vm2422, %v2531, 0
      %v2612 = vsel %vm2426, %v2595, 0
      %2614 = vmatprep.subr.bf16.mxu0 0
      %2615 = vmatpush1.bf16.msra.mxu0 %v2590
      %2616 = vmatprep.subr.bf16.mxu0 0
      %2617 = vmatpush1.bf16.msra.mxu0 %v2589
      %2618 = vmatprep.subr.bf16.mxu0 0
      %2619 = vmatpush1.bf16.msra.mxu0 %v2588
      %2620 = vmatprep.subr.bf16.mxu0 0
      %2621 = vmatpush1.bf16.msra.mxu0 %v2587
      %2622 = vmatprep.subr.bf16.mxu0 0
      %2623 = vmatpush1.bf16.msra.mxu0 %v2586
      %2624 = vmatprep.subr.bf16.mxu0 0
      %2625 = vmatpush1.bf16.msra.mxu0 %v2585
      %2626 = vmatprep.subr.bf16.mxu0 0
      %2627 = vmatpush1.bf16.msra.mxu0 %v2584
      %2628 = vmatprep.subr.bf16.mxu0 0
      %2629 = vmatpush1.bf16.msra.mxu0 %v2583
      %2630 = vmatprep.subr.bf16.mxu0 0
      %2631 = vmatpush2.bf16.msra.mxu0 0
      %2632 = vmatprep.subr.bf16.mxu0 0
      %2633 = vmatpush2.bf16.msra.mxu0 0
      %2634 = vmatprep.subr.bf16.mxu0 0
      %2635 = vmatpush2.bf16.msra.mxu0 0
      %2636 = vmatprep.subr.bf16.mxu0 0
      %2637 = vmatpush2.bf16.msra.mxu0 %v2612
      %2638 = vmatprep.subr.bf16.mxu0 0
      %2639 = vmatpush2.bf16.msra.mxu0 %v2594
      %2640 = vmatprep.subr.bf16.mxu0 0
      %2641 = vmatpush2.bf16.msra.mxu0 %v2593
      %2642 = vmatprep.subr.bf16.mxu0 0
      %2643 = vmatpush2.bf16.msra.mxu0 %v2592
      %2644 = vmatprep.subr.bf16.mxu0 0
      %2645 = vmatpush2.bf16.msra.mxu0 %v2591
      %2646 = vmatprep.mubr.bf16.mxu0 %v2609
      %2647 = vmatmul.mubr.bf16.gmra.mxu0 %v2530
      %v2648 = vpop.f32.mrf.mxu0
      %v2649 = vadd.f32 %v2465, %v2648
      %v2650 = vpop.f32.mrf.mxu0
      %v2651 = vpop.f32.mrf.mxu0
      %v2652 = vpop.f32.mrf.mxu0
      %2653 = vdwg.mxu0
      %s2654 = scalar_lea.vmem [#allocation2], 2
      %v2655 = vld [vmem:[%s2654] ss:$4 sm:$0x3]
      %s2656 = scalar_lea.vmem [#allocation2], 10
      %v2657 = vld [vmem:[%s2656] ss:$4 sm:$0x3]
      %s2658 = scalar_lea.vmem [#allocation2], 18
      %v2659 = vld [vmem:[%s2658] ss:$4 sm:$0x3]
      %s2660 = scalar_lea.vmem [#allocation2], 26
      %v2661 = vld [vmem:[%s2660] ss:$4 sm:$0x3]
      %s2662 = scalar_lea.vmem [#allocation2], 34
      %v2663 = vld [vmem:[%s2662] ss:$4 sm:$0x3]
      %s2664 = scalar_lea.vmem [#allocation2], 42
      %v2665 = vld [vmem:[%s2664] ss:$4 sm:$0x3]
      %s2666 = scalar_lea.vmem [#allocation2], 50
      %v2667 = vld [vmem:[%s2666] ss:$4 sm:$0x3]
      %s2668 = scalar_lea.vmem [#allocation2], 58
      %v2669 = vld [vmem:[%s2668] ss:$4 sm:$0x3]
      %v2678 = vlaneseq
      %v2679 = vshrl.u32 %v2678, 7
      %v2680 = vsub.s32 0, %v2679
      %v2681 = vrot.slane %v2655, %v2680
      %v2682 = vlaneseq
      %v2683 = vshrl.u32 %v2682, 7
      %v2684 = vsub.s32 1, %v2683
      %v2685 = vrot.slane %v2655, %v2684
      %v2686 = vlaneseq
      %v2687 = vshrl.u32 %v2686, 7
      %v2688 = vsub.s32 0, %v2687
      %v2689 = vrot.slane %v2657, %v2688
      %v2690 = vlaneseq
      %v2691 = vshrl.u32 %v2690, 7
      %v2692 = vsub.s32 1, %v2691
      %v2693 = vrot.slane %v2657, %v2692
      %v2694 = vlaneseq
      %v2695 = vshrl.u32 %v2694, 7
      %v2696 = vsub.s32 0, %v2695
      %v2697 = vrot.slane %v2659, %v2696
      %v2698 = vlaneseq
      %v2699 = vshrl.u32 %v2698, 7
      %v2700 = vsub.s32 1, %v2699
      %v2701 = vrot.slane %v2659, %v2700
      %v2702 = vlaneseq
      %v2703 = vshrl.u32 %v2702, 7
      %v2704 = vsub.s32 0, %v2703
      %v2705 = vrot.slane %v2661, %v2704
      %v2706 = vlaneseq
      %v2707 = vshrl.u32 %v2706, 7
      %v2708 = vsub.s32 1, %v2707
      %v2709 = vrot.slane %v2661, %v2708
      %v2710 = vlaneseq
      %v2711 = vshrl.u32 %v2710, 7
      %v2712 = vsub.s32 0, %v2711
      %v2713 = vrot.slane %v2663, %v2712
      %v2714 = vlaneseq
      %v2715 = vshrl.u32 %v2714, 7
      %v2716 = vsub.s32 1, %v2715
      %v2717 = vrot.slane %v2663, %v2716
      %v2718 = vlaneseq
      %v2719 = vshrl.u32 %v2718, 7
      %v2720 = vsub.s32 0, %v2719
      %v2721 = vrot.slane %v2665, %v2720
      %v2722 = vlaneseq
      %v2723 = vshrl.u32 %v2722, 7
      %v2724 = vsub.s32 1, %v2723
      %v2725 = vrot.slane %v2665, %v2724
      %v2726 = vlaneseq
      %v2727 = vshrl.u32 %v2726, 7
      %v2728 = vsub.s32 0, %v2727
      %v2729 = vrot.slane %v2667, %v2728
      %v2730 = vlaneseq
      %v2731 = vshrl.u32 %v2730, 7
      %v2732 = vsub.s32 1, %v2731
      %v2733 = vrot.slane %v2667, %v2732
      %v2734 = vlaneseq
      %v2735 = vshrl.u32 %v2734, 7
      %v2736 = vsub.s32 0, %v2735
      %v2737 = vrot.slane %v2669, %v2736
      %v2738 = vlaneseq
      %v2739 = vshrl.u32 %v2738, 7
      %v2740 = vsub.s32 1, %v2739
      %v2741 = vrot.slane %v2669, %v2740
      %v2758 = vpack.c.bf16 %v2681, %v2681
      %v2759 = vpack.c.bf16 %v2685, %v2685
      %v2760 = vpack.c.bf16 %v2689, %v2689
      %v2761 = vpack.c.bf16 %v2693, %v2693
      %v2762 = vpack.c.bf16 %v2697, %v2697
      %v2763 = vpack.c.bf16 %v2701, %v2701
      %v2764 = vpack.c.bf16 %v2705, %v2705
      %v2765 = vpack.c.bf16 %v2709, %v2709
      %v2766 = vpack.c.bf16 %v2713, %v2713
      %v2767 = vpack.c.bf16 %v2717, %v2717
      %v2768 = vpack.c.bf16 %v2721, %v2721
      %v2769 = vpack.c.bf16 %v2725, %v2725
      %v2770 = vpack.c.bf16 %v2729, %v2729
      %v2771 = vpack.c.bf16 %v2733, %v2733
      %v2772 = vpack.c.bf16 %v2737, %v2737
      %v2773 = vpack.c.bf16 %v2741, %v2741
      %s2774 = scalar_lea.vmem %s4, 200
      %v2775 = vld [vmem:[%s2774] sm:$0xf]
      %v2776 = vld [vmem:[%s2774 + $0x4] sm:$0xf]
      %v2777 = vld [vmem:[%s2774 + $0x8] sm:$0xf]
      %v2778 = vld [vmem:[%s2774 + $0xc] sm:$0xf]
      %v2779 = vld [vmem:[%s2774 + $0x10] sm:$0xf]
      %v2780 = vld [vmem:[%s2774 + $0x14] sm:$0xf]
      %v2781 = vld [vmem:[%s2774 + $0x18] sm:$0xf]
      %v2782 = vld [vmem:[%s2774 + $0x1c] sm:$0xf]
      %v2783 = vld [vmem:[%s2774 + $0x20] sm:$0xf]
      %v2784 = vld [vmem:[%s2774 + $0x24] sm:$0xf]
      %v2785 = vld [vmem:[%s2774 + $0x28] sm:$0xf]
      %v2786 = vld [vmem:[%s2774 + $0x2c] sm:$0xf]
      %v2787 = vld [vmem:[%s2774 + $0x30] sm:$0xf]
      %v2788 = vld [vmem:[%s2774 + $0x34] sm:$0xf]
      %v2789 = vld [vmem:[%s2774 + $0x38] sm:$0xf]
      %v2790 = vld [vmem:[%s2774 + $0x3c] sm:$0xf]
      %v2791 = vld [vmem:[%s2774 + $0x40] sm:$0xf]
      %v2792 = vld [vmem:[%s2774 + $0x44] sm:$0xf]
      %v2793 = vld [vmem:[%s2774 + $0x48] sm:$0xf]
      %v2794 = vld [vmem:[%s2774 + $0x4c] sm:$0xf]
      %v2795 = vld [vmem:[%s2774 + $0x50] sm:$0xf]
      %v2796 = vld [vmem:[%s2774 + $0x54] sm:$0xf]
      %v2797 = vld [vmem:[%s2774 + $0x58] sm:$0xf]
      %v2798 = vld [vmem:[%s2774 + $0x5c] sm:$0xf]
      %v2799 = vld [vmem:[%s2774 + $0x60] sm:$0x3]
      %v2816 = vunpack.c.l.b16 %v2758
      %v2817 = vunpack.c.l.b16 %v2759
      %v2818 = vunpack.c.l.b16 %v2760
      %v2819 = vunpack.c.l.b16 %v2761
      %v2820 = vunpack.c.l.b16 %v2762
      %v2821 = vunpack.c.l.b16 %v2763
      %v2822 = vunpack.c.l.b16 %v2764
      %v2823 = vunpack.c.l.b16 %v2765
      %v2824 = vunpack.c.l.b16 %v2766
      %v2825 = vunpack.c.l.b16 %v2767
      %v2826 = vunpack.c.l.b16 %v2768
      %v2827 = vunpack.c.l.b16 %v2769
      %v2828 = vunpack.c.l.b16 %v2770
      %v2829 = vunpack.c.l.b16 %v2771
      %v2830 = vunpack.c.l.b16 %v2772
      %v2831 = vunpack.c.l.b16 %v2773
      %v2832 = vrot.slane %v2818, 7
      %v2833 = vsel %vm2310, %v2832, %v2816
      %v2834 = vrot.slane %v2820, 6
      %v2835 = vsel %vm2313, %v2834, %v2833
      %v2836 = vrot.slane %v2822, 5
      %v2837 = vsel %vm2316, %v2836, %v2835
      %v2838 = vrot.slane %v2824, 4
      %v2839 = vsel %vm2319, %v2838, %v2837
      %v2840 = vrot.slane %v2826, 3
      %v2841 = vsel %vm2322, %v2840, %v2839
      %v2842 = vrot.slane %v2828, 2
      %v2843 = vsel %vm2325, %v2842, %v2841
      %v2844 = vrot.slane %v2830, 1
      %v2845 = vsel %vm2328, %v2844, %v2843
      %v2846 = vrot.slane %v2819, 7
      %v2847 = vsel %vm2310, %v2846, %v2817
      %v2848 = vrot.slane %v2821, 6
      %v2849 = vsel %vm2313, %v2848, %v2847
      %v2850 = vrot.slane %v2823, 5
      %v2851 = vsel %vm2316, %v2850, %v2849
      %v2852 = vrot.slane %v2825, 4
      %v2853 = vsel %vm2319, %v2852, %v2851
      %v2854 = vrot.slane %v2827, 3
      %v2855 = vsel %vm2322, %v2854, %v2853
      %v2856 = vrot.slane %v2829, 2
      %v2857 = vsel %vm2325, %v2856, %v2855
      %v2858 = vrot.slane %v2831, 1
      %v2859 = vsel %vm2328, %v2858, %v2857
      %v2860 = vpack.c.b16 %v2845, %v2845
      %v2861 = vpack.c.b16 %v2859, %v2859
      %v2888 = vunpack.c.l.b16 %v2775
      %v2889 = vunpack.c.l.b16 %v2776
      %v2890 = vunpack.c.l.b16 %v2777
      %v2891 = vunpack.c.l.b16 %v2778
      %v2892 = vunpack.c.l.b16 %v2779
      %v2893 = vunpack.c.l.b16 %v2780
      %v2894 = vunpack.c.l.b16 %v2781
      %v2895 = vunpack.c.l.b16 %v2782
      %v2896 = vunpack.c.l.b16 %v2783
      %v2897 = vunpack.c.l.b16 %v2784
      %v2898 = vunpack.c.l.b16 %v2785
      %v2899 = vunpack.c.l.b16 %v2786
      %v2900 = vunpack.c.l.b16 %v2787
      %v2901 = vunpack.c.l.b16 %v2788
      %v2902 = vunpack.c.l.b16 %v2789
      %v2903 = vunpack.c.l.b16 %v2790
      %v2904 = vunpack.c.l.b16 %v2791
      %v2905 = vunpack.c.l.b16 %v2792
      %v2906 = vunpack.c.l.b16 %v2793
      %v2907 = vunpack.c.l.b16 %v2794
      %v2908 = vunpack.c.l.b16 %v2795
      %v2909 = vunpack.c.l.b16 %v2796
      %v2910 = vunpack.c.l.b16 %v2797
      %v2911 = vunpack.c.l.b16 %v2798
      %v2912 = vunpack.c.l.b16 %v2799
      %v2913 = vpack.c.b16 %v2889, %v2888
      %v2914 = vpack.c.b16 %v2891, %v2890
      %v2915 = vpack.c.b16 %v2893, %v2892
      %v2916 = vpack.c.b16 %v2895, %v2894
      %v2917 = vpack.c.b16 %v2897, %v2896
      %v2918 = vpack.c.b16 %v2899, %v2898
      %v2919 = vpack.c.b16 %v2901, %v2900
      %v2920 = vpack.c.b16 %v2903, %v2902
      %v2921 = vpack.c.b16 %v2905, %v2904
      %v2922 = vpack.c.b16 %v2907, %v2906
      %v2923 = vpack.c.b16 %v2909, %v2908
      %v2924 = vpack.c.b16 %v2911, %v2910
      %v2925 = vpack.c.b16 %v2912, %v2912
      %v2939 = vsel %vm2422, %v2861, 0
      %v2942 = vsel %vm2426, %v2925, 0
      %2944 = vmatprep.subr.bf16.mxu0 0
      %2945 = vmatpush1.bf16.msra.mxu0 %v2920
      %2946 = vmatprep.subr.bf16.mxu0 0
      %2947 = vmatpush1.bf16.msra.mxu0 %v2919
      %2948 = vmatprep.subr.bf16.mxu0 0
      %2949 = vmatpush1.bf16.msra.mxu0 %v2918
      %2950 = vmatprep.subr.bf16.mxu0 0
      %2951 = vmatpush1.bf16.msra.mxu0 %v2917
      %2952 = vmatprep.subr.bf16.mxu0 0
      %2953 = vmatpush1.bf16.msra.mxu0 %v2916
      %2954 = vmatprep.subr.bf16.mxu0 0
      %2955 = vmatpush1.bf16.msra.mxu0 %v2915
      %2956 = vmatprep.subr.bf16.mxu0 0
      %2957 = vmatpush1.bf16.msra.mxu0 %v2914
      %2958 = vmatprep.subr.bf16.mxu0 0
      %2959 = vmatpush1.bf16.msra.mxu0 %v2913
      %2960 = vmatprep.subr.bf16.mxu0 0
      %2961 = vmatpush2.bf16.msra.mxu0 0
      %2962 = vmatprep.subr.bf16.mxu0 0
      %2963 = vmatpush2.bf16.msra.mxu0 0
      %2964 = vmatprep.subr.bf16.mxu0 0
      %2965 = vmatpush2.bf16.msra.mxu0 0
      %2966 = vmatprep.subr.bf16.mxu0 0
      %2967 = vmatpush2.bf16.msra.mxu0 %v2942
      %2968 = vmatprep.subr.bf16.mxu0 0
      %2969 = vmatpush2.bf16.msra.mxu0 %v2924
      %2970 = vmatprep.subr.bf16.mxu0 0
      %2971 = vmatpush2.bf16.msra.mxu0 %v2923
      %2972 = vmatprep.subr.bf16.mxu0 0
      %2973 = vmatpush2.bf16.msra.mxu0 %v2922
      %2974 = vmatprep.subr.bf16.mxu0 0
      %2975 = vmatpush2.bf16.msra.mxu0 %v2921
      %2976 = vmatprep.mubr.bf16.mxu0 %v2939
      %2977 = vmatmul.mubr.bf16.gmra.mxu0 %v2860
      %v2978 = vpop.f32.mrf.mxu0
      %v2979 = vadd.f32 0.0, %v2978
      %v2980 = vpop.f32.mrf.mxu0
      %v2981 = vpop.f32.mrf.mxu0
      %v2982 = vpop.f32.mrf.mxu0
      %2983 = vdwg.mxu0
      %v2984 = vadd.f32 %v2649, %v2979
      %s2985 = scalar_lea.vmem [#allocation2], 3
      %v2986 = vld [vmem:[%s2985] ss:$4 sm:$0x3]
      %s2987 = scalar_lea.vmem [#allocation2], 11
      %v2988 = vld [vmem:[%s2987] ss:$4 sm:$0x3]
      %s2989 = scalar_lea.vmem [#allocation2], 19
      %v2990 = vld [vmem:[%s2989] ss:$4 sm:$0x3]
      %s2991 = scalar_lea.vmem [#allocation2], 27
      %v2992 = vld [vmem:[%s2991] ss:$4 sm:$0x3]
      %s2993 = scalar_lea.vmem [#allocation2], 35
      %v2994 = vld [vmem:[%s2993] ss:$4 sm:$0x3]
      %s2995 = scalar_lea.vmem [#allocation2], 43
      %v2996 = vld [vmem:[%s2995] ss:$4 sm:$0x3]
      %s2997 = scalar_lea.vmem [#allocation2], 51
      %v2998 = vld [vmem:[%s2997] ss:$4 sm:$0x3]
      %s2999 = scalar_lea.vmem [#allocation2], 59
      %v3000 = vld [vmem:[%s2999] ss:$4 sm:$0x3]
      %v3009 = vlaneseq
      %v3010 = vshrl.u32 %v3009, 7
      %v3011 = vsub.s32 0, %v3010
      %v3012 = vrot.slane %v2986, %v3011
      %v3013 = vlaneseq
      %v3014 = vshrl.u32 %v3013, 7
      %v3015 = vsub.s32 1, %v3014
      %v3016 = vrot.slane %v2986, %v3015
      %v3017 = vlaneseq
      %v3018 = vshrl.u32 %v3017, 7
      %v3019 = vsub.s32 0, %v3018
      %v3020 = vrot.slane %v2988, %v3019
      %v3021 = vlaneseq
      %v3022 = vshrl.u32 %v3021, 7
      %v3023 = vsub.s32 1, %v3022
      %v3024 = vrot.slane %v2988, %v3023
      %v3025 = vlaneseq
      %v3026 = vshrl.u32 %v3025, 7
      %v3027 = vsub.s32 0, %v3026
      %v3028 = vrot.slane %v2990, %v3027
      %v3029 = vlaneseq
      %v3030 = vshrl.u32 %v3029, 7
      %v3031 = vsub.s32 1, %v3030
      %v3032 = vrot.slane %v2990, %v3031
      %v3033 = vlaneseq
      %v3034 = vshrl.u32 %v3033, 7
      %v3035 = vsub.s32 0, %v3034
      %v3036 = vrot.slane %v2992, %v3035
      %v3037 = vlaneseq
      %v3038 = vshrl.u32 %v3037, 7
      %v3039 = vsub.s32 1, %v3038
      %v3040 = vrot.slane %v2992, %v3039
      %v3041 = vlaneseq
      %v3042 = vshrl.u32 %v3041, 7
      %v3043 = vsub.s32 0, %v3042
      %v3044 = vrot.slane %v2994, %v3043
      %v3045 = vlaneseq
      %v3046 = vshrl.u32 %v3045, 7
      %v3047 = vsub.s32 1, %v3046
      %v3048 = vrot.slane %v2994, %v3047
      %v3049 = vlaneseq
      %v3050 = vshrl.u32 %v3049, 7
      %v3051 = vsub.s32 0, %v3050
      %v3052 = vrot.slane %v2996, %v3051
      %v3053 = vlaneseq
      %v3054 = vshrl.u32 %v3053, 7
      %v3055 = vsub.s32 1, %v3054
      %v3056 = vrot.slane %v2996, %v3055
      %v3057 = vlaneseq
      %v3058 = vshrl.u32 %v3057, 7
      %v3059 = vsub.s32 0, %v3058
      %v3060 = vrot.slane %v2998, %v3059
      %v3061 = vlaneseq
      %v3062 = vshrl.u32 %v3061, 7
      %v3063 = vsub.s32 1, %v3062
      %v3064 = vrot.slane %v2998, %v3063
      %v3065 = vlaneseq
      %v3066 = vshrl.u32 %v3065, 7
      %v3067 = vsub.s32 0, %v3066
      %v3068 = vrot.slane %v3000, %v3067
      %v3069 = vlaneseq
      %v3070 = vshrl.u32 %v3069, 7
      %v3071 = vsub.s32 1, %v3070
      %v3072 = vrot.slane %v3000, %v3071
      %v3089 = vpack.c.bf16 %v3012, %v3012
      %v3090 = vpack.c.bf16 %v3016, %v3016
      %v3091 = vpack.c.bf16 %v3020, %v3020
      %v3092 = vpack.c.bf16 %v3024, %v3024
      %v3093 = vpack.c.bf16 %v3028, %v3028
      %v3094 = vpack.c.bf16 %v3032, %v3032
      %v3095 = vpack.c.bf16 %v3036, %v3036
      %v3096 = vpack.c.bf16 %v3040, %v3040
      %v3097 = vpack.c.bf16 %v3044, %v3044
      %v3098 = vpack.c.bf16 %v3048, %v3048
      %v3099 = vpack.c.bf16 %v3052, %v3052
      %v3100 = vpack.c.bf16 %v3056, %v3056
      %v3101 = vpack.c.bf16 %v3060, %v3060
      %v3102 = vpack.c.bf16 %v3064, %v3064
      %v3103 = vpack.c.bf16 %v3068, %v3068
      %v3104 = vpack.c.bf16 %v3072, %v3072
      %s3105 = scalar_lea.vmem %s4, 300
      %v3106 = vld [vmem:[%s3105] sm:$0xf]
      %v3107 = vld [vmem:[%s3105 + $0x4] sm:$0xf]
      %v3108 = vld [vmem:[%s3105 + $0x8] sm:$0xf]
      %v3109 = vld [vmem:[%s3105 + $0xc] sm:$0xf]
      %v3110 = vld [vmem:[%s3105 + $0x10] sm:$0xf]
      %v3111 = vld [vmem:[%s3105 + $0x14] sm:$0xf]
      %v3112 = vld [vmem:[%s3105 + $0x18] sm:$0xf]
      %v3113 = vld [vmem:[%s3105 + $0x1c] sm:$0xf]
      %v3114 = vld [vmem:[%s3105 + $0x20] sm:$0xf]
      %v3115 = vld [vmem:[%s3105 + $0x24] sm:$0xf]
      %v3116 = vld [vmem:[%s3105 + $0x28] sm:$0xf]
      %v3117 = vld [vmem:[%s3105 + $0x2c] sm:$0xf]
      %v3118 = vld [vmem:[%s3105 + $0x30] sm:$0xf]
      %v3119 = vld [vmem:[%s3105 + $0x34] sm:$0xf]
      %v3120 = vld [vmem:[%s3105 + $0x38] sm:$0xf]
      %v3121 = vld [vmem:[%s3105 + $0x3c] sm:$0xf]
      %v3122 = vld [vmem:[%s3105 + $0x40] sm:$0xf]
      %v3123 = vld [vmem:[%s3105 + $0x44] sm:$0xf]
      %v3124 = vld [vmem:[%s3105 + $0x48] sm:$0xf]
      %v3125 = vld [vmem:[%s3105 + $0x4c] sm:$0xf]
      %v3126 = vld [vmem:[%s3105 + $0x50] sm:$0xf]
      %v3127 = vld [vmem:[%s3105 + $0x54] sm:$0xf]
      %v3128 = vld [vmem:[%s3105 + $0x58] sm:$0xf]
      %v3129 = vld [vmem:[%s3105 + $0x5c] sm:$0xf]
      %v3130 = vld [vmem:[%s3105 + $0x60] sm:$0x3]
      %v3147 = vunpack.c.l.b16 %v3089
      %v3148 = vunpack.c.l.b16 %v3090
      %v3149 = vunpack.c.l.b16 %v3091
      %v3150 = vunpack.c.l.b16 %v3092
      %v3151 = vunpack.c.l.b16 %v3093
      %v3152 = vunpack.c.l.b16 %v3094
      %v3153 = vunpack.c.l.b16 %v3095
      %v3154 = vunpack.c.l.b16 %v3096
      %v3155 = vunpack.c.l.b16 %v3097
      %v3156 = vunpack.c.l.b16 %v3098
      %v3157 = vunpack.c.l.b16 %v3099
      %v3158 = vunpack.c.l.b16 %v3100
      %v3159 = vunpack.c.l.b16 %v3101
      %v3160 = vunpack.c.l.b16 %v3102
      %v3161 = vunpack.c.l.b16 %v3103
      %v3162 = vunpack.c.l.b16 %v3104
      %v3163 = vrot.slane %v3149, 7
      %v3164 = vsel %vm2310, %v3163, %v3147
      %v3165 = vrot.slane %v3151, 6
      %v3166 = vsel %vm2313, %v3165, %v3164
      %v3167 = vrot.slane %v3153, 5
      %v3168 = vsel %vm2316, %v3167, %v3166
      %v3169 = vrot.slane %v3155, 4
      %v3170 = vsel %vm2319, %v3169, %v3168
      %v3171 = vrot.slane %v3157, 3
      %v3172 = vsel %vm2322, %v3171, %v3170
      %v3173 = vrot.slane %v3159, 2
      %v3174 = vsel %vm2325, %v3173, %v3172
      %v3175 = vrot.slane %v3161, 1
      %v3176 = vsel %vm2328, %v3175, %v3174
      %v3177 = vrot.slane %v3150, 7
      %v3178 = vsel %vm2310, %v3177, %v3148
      %v3179 = vrot.slane %v3152, 6
      %v3180 = vsel %vm2313, %v3179, %v3178
      %v3181 = vrot.slane %v3154, 5
      %v3182 = vsel %vm2316, %v3181, %v3180
      %v3183 = vrot.slane %v3156, 4
      %v3184 = vsel %vm2319, %v3183, %v3182
      %v3185 = vrot.slane %v3158, 3
      %v3186 = vsel %vm2322, %v3185, %v3184
      %v3187 = vrot.slane %v3160, 2
      %v3188 = vsel %vm2325, %v3187, %v3186
      %v3189 = vrot.slane %v3162, 1
      %v3190 = vsel %vm2328, %v3189, %v3188
      %v3191 = vpack.c.b16 %v3176, %v3176
      %v3192 = vpack.c.b16 %v3190, %v3190
      %v3219 = vunpack.c.l.b16 %v3106
      %v3220 = vunpack.c.l.b16 %v3107
      %v3221 = vunpack.c.l.b16 %v3108
      %v3222 = vunpack.c.l.b16 %v3109
      %v3223 = vunpack.c.l.b16 %v3110
      %v3224 = vunpack.c.l.b16 %v3111
      %v3225 = vunpack.c.l.b16 %v3112
      %v3226 = vunpack.c.l.b16 %v3113
      %v3227 = vunpack.c.l.b16 %v3114
      %v3228 = vunpack.c.l.b16 %v3115
      %v3229 = vunpack.c.l.b16 %v3116
      %v3230 = vunpack.c.l.b16 %v3117
      %v3231 = vunpack.c.l.b16 %v3118
      %v3232 = vunpack.c.l.b16 %v3119
      %v3233 = vunpack.c.l.b16 %v3120
      %v3234 = vunpack.c.l.b16 %v3121
      %v3235 = vunpack.c.l.b16 %v3122
      %v3236 = vunpack.c.l.b16 %v3123
      %v3237 = vunpack.c.l.b16 %v3124
      %v3238 = vunpack.c.l.b16 %v3125
      %v3239 = vunpack.c.l.b16 %v3126
      %v3240 = vunpack.c.l.b16 %v3127
      %v3241 = vunpack.c.l.b16 %v3128
      %v3242 = vunpack.c.l.b16 %v3129
      %v3243 = vunpack.c.l.b16 %v3130
      %v3244 = vpack.c.b16 %v3220, %v3219
      %v3245 = vpack.c.b16 %v3222, %v3221
      %v3246 = vpack.c.b16 %v3224, %v3223
      %v3247 = vpack.c.b16 %v3226, %v3225
      %v3248 = vpack.c.b16 %v3228, %v3227
      %v3249 = vpack.c.b16 %v3230, %v3229
      %v3250 = vpack.c.b16 %v3232, %v3231
      %v3251 = vpack.c.b16 %v3234, %v3233
      %v3252 = vpack.c.b16 %v3236, %v3235
      %v3253 = vpack.c.b16 %v3238, %v3237
      %v3254 = vpack.c.b16 %v3240, %v3239
      %v3255 = vpack.c.b16 %v3242, %v3241
      %v3256 = vpack.c.b16 %v3243, %v3243
      %v3270 = vsel %vm2422, %v3192, 0
      %v3273 = vsel %vm2426, %v3256, 0
      %3275 = vmatprep.subr.bf16.mxu0 0
      %3276 = vmatpush1.bf16.msra.mxu0 %v3251
      %3277 = vmatprep.subr.bf16.mxu0 0
      %3278 = vmatpush1.bf16.msra.mxu0 %v3250
      %3279 = vmatprep.subr.bf16.mxu0 0
      %3280 = vmatpush1.bf16.msra.mxu0 %v3249
      %3281 = vmatprep.subr.bf16.mxu0 0
      %3282 = vmatpush1.bf16.msra.mxu0 %v3248
      %3283 = vmatprep.subr.bf16.mxu0 0
      %3284 = vmatpush1.bf16.msra.mxu0 %v3247
      %3285 = vmatprep.subr.bf16.mxu0 0
      %3286 = vmatpush1.bf16.msra.mxu0 %v3246
      %3287 = vmatprep.subr.bf16.mxu0 0
      %3288 = vmatpush1.bf16.msra.mxu0 %v3245
      %3289 = vmatprep.subr.bf16.mxu0 0
      %3290 = vmatpush1.bf16.msra.mxu0 %v3244
      %3291 = vmatprep.subr.bf16.mxu0 0
      %3292 = vmatpush2.bf16.msra.mxu0 0
      %3293 = vmatprep.subr.bf16.mxu0 0
      %3294 = vmatpush2.bf16.msra.mxu0 0
      %3295 = vmatprep.subr.bf16.mxu0 0
      %3296 = vmatpush2.bf16.msra.mxu0 0
      %3297 = vmatprep.subr.bf16.mxu0 0
      %3298 = vmatpush2.bf16.msra.mxu0 %v3273
      %3299 = vmatprep.subr.bf16.mxu0 0
      %3300 = vmatpush2.bf16.msra.mxu0 %v3255
      %3301 = vmatprep.subr.bf16.mxu0 0
      %3302 = vmatpush2.bf16.msra.mxu0 %v3254
      %3303 = vmatprep.subr.bf16.mxu0 0
      %3304 = vmatpush2.bf16.msra.mxu0 %v3253
      %3305 = vmatprep.subr.bf16.mxu0 0
      %3306 = vmatpush2.bf16.msra.mxu0 %v3252
      %3307 = vmatprep.mubr.bf16.mxu0 %v3270
      %3308 = vmatmul.mubr.bf16.gmra.mxu0 %v3191
      %v3309 = vpop.f32.mrf.mxu0
      %v3310 = vadd.f32 0.0, %v3309
      %v3311 = vpop.f32.mrf.mxu0
      %v3312 = vpop.f32.mrf.mxu0
      %v3313 = vpop.f32.mrf.mxu0
      %3314 = vdwg.mxu0
      %v3315 = vadd.f32 %v2984, %v3310
      %v3316 = vld [vmem:[%s5] sm:$0x1]
      %v3318 = vlaneseq
      %v3319 = vshrl.u32 %v3318, 7
      %v3320 = vsub.s32 0, %v3319
      %v3321 = vrot.slane %v3316, %v3320
      %v3323 = vadd.f32 %v3315, %v3321
      %3324 = vmax.xlane.f32.xlu0 %v3323
      %v3325 = vpop.xlane.xlu0 %3324
      %v3326 = vsub.f32 %v3323, %v3325
      %v3327 = vmul.f32 %v3326, 1.442695
      %v3328 = vpow.pop %v3327
      %3329 = vadd.xlane.f32.xlu0 %v3328
      %v3330 = vpop.xlane.xlu0 %3329
      %v3331 = vlog2.pop %v3330
      %v3332 = vmul.f32 %v3331, 0.6931472
      %v3333 = vsub.f32 %v3326, %v3332
      %3334 = vst [vmem:[%s254] sm:$0xff] %v3333
      %p3335 = scmp.lt.s32.totalorder %s17, 1
      %s3336 = scalar_select %p3335, %s17, 1
      %s3337 = smul.addr %s3336, 8
      %s3338 = scalar_lea.vmem %s6, %s3337
      // Predicated region
      $region45: #{hybrid_model_forward.1} parent=43 // pred_check
        %p3339 = pneg %p166
      $region46: #{hybrid_model_forward.1} parent=43 // pred_check_branch
        %3341 = sbr.rel (%p3339) target = $region48
      $region47: #{hybrid_model_forward.1} parent=43 // pred_region
        _
      $region48: #{hybrid_model_forward.1} parent=43 // pred_fallthru
        _
    $region44: #{hybrid_model_forward.1} parent=5 // pred_fallthru
      _
    %p3342 = scmp.le.s32.totalorder 2, %s12
    // Predicated region
    $region49: #{hybrid_model_forward.1} parent=5 // pred_check
      %p3343 = pneg %p3342
    $region50: #{hybrid_model_forward.1} parent=5 // pred_check_branch
      %3345 = sbr.rel (%p3343) target = $region52
    $region51: #{hybrid_model_forward.1} parent=5 // pred_region
      %s3346 = ssub.s32 %s12, 2
      // Predicated region
      $region53: #{hybrid_model_forward.1} parent=51 // pred_check
        %p3347 = pneg %p172
      $region54: #{hybrid_model_forward.1} parent=51 // pred_check_branch
        %3349 = sbr.rel (%p3347) target = $region56
      $region55: #{hybrid_model_forward.1} parent=51 // pred_region
        %p3350 = scmp.lt.s32.totalorder %s18, 1
        %s3351 = scalar_select %p3350, %s18, 1
        %s3352 = smul.addr %s3351, 8
        %s3353 = scalar_lea.vmem %s6, %s3352
      $region56: #{hybrid_model_forward.1} parent=51 // pred_fallthru
        _
    $region52: #{hybrid_model_forward.1} parent=5 // pred_fallthru
      _
  $region6: #{hybrid_model_forward.1} parent=0 // loop_footer
    %s16 = sadd.s32 1, %s12
  $region7: #{hybrid_model_forward.1} parent=0 // loop_footer_branch
    %11 = sbr.rel target = $region3
  $region8: #{hybrid_model_forward.1} parent=0 // loop_exit
    _

</llo_original>
